<compile_context>
chip_gen: v6e
topology: v6e:2x2x1
jax: 0.10.0
libtpu: 0.0.40
codegen_flags: <defaults>
</compile_context>

<pallas_src>
import jax
import jax.numpy as jnp
from jax.experimental import pallas as pl
from jax.experimental.pallas import tpu as pltpu

NUM_TRAIN_TIMESTEPS = 1000
NUM_LABELS = 24
COND_DIM = 64
LATENT_C = 4
HIDDEN = 64
TEMB_DIM = 128


# ----------------------------------------------------------------------------
# Fused Pallas kernel
# ----------------------------------------------------------------------------
def _silu(x):
    return x * jax.nn.sigmoid(x)


def _conv3x3(x, w_all, b, s_ref, c_out):
    """3x3 'same' conv on an 8x8 token map, entirely on-chip.

    x:     [T, C_in] row-major (h*8+w) tokens
    w_all: [C_in, 9*c_out]  (tap-k weights in columns k*c_out:(k+1)*c_out)
    s_ref: [9, T, T] constant shift(+zero-pad mask) matrices
    y[t]   = sum_k S_k[t, :] @ (x @ W_k)
    """
    z = jnp.dot(x, w_all, preferred_element_type=jnp.float32)        # [T, 9*c_out]
    acc = jnp.dot(s_ref[0], z[:, :c_out], preferred_element_type=jnp.float32)
    for k in range(1, 9):
        acc = acc + jnp.dot(s_ref[k], z[:, k * c_out:(k + 1) * c_out],
                            preferred_element_type=jnp.float32)
    return acc + b


def _fused_ldm_kernel(
    labels_ref, patches_ref, eps_ref, noise_ref, sched_ref, temb_ref, s_ref,
    vae_w_ref, vae_b_ref,
    ce_w1_ref, ce_b1_ref, ce_g_ref, ce_beta_ref,
    ce_w2_ref, ce_b2_ref, ce_w3_ref, ce_b3_ref,
    t_w1_ref, t_b1_ref, t_w2_ref, t_b2_ref,
    cin_w_ref, cin_b_ref,
    attn_wv_ref, attn_wo_ref,
    cout_w_ref, cout_b_ref,
    sse_ref, lat2_ref):
    f32 = jnp.float32

    # ---- encode(): stand-in VAE (patch-8 projection -> diagonal Gaussian) ----
    # TODO(synk): the reference uses a frozen pretrained AutoencoderKL; this is a
    # deterministic patch-8 projection to (mean|logvar), sampled & scaled by 0.18215.
    p = patches_ref[0]                                              # [T, 192]
    ml = jnp.dot(p, vae_w_ref[...], preferred_element_type=f32) + vae_b_ref[...]
    mean = ml[:, :LATENT_C]
    logvar = jnp.clip(ml[:, LATENT_C:], -30.0, 20.0)
    latents = (mean + jnp.exp(0.5 * logvar) * eps_ref[0]) * 0.18215  # [T, 4]

    # ---- DDPM add_noise: s1 * x0 + s2 * eps (per-batch scalars) ----
    s = sched_ref[0]                                                 # [1, 2]
    noise = noise_ref[0]                                             # [T, 4]
    noisy = s[:, 0:1] * latents + s[:, 1:2] * noise

    # ---- prepare_condition(): Linear/SiLU/LN/Dropout/Linear/SiLU/Linear/SiLU ----
    # TODO(synk): nn.Dropout(0.1) applied as identity (eval semantics).
    lab = labels_ref[0]                                              # [1, 24]
    h = _silu(jnp.dot(lab, ce_w1_ref[...], preferred_element_type=f32) + ce_b1_ref[...])
    mu = jnp.mean(h, axis=-1, keepdims=True)
    var = jnp.mean(jnp.square(h - mu), axis=-1, keepdims=True)
    h = (h - mu) * jax.lax.rsqrt(var + 1e-5) * ce_g_ref[...] + ce_beta_ref[...]
    h = _silu(jnp.dot(h, ce_w2_ref[...], preferred_element_type=f32) + ce_b2_ref[...])
    cond = _silu(jnp.dot(h, ce_w3_ref[...], preferred_element_type=f32) + ce_b3_ref[...])

    # Cross-attention with a single condition token: softmax over a length-1 KV
    # axis is identically 1, so the q / Wq / Wk / scale path is mathematically a
    # no-op; the block reduces exactly to x + broadcast((cond @ Wv) @ Wo).
    cvo = jnp.dot(jnp.dot(cond, attn_wv_ref[...], preferred_element_type=f32),
                  attn_wo_ref[...], preferred_element_type=f32)      # [1, HIDDEN]

    # ---- timestep embedding MLP ----
    te = temb_ref[0]                                                 # [1, 128]
    te = _silu(jnp.dot(te, t_w1_ref[...], preferred_element_type=f32) + t_b1_ref[...])
    te = jnp.dot(te, t_w2_ref[...], preferred_element_type=f32) + t_b2_ref[...]

    # ---- UNet stand-in: conv_in -> +temb/SiLU -> cross-attn add -> conv_out ----
    # TODO(synk): diffusers UNet2DConditionModel (multi-scale cross-attn UNet) is
    # not reproduced; this is a minimal conditional denoiser stand-in.
    x = _conv3x3(noisy, cin_w_ref[...], cin_b_ref[...], s_ref, HIDDEN)   # [T, 64]
    x = _silu(x + te)                                                # temb broadcast on-chip
    x = x + cvo                                                      # cross-attn residual
    pred = _conv3x3(x, cout_w_ref[...], cout_b_ref[...], s_ref, LATENT_C)  # [T, 4]

    # ---- loss partial sums (prediction never leaves VMEM) ----
    d = pred - noise
    sse_ref[0] = jnp.sum(d * d, keepdims=True)
    lat2_ref[0] = jnp.sum(latents * latents, keepdims=True)


# ----------------------------------------------------------------------------
# Plain-JAX glue (tiny: layout, randomness, schedule, final scalar combine)
# ----------------------------------------------------------------------------
def squaredcos_alphas_cumprod(T):
    def alpha_bar(t):
        return jnp.cos((t + 0.008) / 1.008 * jnp.pi / 2) ** 2
    i = jnp.arange(T, dtype=jnp.float32)
    betas = jnp.minimum(1.0 - alpha_bar((i + 1) / T) / alpha_bar(i / T), 0.999)
    return jnp.cumprod(1.0 - betas)


def timestep_embedding(t, dim=TEMB_DIM):
    half = dim // 2
    freqs = jnp.exp(-jnp.log(10000.0) * jnp.arange(half, dtype=jnp.float32) / half)
    args = t.astype(jnp.float32)[:, None] * freqs[None, :]
    return jnp.concatenate([jnp.sin(args), jnp.cos(args)], axis=-1)


def patchify8(x):  # [B,H,W,C] -> [B*(H//8)*(W//8), 64*C]
    B, H, W, C = x.shape
    x = x.reshape(B, H // 8, 8, W // 8, 8, C).transpose(0, 1, 3, 2, 4, 5)
    return x.reshape(B * (H // 8) * (W // 8), 8 * 8 * C)


def conv3x3_shift_matrices(h, w):
    """S[k, t, t'] = 1 iff token t' is the k-th 3x3 neighbour of token t (zero pad)."""
    T = h * w
    t = jnp.arange(T)
    hh, ww = t // w, t % w
    mats = []
    for dh in (-1, 0, 1):
        for dw in (-1, 0, 1):
            nh, nw = hh + dh, ww + dw
            valid = (nh >= 0) & (nh < h) & (nw >= 0) & (nw < w)
            nidx = jnp.clip(nh, 0, h - 1) * w + jnp.clip(nw, 0, w - 1)
            m = (t[None, :] == nidx[:, None]) & valid[:, None]
            mats.append(m.astype(jnp.float32))
    return jnp.stack(mats)  # [9, T, T]


def init_params(key):
    def nrm(k, shape, scale=0.02):
        return jax.random.normal(k, shape, jnp.float32) * scale
    ks = jax.random.split(key, 12)
    p = {}
    # condition_embedding: 24 -> 512 -> LN -> 256 -> 64 (biases stored as [1,N])
    p["ce_w1"], p["ce_b1"] = nrm(ks[0], (NUM_LABELS, 512)), jnp.zeros((1, 512), jnp.float32)
    p["ce_ln_g"], p["ce_ln_b"] = jnp.ones((1, 512), jnp.float32), jnp.zeros((1, 512), jnp.float32)
    p["ce_w2"], p["ce_b2"] = nrm(ks[1], (512, 256)), jnp.zeros((1, 256), jnp.float32)
    p["ce_w3"], p["ce_b3"] = nrm(ks[2], (256, COND_DIM)), jnp.zeros((1, COND_DIM), jnp.float32)
    # stand-in VAE encoder: fused (mean | logvar) projection of 8x8 patches
    p["vae_w"], p["vae_b"] = nrm(ks[3], (8 * 8 * 3, 2 * LATENT_C)), jnp.zeros((1, 2 * LATENT_C), jnp.float32)
    # stand-in conditional UNet
    p["t_w1"], p["t_b1"] = nrm(ks[4], (TEMB_DIM, HIDDEN)), jnp.zeros((1, HIDDEN), jnp.float32)
    p["t_w2"], p["t_b2"] = nrm(ks[5], (HIDDEN, HIDDEN)), jnp.zeros((1, HIDDEN), jnp.float32)
    # 3x3 conv weights stored fused as [C_in, 9*C_out] (per-tap column blocks)
    p["conv_in_w"], p["conv_in_b"] = nrm(ks[6], (LATENT_C, 9 * HIDDEN)), jnp.zeros((1, HIDDEN), jnp.float32)
    # Wq/Wk omitted: with a single KV token the softmax path is exactly a no-op.
    p["attn_wv"] = nrm(ks[7], (COND_DIM, HIDDEN))
    p["attn_wo"] = nrm(ks[8], (HIDDEN, HIDDEN))
    p["conv_out_w"], p["conv_out_b"] = nrm(ks[9], (HIDDEN, 9 * LATENT_C)), jnp.zeros((1, LATENT_C), jnp.float32)
    return p


# ----------------------------------------------------------------------------
# Forward pass (== ConditionalLDM.forward -> scalar diffusion loss)
# ----------------------------------------------------------------------------
def conditional_ldm_forward(params, pixel_values, labels, rng):
    B, H, W, _ = pixel_values.shape
    Hl, Wl = H // 8, W // 8
    T = Hl * Wl
    rng_eps, rng_noise, rng_t = jax.random.split(rng, 3)

    patches = patchify8(pixel_values).reshape(B, T, 8 * 8 * 3)        # [B, T, 192]
    eps = jax.random.normal(rng_eps, (B, T, LATENT_C), jnp.float32)
    noise = jax.random.normal(rng_noise, (B, T, LATENT_C), jnp.float32)
    timesteps = jax.random.randint(rng_t, (B,), 0, NUM_TRAIN_TIMESTEPS)
    acp = squaredcos_alphas_cumprod(NUM_TRAIN_TIMESTEPS)
    sched = jnp.stack([jnp.sqrt(acp[timesteps]),
                       jnp.sqrt(1.0 - acp[timesteps])], axis=-1).reshape(B, 1, 2)
    temb = timestep_embedding(timesteps).reshape(B, 1, TEMB_DIM)
    labels3 = labels.reshape(B, 1, NUM_LABELS)
    smat = conv3x3_shift_matrices(Hl, Wl)                             # [9, T, T]

    def batch_spec(shape):          # one batch element per grid step
        nd = len(shape)
        return pl.BlockSpec((1,) + tuple(shape[1:]),
                            lambda b, _n=nd: (b,) + (0,) * (_n - 1))

    def const_spec(arr):            # fully-resident weight / constant block
        nd = arr.ndim
        return pl.BlockSpec(arr.shape, lambda b, _n=nd: (0,) * _n)

    weight_order = ["vae_w", "vae_b",
                    "ce_w1", "ce_b1", "ce_ln_g", "ce_ln_b",
                    "ce_w2", "ce_b2", "ce_w3", "ce_b3",
                    "t_w1", "t_b1", "t_w2", "t_b2",
                    "conv_in_w", "conv_in_b",
                    "attn_wv", "attn_wo",
                    "conv_out_w", "conv_out_b"]
    weights = [params[k] for k in weight_order]

    in_specs = ([batch_spec(labels3.shape), batch_spec(patches.shape),
                 batch_spec(eps.shape), batch_spec(noise.shape),
                 batch_spec(sched.shape), batch_spec(temb.shape),
                 const_spec(smat)]
                + [const_spec(w) for w in weights])
    out_spec = pl.BlockSpec((1, 1, 1), lambda b: (b, 0, 0))

    sse, lat2 = pl.pallas_call(
        _fused_ldm_kernel,
        out_shape=(jax.ShapeDtypeStruct((B, 1, 1), jnp.float32),
                   jax.ShapeDtypeStruct((B, 1, 1), jnp.float32)),
        grid=(B,),
        in_specs=in_specs,
        out_specs=(out_spec, out_spec),
        compiler_params=pltpu.CompilerParams(dimension_semantics=("parallel",)),
    )(labels3, patches, eps, noise, sched, temb, smat, *weights)

    # loss = mse(noise_pred, noise) + 0.1 * mean(latents^2)
    n_elem = B * T * LATENT_C
    return jnp.sum(sse) / n_elem + 0.1 * jnp.sum(lat2) / n_elem


if __name__ == "__main__":
    key = jax.random.PRNGKey(0)
    k_param, k_px, k_lab, k_rng = jax.random.split(key, 4)

    B, H, W = 2, 64, 64
    # NCHW reference input [2, 3, 64, 64] -> NHWC here.
    pixel_values = jax.random.normal(k_px, (B, H, W, 3), jnp.float32)
    labels = jax.nn.one_hot(jax.random.randint(k_lab, (B,), 0, NUM_LABELS),
                            NUM_LABELS, dtype=jnp.float32)

    params = init_params(k_param)
    fwd = jax.jit(conditional_ldm_forward)
    loss = fwd(params, pixel_values, labels, k_rng)
    jax.block_until_ready(loss)
    assert loss.shape == () and bool(jnp.isfinite(loss))
    print("KERNEL_OK")
</pallas_src>

<mosaic_0001>
module attributes {stable_mosaic.version = 11 : i64} {
  func.func @_fused_ldm_kernel(%arg0: i32, %arg1: memref<1x1x24xf32, #tpu.memory_space<vmem>>, %arg2: memref<1x64x192xf32, #tpu.memory_space<vmem>>, %arg3: memref<1x64x4xf32, #tpu.memory_space<vmem>>, %arg4: memref<1x64x4xf32, #tpu.memory_space<vmem>>, %arg5: memref<1x1x2xf32, #tpu.memory_space<vmem>>, %arg6: memref<1x1x128xf32, #tpu.memory_space<vmem>>, %arg7: memref<9x64x64xf32, #tpu.memory_space<vmem>>, %arg8: memref<192x8xf32, #tpu.memory_space<vmem>>, %arg9: memref<1x8xf32, #tpu.memory_space<vmem>>, %arg10: memref<24x512xf32, #tpu.memory_space<vmem>>, %arg11: memref<1x512xf32, #tpu.memory_space<vmem>>, %arg12: memref<1x512xf32, #tpu.memory_space<vmem>>, %arg13: memref<1x512xf32, #tpu.memory_space<vmem>>, %arg14: memref<512x256xf32, #tpu.memory_space<vmem>>, %arg15: memref<1x256xf32, #tpu.memory_space<vmem>>, %arg16: memref<256x64xf32, #tpu.memory_space<vmem>>, %arg17: memref<1x64xf32, #tpu.memory_space<vmem>>, %arg18: memref<128x64xf32, #tpu.memory_space<vmem>>, %arg19: memref<1x64xf32, #tpu.memory_space<vmem>>, %arg20: memref<64x64xf32, #tpu.memory_space<vmem>>, %arg21: memref<1x64xf32, #tpu.memory_space<vmem>>, %arg22: memref<4x576xf32, #tpu.memory_space<vmem>>, %arg23: memref<1x64xf32, #tpu.memory_space<vmem>>, %arg24: memref<64x64xf32, #tpu.memory_space<vmem>>, %arg25: memref<64x64xf32, #tpu.memory_space<vmem>>, %arg26: memref<64x36xf32, #tpu.memory_space<vmem>>, %arg27: memref<1x4xf32, #tpu.memory_space<vmem>>, %arg28: memref<1x1x1xf32, #tpu.memory_space<vmem>>, %arg29: memref<1x1x1xf32, #tpu.memory_space<vmem>>) attributes {dimension_semantics = [#tpu.dimension_semantics<parallel>], iteration_bounds = array<i64: 2>, scalar_prefetch = 0 : i64, scratch_operands = 0 : i64, tpu.core_type = #tpu.core_type<tc>, window_params = [{transform_indices = @transform_0, window_bounds = array<i64: 1, 1, 24>}, {transform_indices = @transform_1, window_bounds = array<i64: 1, 64, 192>}, {transform_indices = @transform_2, window_bounds = array<i64: 1, 64, 4>}, {transform_indices = @transform_3, window_bounds = array<i64: 1, 64, 4>}, {transform_indices = @transform_4, window_bounds = array<i64: 1, 1, 2>}, {transform_indices = @transform_5, window_bounds = array<i64: 1, 1, 128>}, {pipeline_mode = #tpu.pipeline_mode<synchronous>, transform_indices = @transform_6, window_bounds = array<i64: 9, 64, 64>}, {pipeline_mode = #tpu.pipeline_mode<synchronous>, transform_indices = @transform_7, window_bounds = array<i64: 192, 8>}, {pipeline_mode = #tpu.pipeline_mode<synchronous>, transform_indices = @transform_8, window_bounds = array<i64: 1, 8>}, {pipeline_mode = #tpu.pipeline_mode<synchronous>, transform_indices = @transform_9, window_bounds = array<i64: 24, 512>}, {pipeline_mode = #tpu.pipeline_mode<synchronous>, transform_indices = @transform_10, window_bounds = array<i64: 1, 512>}, {pipeline_mode = #tpu.pipeline_mode<synchronous>, transform_indices = @transform_11, window_bounds = array<i64: 1, 512>}, {pipeline_mode = #tpu.pipeline_mode<synchronous>, transform_indices = @transform_12, window_bounds = array<i64: 1, 512>}, {pipeline_mode = #tpu.pipeline_mode<synchronous>, transform_indices = @transform_13, window_bounds = array<i64: 512, 256>}, {pipeline_mode = #tpu.pipeline_mode<synchronous>, transform_indices = @transform_14, window_bounds = array<i64: 1, 256>}, {pipeline_mode = #tpu.pipeline_mode<synchronous>, transform_indices = @transform_15, window_bounds = array<i64: 256, 64>}, {pipeline_mode = #tpu.pipeline_mode<synchronous>, transform_indices = @transform_16, window_bounds = array<i64: 1, 64>}, {pipeline_mode = #tpu.pipeline_mode<synchronous>, transform_indices = @transform_17, window_bounds = array<i64: 128, 64>}, {pipeline_mode = #tpu.pipeline_mode<synchronous>, transform_indices = @transform_18, window_bounds = array<i64: 1, 64>}, {pipeline_mode = #tpu.pipeline_mode<synchronous>, transform_indices = @transform_19, window_bounds = array<i64: 64, 64>}, {pipeline_mode = #tpu.pipeline_mode<synchronous>, transform_indices = @transform_20, window_bounds = array<i64: 1, 64>}, {pipeline_mode = #tpu.pipeline_mode<synchronous>, transform_indices = @transform_21, window_bounds = array<i64: 4, 576>}, {pipeline_mode = #tpu.pipeline_mode<synchronous>, transform_indices = @transform_22, window_bounds = array<i64: 1, 64>}, {pipeline_mode = #tpu.pipeline_mode<synchronous>, transform_indices = @transform_23, window_bounds = array<i64: 64, 64>}, {pipeline_mode = #tpu.pipeline_mode<synchronous>, transform_indices = @transform_24, window_bounds = array<i64: 64, 64>}, {pipeline_mode = #tpu.pipeline_mode<synchronous>, transform_indices = @transform_25, window_bounds = array<i64: 64, 36>}, {pipeline_mode = #tpu.pipeline_mode<synchronous>, transform_indices = @transform_26, window_bounds = array<i64: 1, 4>}, {transform_indices = @transform_27, window_bounds = array<i64: 1, 1, 1>}, {transform_indices = @transform_28, window_bounds = array<i64: 1, 1, 1>}]} {
    %c0 = arith.constant 0 : index
    %c0_0 = arith.constant 0 : index
    %c0_1 = arith.constant 0 : index
    %0 = vector.load %arg2[%c0, %c0_0, %c0_1] : memref<1x64x192xf32, #tpu.memory_space<vmem>>, vector<1x64x192xf32>
    %1 = vector.shape_cast %0 : vector<1x64x192xf32> to vector<64x192xf32>
    %c0_2 = arith.constant 0 : index
    %c0_3 = arith.constant 0 : index
    %2 = vector.load %arg8[%c0_2, %c0_3] : memref<192x8xf32, #tpu.memory_space<vmem>>, vector<192x8xf32>
    %cst = arith.constant dense<0.000000e+00> : vector<64x8xf32>
    %3 = tpu.matmul %1, %2, %cst {dimension_numbers = #tpu.dot_dimension_numbers<[1], [0], [0], [1], [0, 0, 1, 1], [], []>} : vector<64x192xf32>, vector<192x8xf32>, vector<64x8xf32> -> vector<64x8xf32>
    %c0_4 = arith.constant 0 : index
    %c0_5 = arith.constant 0 : index
    %4 = vector.load %arg9[%c0_4, %c0_5] : memref<1x8xf32, #tpu.memory_space<vmem>>, vector<1x8xf32>
    %5 = vector.broadcast %4 : vector<1x8xf32> to vector<64x8xf32>
    %6 = arith.addf %3, %5 : vector<64x8xf32>
    %7 = vector.extract_strided_slice %6 {offsets = [0, 0], sizes = [64, 4], strides = [1, 1]} : vector<64x8xf32> to vector<64x4xf32>
    %8 = vector.extract_strided_slice %6 {offsets = [0, 4], sizes = [64, 4], strides = [1, 1]} : vector<64x8xf32> to vector<64x4xf32>
    %cst_6 = arith.constant -3.000000e+01 : f32
    %cst_7 = arith.constant 2.000000e+01 : f32
    %9 = vector.broadcast %cst_6 : f32 to vector<64x4xf32>
    %10 = arith.maximumf %9, %8 : vector<64x4xf32>
    %11 = vector.broadcast %cst_7 : f32 to vector<64x4xf32>
    %12 = arith.minimumf %11, %10 : vector<64x4xf32>
    %cst_8 = arith.constant 5.000000e-01 : f32
    %13 = vector.broadcast %cst_8 : f32 to vector<64x4xf32>
    %14 = arith.mulf %13, %12 : vector<64x4xf32>
    %15 = math.exp %14 : vector<64x4xf32>
    %c0_9 = arith.constant 0 : index
    %c0_10 = arith.constant 0 : index
    %c0_11 = arith.constant 0 : index
    %16 = vector.load %arg3[%c0_9, %c0_10, %c0_11] : memref<1x64x4xf32, #tpu.memory_space<vmem>>, vector<1x64x4xf32>
    %17 = vector.shape_cast %16 : vector<1x64x4xf32> to vector<64x4xf32>
    %18 = arith.mulf %15, %17 : vector<64x4xf32>
    %19 = arith.addf %7, %18 : vector<64x4xf32>
    %cst_12 = arith.constant 1.821500e-01 : f32
    %20 = vector.broadcast %cst_12 : f32 to vector<64x4xf32>
    %21 = arith.mulf %19, %20 : vector<64x4xf32>
    %c0_13 = arith.constant 0 : index
    %c0_14 = arith.constant 0 : index
    %c0_15 = arith.constant 0 : index
    %22 = vector.load %arg5[%c0_13, %c0_14, %c0_15] : memref<1x1x2xf32, #tpu.memory_space<vmem>>, vector<1x1x2xf32>
    %23 = vector.shape_cast %22 : vector<1x1x2xf32> to vector<1x2xf32>
    %c0_16 = arith.constant 0 : index
    %c0_17 = arith.constant 0 : index
    %c0_18 = arith.constant 0 : index
    %24 = vector.load %arg4[%c0_16, %c0_17, %c0_18] : memref<1x64x4xf32, #tpu.memory_space<vmem>>, vector<1x64x4xf32>
    %25 = vector.shape_cast %24 : vector<1x64x4xf32> to vector<64x4xf32>
    %26 = vector.extract_strided_slice %23 {offsets = [0, 0], sizes = [1, 1], strides = [1, 1]} : vector<1x2xf32> to vector<1x1xf32>
    %27 = vector.broadcast %26 : vector<1x1xf32> to vector<64x4xf32>
    %28 = arith.mulf %27, %21 : vector<64x4xf32>
    %29 = vector.extract_strided_slice %23 {offsets = [0, 1], sizes = [1, 1], strides = [1, 1]} : vector<1x2xf32> to vector<1x1xf32>
    %30 = vector.broadcast %29 : vector<1x1xf32> to vector<64x4xf32>
    %31 = arith.mulf %30, %25 : vector<64x4xf32>
    %32 = arith.addf %28, %31 : vector<64x4xf32>
    %c0_19 = arith.constant 0 : index
    %c0_20 = arith.constant 0 : index
    %c0_21 = arith.constant 0 : index
    %33 = vector.load %arg1[%c0_19, %c0_20, %c0_21] : memref<1x1x24xf32, #tpu.memory_space<vmem>>, vector<1x1x24xf32>
    %34 = vector.shape_cast %33 : vector<1x1x24xf32> to vector<1x24xf32>
    %c0_22 = arith.constant 0 : index
    %c0_23 = arith.constant 0 : index
    %35 = vector.load %arg10[%c0_22, %c0_23] : memref<24x512xf32, #tpu.memory_space<vmem>>, vector<24x512xf32>
    %cst_24 = arith.constant dense<0.000000e+00> : vector<1x512xf32>
    %36 = tpu.matmul %34, %35, %cst_24 {dimension_numbers = #tpu.dot_dimension_numbers<[1], [0], [0], [1], [0, 0, 1, 1], [], []>} : vector<1x24xf32>, vector<24x512xf32>, vector<1x512xf32> -> vector<1x512xf32>
    %c0_25 = arith.constant 0 : index
    %c0_26 = arith.constant 0 : index
    %37 = vector.load %arg11[%c0_25, %c0_26] : memref<1x512xf32, #tpu.memory_space<vmem>>, vector<1x512xf32>
    %38 = arith.addf %36, %37 : vector<1x512xf32>
    %39 = arith.negf %38 : vector<1x512xf32>
    %40 = math.exp %39 : vector<1x512xf32>
    %cst_27 = arith.constant 1.000000e+00 : f32
    %41 = vector.broadcast %cst_27 : f32 to vector<1x512xf32>
    %42 = arith.addf %41, %40 : vector<1x512xf32>
    %43 = arith.divf %41, %42 : vector<1x512xf32>
    %44 = arith.mulf %38, %43 : vector<1x512xf32>
    %cst_28 = arith.constant dense<0.000000e+00> : vector<1xf32>
    %45 = vector.multi_reduction <add>, %44, %cst_28 [1] : vector<1x512xf32> to vector<1xf32>
    %46 = vector.shape_cast %45 : vector<1xf32> to vector<1x1xf32>
    %cst_29 = arith.constant 5.120000e+02 : f32
    %47 = vector.broadcast %cst_29 : f32 to vector<1x1xf32>
    %48 = arith.divf %46, %47 : vector<1x1xf32>
    %49 = vector.broadcast %48 : vector<1x1xf32> to vector<1x512xf32>
    %50 = arith.subf %44, %49 : vector<1x512xf32>
    %51 = arith.mulf %50, %50 : vector<1x512xf32>
    %cst_30 = arith.constant dense<0.000000e+00> : vector<1xf32>
    %52 = vector.multi_reduction <add>, %51, %cst_30 [1] : vector<1x512xf32> to vector<1xf32>
    %53 = vector.shape_cast %52 : vector<1xf32> to vector<1x1xf32>
    %cst_31 = arith.constant 5.120000e+02 : f32
    %54 = vector.broadcast %cst_31 : f32 to vector<1x1xf32>
    %55 = arith.divf %53, %54 : vector<1x1xf32>
    %56 = vector.broadcast %48 : vector<1x1xf32> to vector<1x512xf32>
    %57 = arith.subf %44, %56 : vector<1x512xf32>
    %cst_32 = arith.constant 9.99999974E-6 : f32
    %58 = vector.broadcast %cst_32 : f32 to vector<1x1xf32>
    %59 = arith.addf %55, %58 : vector<1x1xf32>
    %60 = math.rsqrt %59 : vector<1x1xf32>
    %61 = vector.broadcast %60 : vector<1x1xf32> to vector<1x512xf32>
    %62 = arith.mulf %57, %61 : vector<1x512xf32>
    %c0_33 = arith.constant 0 : index
    %c0_34 = arith.constant 0 : index
    %63 = vector.load %arg12[%c0_33, %c0_34] : memref<1x512xf32, #tpu.memory_space<vmem>>, vector<1x512xf32>
    %64 = arith.mulf %62, %63 : vector<1x512xf32>
    %c0_35 = arith.constant 0 : index
    %c0_36 = arith.constant 0 : index
    %65 = vector.load %arg13[%c0_35, %c0_36] : memref<1x512xf32, #tpu.memory_space<vmem>>, vector<1x512xf32>
    %66 = arith.addf %64, %65 : vector<1x512xf32>
    %c0_37 = arith.constant 0 : index
    %c0_38 = arith.constant 0 : index
    %67 = vector.load %arg14[%c0_37, %c0_38] : memref<512x256xf32, #tpu.memory_space<vmem>>, vector<512x256xf32>
    %cst_39 = arith.constant dense<0.000000e+00> : vector<1x256xf32>
    %68 = tpu.matmul %66, %67, %cst_39 {dimension_numbers = #tpu.dot_dimension_numbers<[1], [0], [0], [1], [0, 0, 1, 1], [], []>} : vector<1x512xf32>, vector<512x256xf32>, vector<1x256xf32> -> vector<1x256xf32>
    %c0_40 = arith.constant 0 : index
    %c0_41 = arith.constant 0 : index
    %69 = vector.load %arg15[%c0_40, %c0_41] : memref<1x256xf32, #tpu.memory_space<vmem>>, vector<1x256xf32>
    %70 = arith.addf %68, %69 : vector<1x256xf32>
    %71 = arith.negf %70 : vector<1x256xf32>
    %72 = math.exp %71 : vector<1x256xf32>
    %cst_42 = arith.constant 1.000000e+00 : f32
    %73 = vector.broadcast %cst_42 : f32 to vector<1x256xf32>
    %74 = arith.addf %73, %72 : vector<1x256xf32>
    %75 = arith.divf %73, %74 : vector<1x256xf32>
    %76 = arith.mulf %70, %75 : vector<1x256xf32>
    %c0_43 = arith.constant 0 : index
    %c0_44 = arith.constant 0 : index
    %77 = vector.load %arg16[%c0_43, %c0_44] : memref<256x64xf32, #tpu.memory_space<vmem>>, vector<256x64xf32>
    %cst_45 = arith.constant dense<0.000000e+00> : vector<1x64xf32>
    %78 = tpu.matmul %76, %77, %cst_45 {dimension_numbers = #tpu.dot_dimension_numbers<[1], [0], [0], [1], [0, 0, 1, 1], [], []>} : vector<1x256xf32>, vector<256x64xf32>, vector<1x64xf32> -> vector<1x64xf32>
    %c0_46 = arith.constant 0 : index
    %c0_47 = arith.constant 0 : index
    %79 = vector.load %arg17[%c0_46, %c0_47] : memref<1x64xf32, #tpu.memory_space<vmem>>, vector<1x64xf32>
    %80 = arith.addf %78, %79 : vector<1x64xf32>
    %81 = arith.negf %80 : vector<1x64xf32>
    %82 = math.exp %81 : vector<1x64xf32>
    %cst_48 = arith.constant 1.000000e+00 : f32
    %83 = vector.broadcast %cst_48 : f32 to vector<1x64xf32>
    %84 = arith.addf %83, %82 : vector<1x64xf32>
    %85 = arith.divf %83, %84 : vector<1x64xf32>
    %86 = arith.mulf %80, %85 : vector<1x64xf32>
    %c0_49 = arith.constant 0 : index
    %c0_50 = arith.constant 0 : index
    %87 = vector.load %arg24[%c0_49, %c0_50] : memref<64x64xf32, #tpu.memory_space<vmem>>, vector<64x64xf32>
    %cst_51 = arith.constant dense<0.000000e+00> : vector<1x64xf32>
    %88 = tpu.matmul %86, %87, %cst_51 {dimension_numbers = #tpu.dot_dimension_numbers<[1], [0], [0], [1], [0, 0, 1, 1], [], []>} : vector<1x64xf32>, vector<64x64xf32>, vector<1x64xf32> -> vector<1x64xf32>
    %c0_52 = arith.constant 0 : index
    %c0_53 = arith.constant 0 : index
    %89 = vector.load %arg25[%c0_52, %c0_53] : memref<64x64xf32, #tpu.memory_space<vmem>>, vector<64x64xf32>
    %cst_54 = arith.constant dense<0.000000e+00> : vector<1x64xf32>
    %90 = tpu.matmul %88, %89, %cst_54 {dimension_numbers = #tpu.dot_dimension_numbers<[1], [0], [0], [1], [0, 0, 1, 1], [], []>} : vector<1x64xf32>, vector<64x64xf32>, vector<1x64xf32> -> vector<1x64xf32>
    %c0_55 = arith.constant 0 : index
    %c0_56 = arith.constant 0 : index
    %c0_57 = arith.constant 0 : index
    %91 = vector.load %arg6[%c0_55, %c0_56, %c0_57] : memref<1x1x128xf32, #tpu.memory_space<vmem>>, vector<1x1x128xf32>
    %92 = vector.shape_cast %91 : vector<1x1x128xf32> to vector<1x128xf32>
    %c0_58 = arith.constant 0 : index
    %c0_59 = arith.constant 0 : index
    %93 = vector.load %arg18[%c0_58, %c0_59] : memref<128x64xf32, #tpu.memory_space<vmem>>, vector<128x64xf32>
    %cst_60 = arith.constant dense<0.000000e+00> : vector<1x64xf32>
    %94 = tpu.matmul %92, %93, %cst_60 {dimension_numbers = #tpu.dot_dimension_numbers<[1], [0], [0], [1], [0, 0, 1, 1], [], []>} : vector<1x128xf32>, vector<128x64xf32>, vector<1x64xf32> -> vector<1x64xf32>
    %c0_61 = arith.constant 0 : index
    %c0_62 = arith.constant 0 : index
    %95 = vector.load %arg19[%c0_61, %c0_62] : memref<1x64xf32, #tpu.memory_space<vmem>>, vector<1x64xf32>
    %96 = arith.addf %94, %95 : vector<1x64xf32>
    %97 = arith.negf %96 : vector<1x64xf32>
    %98 = math.exp %97 : vector<1x64xf32>
    %cst_63 = arith.constant 1.000000e+00 : f32
    %99 = vector.broadcast %cst_63 : f32 to vector<1x64xf32>
    %100 = arith.addf %99, %98 : vector<1x64xf32>
    %101 = arith.divf %99, %100 : vector<1x64xf32>
    %102 = arith.mulf %96, %101 : vector<1x64xf32>
    %c0_64 = arith.constant 0 : index
    %c0_65 = arith.constant 0 : index
    %103 = vector.load %arg20[%c0_64, %c0_65] : memref<64x64xf32, #tpu.memory_space<vmem>>, vector<64x64xf32>
    %cst_66 = arith.constant dense<0.000000e+00> : vector<1x64xf32>
    %104 = tpu.matmul %102, %103, %cst_66 {dimension_numbers = #tpu.dot_dimension_numbers<[1], [0], [0], [1], [0, 0, 1, 1], [], []>} : vector<1x64xf32>, vector<64x64xf32>, vector<1x64xf32> -> vector<1x64xf32>
    %c0_67 = arith.constant 0 : index
    %c0_68 = arith.constant 0 : index
    %105 = vector.load %arg21[%c0_67, %c0_68] : memref<1x64xf32, #tpu.memory_space<vmem>>, vector<1x64xf32>
    %106 = arith.addf %104, %105 : vector<1x64xf32>
    %c0_69 = arith.constant 0 : index
    %c0_70 = arith.constant 0 : index
    %107 = vector.load %arg22[%c0_69, %c0_70] : memref<4x576xf32, #tpu.memory_space<vmem>>, vector<4x576xf32>
    %c0_71 = arith.constant 0 : index
    %c0_72 = arith.constant 0 : index
    %108 = vector.load %arg23[%c0_71, %c0_72] : memref<1x64xf32, #tpu.memory_space<vmem>>, vector<1x64xf32>
    %cst_73 = arith.constant dense<0.000000e+00> : vector<64x576xf32>
    %109 = tpu.matmul %32, %107, %cst_73 {dimension_numbers = #tpu.dot_dimension_numbers<[1], [0], [0], [1], [0, 0, 1, 1], [], []>} : vector<64x4xf32>, vector<4x576xf32>, vector<64x576xf32> -> vector<64x576xf32>
    %c0_74 = arith.constant 0 : index
    %c0_75 = arith.constant 0 : index
    %c0_76 = arith.constant 0 : index
    %110 = vector.load %arg7[%c0_74, %c0_75, %c0_76] : memref<9x64x64xf32, #tpu.memory_space<vmem>>, vector<1x64x64xf32>
    %111 = vector.shape_cast %110 : vector<1x64x64xf32> to vector<64x64xf32>
    %112 = vector.extract_strided_slice %109 {offsets = [0, 0], sizes = [64, 64], strides = [1, 1]} : vector<64x576xf32> to vector<64x64xf32>
    %cst_77 = arith.constant dense<0.000000e+00> : vector<64x64xf32>
    %113 = tpu.matmul %111, %112, %cst_77 {dimension_numbers = #tpu.dot_dimension_numbers<[1], [0], [0], [1], [0, 0, 1, 1], [], []>} : vector<64x64xf32>, vector<64x64xf32>, vector<64x64xf32> -> vector<64x64xf32>
    %c1 = arith.constant 1 : index
    %c0_78 = arith.constant 0 : index
    %c0_79 = arith.constant 0 : index
    %114 = vector.load %arg7[%c1, %c0_78, %c0_79] : memref<9x64x64xf32, #tpu.memory_space<vmem>>, vector<1x64x64xf32>
    %115 = vector.shape_cast %114 : vector<1x64x64xf32> to vector<64x64xf32>
    %116 = vector.extract_strided_slice %109 {offsets = [0, 64], sizes = [64, 64], strides = [1, 1]} : vector<64x576xf32> to vector<64x64xf32>
    %cst_80 = arith.constant dense<0.000000e+00> : vector<64x64xf32>
    %117 = tpu.matmul %115, %116, %cst_80 {dimension_numbers = #tpu.dot_dimension_numbers<[1], [0], [0], [1], [0, 0, 1, 1], [], []>} : vector<64x64xf32>, vector<64x64xf32>, vector<64x64xf32> -> vector<64x64xf32>
    %118 = arith.addf %113, %117 : vector<64x64xf32>
    %c2 = arith.constant 2 : index
    %c0_81 = arith.constant 0 : index
    %c0_82 = arith.constant 0 : index
    %119 = vector.load %arg7[%c2, %c0_81, %c0_82] : memref<9x64x64xf32, #tpu.memory_space<vmem>>, vector<1x64x64xf32>
    %120 = vector.shape_cast %119 : vector<1x64x64xf32> to vector<64x64xf32>
    %121 = vector.extract_strided_slice %109 {offsets = [0, 128], sizes = [64, 64], strides = [1, 1]} : vector<64x576xf32> to vector<64x64xf32>
    %cst_83 = arith.constant dense<0.000000e+00> : vector<64x64xf32>
    %122 = tpu.matmul %120, %121, %cst_83 {dimension_numbers = #tpu.dot_dimension_numbers<[1], [0], [0], [1], [0, 0, 1, 1], [], []>} : vector<64x64xf32>, vector<64x64xf32>, vector<64x64xf32> -> vector<64x64xf32>
    %123 = arith.addf %118, %122 : vector<64x64xf32>
    %c3 = arith.constant 3 : index
    %c0_84 = arith.constant 0 : index
    %c0_85 = arith.constant 0 : index
    %124 = vector.load %arg7[%c3, %c0_84, %c0_85] : memref<9x64x64xf32, #tpu.memory_space<vmem>>, vector<1x64x64xf32>
    %125 = vector.shape_cast %124 : vector<1x64x64xf32> to vector<64x64xf32>
    %126 = vector.extract_strided_slice %109 {offsets = [0, 192], sizes = [64, 64], strides = [1, 1]} : vector<64x576xf32> to vector<64x64xf32>
    %cst_86 = arith.constant dense<0.000000e+00> : vector<64x64xf32>
    %127 = tpu.matmul %125, %126, %cst_86 {dimension_numbers = #tpu.dot_dimension_numbers<[1], [0], [0], [1], [0, 0, 1, 1], [], []>} : vector<64x64xf32>, vector<64x64xf32>, vector<64x64xf32> -> vector<64x64xf32>
    %128 = arith.addf %123, %127 : vector<64x64xf32>
    %c4 = arith.constant 4 : index
    %c0_87 = arith.constant 0 : index
    %c0_88 = arith.constant 0 : index
    %129 = vector.load %arg7[%c4, %c0_87, %c0_88] : memref<9x64x64xf32, #tpu.memory_space<vmem>>, vector<1x64x64xf32>
    %130 = vector.shape_cast %129 : vector<1x64x64xf32> to vector<64x64xf32>
    %131 = vector.extract_strided_slice %109 {offsets = [0, 256], sizes = [64, 64], strides = [1, 1]} : vector<64x576xf32> to vector<64x64xf32>
    %cst_89 = arith.constant dense<0.000000e+00> : vector<64x64xf32>
    %132 = tpu.matmul %130, %131, %cst_89 {dimension_numbers = #tpu.dot_dimension_numbers<[1], [0], [0], [1], [0, 0, 1, 1], [], []>} : vector<64x64xf32>, vector<64x64xf32>, vector<64x64xf32> -> vector<64x64xf32>
    %133 = arith.addf %128, %132 : vector<64x64xf32>
    %c5 = arith.constant 5 : index
    %c0_90 = arith.constant 0 : index
    %c0_91 = arith.constant 0 : index
    %134 = vector.load %arg7[%c5, %c0_90, %c0_91] : memref<9x64x64xf32, #tpu.memory_space<vmem>>, vector<1x64x64xf32>
    %135 = vector.shape_cast %134 : vector<1x64x64xf32> to vector<64x64xf32>
    %136 = vector.extract_strided_slice %109 {offsets = [0, 320], sizes = [64, 64], strides = [1, 1]} : vector<64x576xf32> to vector<64x64xf32>
    %cst_92 = arith.constant dense<0.000000e+00> : vector<64x64xf32>
    %137 = tpu.matmul %135, %136, %cst_92 {dimension_numbers = #tpu.dot_dimension_numbers<[1], [0], [0], [1], [0, 0, 1, 1], [], []>} : vector<64x64xf32>, vector<64x64xf32>, vector<64x64xf32> -> vector<64x64xf32>
    %138 = arith.addf %133, %137 : vector<64x64xf32>
    %c6 = arith.constant 6 : index
    %c0_93 = arith.constant 0 : index
    %c0_94 = arith.constant 0 : index
    %139 = vector.load %arg7[%c6, %c0_93, %c0_94] : memref<9x64x64xf32, #tpu.memory_space<vmem>>, vector<1x64x64xf32>
    %140 = vector.shape_cast %139 : vector<1x64x64xf32> to vector<64x64xf32>
    %141 = vector.extract_strided_slice %109 {offsets = [0, 384], sizes = [64, 64], strides = [1, 1]} : vector<64x576xf32> to vector<64x64xf32>
    %cst_95 = arith.constant dense<0.000000e+00> : vector<64x64xf32>
    %142 = tpu.matmul %140, %141, %cst_95 {dimension_numbers = #tpu.dot_dimension_numbers<[1], [0], [0], [1], [0, 0, 1, 1], [], []>} : vector<64x64xf32>, vector<64x64xf32>, vector<64x64xf32> -> vector<64x64xf32>
    %143 = arith.addf %138, %142 : vector<64x64xf32>
    %c7 = arith.constant 7 : index
    %c0_96 = arith.constant 0 : index
    %c0_97 = arith.constant 0 : index
    %144 = vector.load %arg7[%c7, %c0_96, %c0_97] : memref<9x64x64xf32, #tpu.memory_space<vmem>>, vector<1x64x64xf32>
    %145 = vector.shape_cast %144 : vector<1x64x64xf32> to vector<64x64xf32>
    %146 = vector.extract_strided_slice %109 {offsets = [0, 448], sizes = [64, 64], strides = [1, 1]} : vector<64x576xf32> to vector<64x64xf32>
    %cst_98 = arith.constant dense<0.000000e+00> : vector<64x64xf32>
    %147 = tpu.matmul %145, %146, %cst_98 {dimension_numbers = #tpu.dot_dimension_numbers<[1], [0], [0], [1], [0, 0, 1, 1], [], []>} : vector<64x64xf32>, vector<64x64xf32>, vector<64x64xf32> -> vector<64x64xf32>
    %148 = arith.addf %143, %147 : vector<64x64xf32>
    %c8 = arith.constant 8 : index
    %c0_99 = arith.constant 0 : index
    %c0_100 = arith.constant 0 : index
    %149 = vector.load %arg7[%c8, %c0_99, %c0_100] : memref<9x64x64xf32, #tpu.memory_space<vmem>>, vector<1x64x64xf32>
    %150 = vector.shape_cast %149 : vector<1x64x64xf32> to vector<64x64xf32>
    %151 = vector.extract_strided_slice %109 {offsets = [0, 512], sizes = [64, 64], strides = [1, 1]} : vector<64x576xf32> to vector<64x64xf32>
    %cst_101 = arith.constant dense<0.000000e+00> : vector<64x64xf32>
    %152 = tpu.matmul %150, %151, %cst_101 {dimension_numbers = #tpu.dot_dimension_numbers<[1], [0], [0], [1], [0, 0, 1, 1], [], []>} : vector<64x64xf32>, vector<64x64xf32>, vector<64x64xf32> -> vector<64x64xf32>
    %153 = arith.addf %148, %152 : vector<64x64xf32>
    %154 = vector.broadcast %108 : vector<1x64xf32> to vector<64x64xf32>
    %155 = arith.addf %153, %154 : vector<64x64xf32>
    %156 = vector.broadcast %106 : vector<1x64xf32> to vector<64x64xf32>
    %157 = arith.addf %155, %156 : vector<64x64xf32>
    %158 = arith.negf %157 : vector<64x64xf32>
    %159 = math.exp %158 : vector<64x64xf32>
    %cst_102 = arith.constant 1.000000e+00 : f32
    %160 = vector.broadcast %cst_102 : f32 to vector<64x64xf32>
    %161 = arith.addf %160, %159 : vector<64x64xf32>
    %162 = arith.divf %160, %161 : vector<64x64xf32>
    %163 = arith.mulf %157, %162 : vector<64x64xf32>
    %164 = vector.broadcast %90 : vector<1x64xf32> to vector<64x64xf32>
    %165 = arith.addf %163, %164 : vector<64x64xf32>
    %c0_103 = arith.constant 0 : index
    %c0_104 = arith.constant 0 : index
    %166 = vector.load %arg26[%c0_103, %c0_104] : memref<64x36xf32, #tpu.memory_space<vmem>>, vector<64x36xf32>
    %c0_105 = arith.constant 0 : index
    %c0_106 = arith.constant 0 : index
    %167 = vector.load %arg27[%c0_105, %c0_106] : memref<1x4xf32, #tpu.memory_space<vmem>>, vector<1x4xf32>
    %cst_107 = arith.constant dense<0.000000e+00> : vector<64x36xf32>
    %168 = tpu.matmul %165, %166, %cst_107 {dimension_numbers = #tpu.dot_dimension_numbers<[1], [0], [0], [1], [0, 0, 1, 1], [], []>} : vector<64x64xf32>, vector<64x36xf32>, vector<64x36xf32> -> vector<64x36xf32>
    %c0_108 = arith.constant 0 : index
    %c0_109 = arith.constant 0 : index
    %c0_110 = arith.constant 0 : index
    %169 = vector.load %arg7[%c0_108, %c0_109, %c0_110] : memref<9x64x64xf32, #tpu.memory_space<vmem>>, vector<1x64x64xf32>
    %170 = vector.shape_cast %169 : vector<1x64x64xf32> to vector<64x64xf32>
    %171 = vector.extract_strided_slice %168 {offsets = [0, 0], sizes = [64, 4], strides = [1, 1]} : vector<64x36xf32> to vector<64x4xf32>
    %cst_111 = arith.constant dense<0.000000e+00> : vector<64x4xf32>
    %172 = tpu.matmul %170, %171, %cst_111 {dimension_numbers = #tpu.dot_dimension_numbers<[1], [0], [0], [1], [0, 0, 1, 1], [], []>} : vector<64x64xf32>, vector<64x4xf32>, vector<64x4xf32> -> vector<64x4xf32>
    %c1_112 = arith.constant 1 : index
    %c0_113 = arith.constant 0 : index
    %c0_114 = arith.constant 0 : index
    %173 = vector.load %arg7[%c1_112, %c0_113, %c0_114] : memref<9x64x64xf32, #tpu.memory_space<vmem>>, vector<1x64x64xf32>
    %174 = vector.shape_cast %173 : vector<1x64x64xf32> to vector<64x64xf32>
    %175 = vector.extract_strided_slice %168 {offsets = [0, 4], sizes = [64, 4], strides = [1, 1]} : vector<64x36xf32> to vector<64x4xf32>
    %cst_115 = arith.constant dense<0.000000e+00> : vector<64x4xf32>
    %176 = tpu.matmul %174, %175, %cst_115 {dimension_numbers = #tpu.dot_dimension_numbers<[1], [0], [0], [1], [0, 0, 1, 1], [], []>} : vector<64x64xf32>, vector<64x4xf32>, vector<64x4xf32> -> vector<64x4xf32>
    %177 = arith.addf %172, %176 : vector<64x4xf32>
    %c2_116 = arith.constant 2 : index
    %c0_117 = arith.constant 0 : index
    %c0_118 = arith.constant 0 : index
    %178 = vector.load %arg7[%c2_116, %c0_117, %c0_118] : memref<9x64x64xf32, #tpu.memory_space<vmem>>, vector<1x64x64xf32>
    %179 = vector.shape_cast %178 : vector<1x64x64xf32> to vector<64x64xf32>
    %180 = vector.extract_strided_slice %168 {offsets = [0, 8], sizes = [64, 4], strides = [1, 1]} : vector<64x36xf32> to vector<64x4xf32>
    %cst_119 = arith.constant dense<0.000000e+00> : vector<64x4xf32>
    %181 = tpu.matmul %179, %180, %cst_119 {dimension_numbers = #tpu.dot_dimension_numbers<[1], [0], [0], [1], [0, 0, 1, 1], [], []>} : vector<64x64xf32>, vector<64x4xf32>, vector<64x4xf32> -> vector<64x4xf32>
    %182 = arith.addf %177, %181 : vector<64x4xf32>
    %c3_120 = arith.constant 3 : index
    %c0_121 = arith.constant 0 : index
    %c0_122 = arith.constant 0 : index
    %183 = vector.load %arg7[%c3_120, %c0_121, %c0_122] : memref<9x64x64xf32, #tpu.memory_space<vmem>>, vector<1x64x64xf32>
    %184 = vector.shape_cast %183 : vector<1x64x64xf32> to vector<64x64xf32>
    %185 = vector.extract_strided_slice %168 {offsets = [0, 12], sizes = [64, 4], strides = [1, 1]} : vector<64x36xf32> to vector<64x4xf32>
    %cst_123 = arith.constant dense<0.000000e+00> : vector<64x4xf32>
    %186 = tpu.matmul %184, %185, %cst_123 {dimension_numbers = #tpu.dot_dimension_numbers<[1], [0], [0], [1], [0, 0, 1, 1], [], []>} : vector<64x64xf32>, vector<64x4xf32>, vector<64x4xf32> -> vector<64x4xf32>
    %187 = arith.addf %182, %186 : vector<64x4xf32>
    %c4_124 = arith.constant 4 : index
    %c0_125 = arith.constant 0 : index
    %c0_126 = arith.constant 0 : index
    %188 = vector.load %arg7[%c4_124, %c0_125, %c0_126] : memref<9x64x64xf32, #tpu.memory_space<vmem>>, vector<1x64x64xf32>
    %189 = vector.shape_cast %188 : vector<1x64x64xf32> to vector<64x64xf32>
    %190 = vector.extract_strided_slice %168 {offsets = [0, 16], sizes = [64, 4], strides = [1, 1]} : vector<64x36xf32> to vector<64x4xf32>
    %cst_127 = arith.constant dense<0.000000e+00> : vector<64x4xf32>
    %191 = tpu.matmul %189, %190, %cst_127 {dimension_numbers = #tpu.dot_dimension_numbers<[1], [0], [0], [1], [0, 0, 1, 1], [], []>} : vector<64x64xf32>, vector<64x4xf32>, vector<64x4xf32> -> vector<64x4xf32>
    %192 = arith.addf %187, %191 : vector<64x4xf32>
    %c5_128 = arith.constant 5 : index
    %c0_129 = arith.constant 0 : index
    %c0_130 = arith.constant 0 : index
    %193 = vector.load %arg7[%c5_128, %c0_129, %c0_130] : memref<9x64x64xf32, #tpu.memory_space<vmem>>, vector<1x64x64xf32>
    %194 = vector.shape_cast %193 : vector<1x64x64xf32> to vector<64x64xf32>
    %195 = vector.extract_strided_slice %168 {offsets = [0, 20], sizes = [64, 4], strides = [1, 1]} : vector<64x36xf32> to vector<64x4xf32>
    %cst_131 = arith.constant dense<0.000000e+00> : vector<64x4xf32>
    %196 = tpu.matmul %194, %195, %cst_131 {dimension_numbers = #tpu.dot_dimension_numbers<[1], [0], [0], [1], [0, 0, 1, 1], [], []>} : vector<64x64xf32>, vector<64x4xf32>, vector<64x4xf32> -> vector<64x4xf32>
    %197 = arith.addf %192, %196 : vector<64x4xf32>
    %c6_132 = arith.constant 6 : index
    %c0_133 = arith.constant 0 : index
    %c0_134 = arith.constant 0 : index
    %198 = vector.load %arg7[%c6_132, %c0_133, %c0_134] : memref<9x64x64xf32, #tpu.memory_space<vmem>>, vector<1x64x64xf32>
    %199 = vector.shape_cast %198 : vector<1x64x64xf32> to vector<64x64xf32>
    %200 = vector.extract_strided_slice %168 {offsets = [0, 24], sizes = [64, 4], strides = [1, 1]} : vector<64x36xf32> to vector<64x4xf32>
    %cst_135 = arith.constant dense<0.000000e+00> : vector<64x4xf32>
    %201 = tpu.matmul %199, %200, %cst_135 {dimension_numbers = #tpu.dot_dimension_numbers<[1], [0], [0], [1], [0, 0, 1, 1], [], []>} : vector<64x64xf32>, vector<64x4xf32>, vector<64x4xf32> -> vector<64x4xf32>
    %202 = arith.addf %197, %201 : vector<64x4xf32>
    %c7_136 = arith.constant 7 : index
    %c0_137 = arith.constant 0 : index
    %c0_138 = arith.constant 0 : index
    %203 = vector.load %arg7[%c7_136, %c0_137, %c0_138] : memref<9x64x64xf32, #tpu.memory_space<vmem>>, vector<1x64x64xf32>
    %204 = vector.shape_cast %203 : vector<1x64x64xf32> to vector<64x64xf32>
    %205 = vector.extract_strided_slice %168 {offsets = [0, 28], sizes = [64, 4], strides = [1, 1]} : vector<64x36xf32> to vector<64x4xf32>
    %cst_139 = arith.constant dense<0.000000e+00> : vector<64x4xf32>
    %206 = tpu.matmul %204, %205, %cst_139 {dimension_numbers = #tpu.dot_dimension_numbers<[1], [0], [0], [1], [0, 0, 1, 1], [], []>} : vector<64x64xf32>, vector<64x4xf32>, vector<64x4xf32> -> vector<64x4xf32>
    %207 = arith.addf %202, %206 : vector<64x4xf32>
    %c8_140 = arith.constant 8 : index
    %c0_141 = arith.constant 0 : index
    %c0_142 = arith.constant 0 : index
    %208 = vector.load %arg7[%c8_140, %c0_141, %c0_142] : memref<9x64x64xf32, #tpu.memory_space<vmem>>, vector<1x64x64xf32>
    %209 = vector.shape_cast %208 : vector<1x64x64xf32> to vector<64x64xf32>
    %210 = vector.extract_strided_slice %168 {offsets = [0, 32], sizes = [64, 4], strides = [1, 1]} : vector<64x36xf32> to vector<64x4xf32>
    %cst_143 = arith.constant dense<0.000000e+00> : vector<64x4xf32>
    %211 = tpu.matmul %209, %210, %cst_143 {dimension_numbers = #tpu.dot_dimension_numbers<[1], [0], [0], [1], [0, 0, 1, 1], [], []>} : vector<64x64xf32>, vector<64x4xf32>, vector<64x4xf32> -> vector<64x4xf32>
    %212 = arith.addf %207, %211 : vector<64x4xf32>
    %213 = vector.broadcast %167 : vector<1x4xf32> to vector<64x4xf32>
    %214 = arith.addf %212, %213 : vector<64x4xf32>
    %215 = arith.subf %214, %25 : vector<64x4xf32>
    %216 = arith.mulf %215, %215 : vector<64x4xf32>
    %217 = vector.shape_cast %216 : vector<64x4xf32> to vector<1x64x4xf32>
    %cst_144 = arith.constant dense<0.000000e+00> : vector<1xf32>
    %218 = vector.multi_reduction <add>, %217, %cst_144 [1, 2] : vector<1x64x4xf32> to vector<1xf32>
    %219 = vector.shape_cast %218 : vector<1xf32> to vector<1x1x1xf32>
    %220 = vector.extract %219[0, 0, 0] : f32 from vector<1x1x1xf32>
    %221 = vector.broadcast %220 : f32 to vector<1x1xf32>
    %c0_145 = arith.constant 0 : index
    %c0_146 = arith.constant 0 : index
    %c0_147 = arith.constant 0 : index
    %222 = vector.load %arg28[%c0_145, %c0_146, %c0_147] : memref<1x1x1xf32, #tpu.memory_space<vmem>>, vector<1x1x1xf32>
    %223 = vector.shape_cast %222 : vector<1x1x1xf32> to vector<1x1xf32>
    %224 = vector.shape_cast %221 : vector<1x1xf32> to vector<1x1x1xf32>
    tpu.vector_store %arg28[%c0_145, %c0_146, %c0_147], %224 {strides = array<i32>} : memref<1x1x1xf32, #tpu.memory_space<vmem>>, vector<1x1x1xf32>,
    %225 = arith.mulf %21, %21 : vector<64x4xf32>
    %226 = vector.shape_cast %225 : vector<64x4xf32> to vector<1x64x4xf32>
    %cst_148 = arith.constant dense<0.000000e+00> : vector<1xf32>
    %227 = vector.multi_reduction <add>, %226, %cst_148 [1, 2] : vector<1x64x4xf32> to vector<1xf32>
    %228 = vector.shape_cast %227 : vector<1xf32> to vector<1x1x1xf32>
    %229 = vector.extract %228[0, 0, 0] : f32 from vector<1x1x1xf32>
    %230 = vector.broadcast %229 : f32 to vector<1x1xf32>
    %c0_149 = arith.constant 0 : index
    %c0_150 = arith.constant 0 : index
    %c0_151 = arith.constant 0 : index
    %231 = vector.load %arg29[%c0_149, %c0_150, %c0_151] : memref<1x1x1xf32, #tpu.memory_space<vmem>>, vector<1x1x1xf32>
    %232 = vector.shape_cast %231 : vector<1x1x1xf32> to vector<1x1xf32>
    %233 = vector.shape_cast %230 : vector<1x1xf32> to vector<1x1x1xf32>
    tpu.vector_store %arg29[%c0_149, %c0_150, %c0_151], %233 {strides = array<i32>} : memref<1x1x1xf32, #tpu.memory_space<vmem>>, vector<1x1x1xf32>,
    return
  }
  func.func @transform_0(%arg0: i32) -> (i32, i32, i32) {
    %c0_i32 = arith.constant 0 : i32
    %c0_i32_0 = arith.constant 0 : i32
    %c0_i32_1 = arith.constant 0 : i32
    return %arg0, %c0_i32, %c0_i32_0 : i32, i32, i32
  }
  func.func @transform_1(%arg0: i32) -> (i32, i32, i32) {
    %c0_i32 = arith.constant 0 : i32
    %c0_i32_0 = arith.constant 0 : i32
    %c0_i32_1 = arith.constant 0 : i32
    return %arg0, %c0_i32, %c0_i32_0 : i32, i32, i32
  }
  func.func @transform_2(%arg0: i32) -> (i32, i32, i32) {
    %c0_i32 = arith.constant 0 : i32
    %c0_i32_0 = arith.constant 0 : i32
    %c0_i32_1 = arith.constant 0 : i32
    return %arg0, %c0_i32, %c0_i32_0 : i32, i32, i32
  }
  func.func @transform_3(%arg0: i32) -> (i32, i32, i32) {
    %c0_i32 = arith.constant 0 : i32
    %c0_i32_0 = arith.constant 0 : i32
    %c0_i32_1 = arith.constant 0 : i32
    return %arg0, %c0_i32, %c0_i32_0 : i32, i32, i32
  }
  func.func @transform_4(%arg0: i32) -> (i32, i32, i32) {
    %c0_i32 = arith.constant 0 : i32
    %c0_i32_0 = arith.constant 0 : i32
    %c0_i32_1 = arith.constant 0 : i32
    return %arg0, %c0_i32, %c0_i32_0 : i32, i32, i32
  }
  func.func @transform_5(%arg0: i32) -> (i32, i32, i32) {
    %c0_i32 = arith.constant 0 : i32
    %c0_i32_0 = arith.constant 0 : i32
    %c0_i32_1 = arith.constant 0 : i32
    return %arg0, %c0_i32, %c0_i32_0 : i32, i32, i32
  }
  func.func @transform_6(%arg0: i32) -> (i32, i32, i32) {
    %c0_i32 = arith.constant 0 : i32
    %c0_i32_0 = arith.constant 0 : i32
    %c0_i32_1 = arith.constant 0 : i32
    %c0_i32_2 = arith.constant 0 : i32
    return %c0_i32, %c0_i32_0, %c0_i32_1 : i32, i32, i32
  }
  func.func @transform_7(%arg0: i32) -> (i32, i32) {
    %c0_i32 = arith.constant 0 : i32
    %c0_i32_0 = arith.constant 0 : i32
    %c0_i32_1 = arith.constant 0 : i32
    return %c0_i32, %c0_i32_0 : i32, i32
  }
  func.func @transform_8(%arg0: i32) -> (i32, i32) {
    %c0_i32 = arith.constant 0 : i32
    %c0_i32_0 = arith.constant 0 : i32
    %c0_i32_1 = arith.constant 0 : i32
    return %c0_i32, %c0_i32_0 : i32, i32
  }
  func.func @transform_9(%arg0: i32) -> (i32, i32) {
    %c0_i32 = arith.constant 0 : i32
    %c0_i32_0 = arith.constant 0 : i32
    %c0_i32_1 = arith.constant 0 : i32
    return %c0_i32, %c0_i32_0 : i32, i32
  }
  func.func @transform_10(%arg0: i32) -> (i32, i32) {
    %c0_i32 = arith.constant 0 : i32
    %c0_i32_0 = arith.constant 0 : i32
    %c0_i32_1 = arith.constant 0 : i32
    return %c0_i32, %c0_i32_0 : i32, i32
  }
  func.func @transform_11(%arg0: i32) -> (i32, i32) {
    %c0_i32 = arith.constant 0 : i32
    %c0_i32_0 = arith.constant 0 : i32
    %c0_i32_1 = arith.constant 0 : i32
    return %c0_i32, %c0_i32_0 : i32, i32
  }
  func.func @transform_12(%arg0: i32) -> (i32, i32) {
    %c0_i32 = arith.constant 0 : i32
    %c0_i32_0 = arith.constant 0 : i32
    %c0_i32_1 = arith.constant 0 : i32
    return %c0_i32, %c0_i32_0 : i32, i32
  }
  func.func @transform_13(%arg0: i32) -> (i32, i32) {
    %c0_i32 = arith.constant 0 : i32
    %c0_i32_0 = arith.constant 0 : i32
    %c0_i32_1 = arith.constant 0 : i32
    return %c0_i32, %c0_i32_0 : i32, i32
  }
  func.func @transform_14(%arg0: i32) -> (i32, i32) {
    %c0_i32 = arith.constant 0 : i32
    %c0_i32_0 = arith.constant 0 : i32
    %c0_i32_1 = arith.constant 0 : i32
    return %c0_i32, %c0_i32_0 : i32, i32
  }
  func.func @transform_15(%arg0: i32) -> (i32, i32) {
    %c0_i32 = arith.constant 0 : i32
    %c0_i32_0 = arith.constant 0 : i32
    %c0_i32_1 = arith.constant 0 : i32
    return %c0_i32, %c0_i32_0 : i32, i32
  }
  func.func @transform_16(%arg0: i32) -> (i32, i32) {
    %c0_i32 = arith.constant 0 : i32
    %c0_i32_0 = arith.constant 0 : i32
    %c0_i32_1 = arith.constant 0 : i32
    return %c0_i32, %c0_i32_0 : i32, i32
  }
  func.func @transform_17(%arg0: i32) -> (i32, i32) {
    %c0_i32 = arith.constant 0 : i32
    %c0_i32_0 = arith.constant 0 : i32
    %c0_i32_1 = arith.constant 0 : i32
    return %c0_i32, %c0_i32_0 : i32, i32
  }
  func.func @transform_18(%arg0: i32) -> (i32, i32) {
    %c0_i32 = arith.constant 0 : i32
    %c0_i32_0 = arith.constant 0 : i32
    %c0_i32_1 = arith.constant 0 : i32
    return %c0_i32, %c0_i32_0 : i32, i32
  }
  func.func @transform_19(%arg0: i32) -> (i32, i32) {
    %c0_i32 = arith.constant 0 : i32
    %c0_i32_0 = arith.constant 0 : i32
    %c0_i32_1 = arith.constant 0 : i32
    return %c0_i32, %c0_i32_0 : i32, i32
  }
  func.func @transform_20(%arg0: i32) -> (i32, i32) {
    %c0_i32 = arith.constant 0 : i32
    %c0_i32_0 = arith.constant 0 : i32
    %c0_i32_1 = arith.constant 0 : i32
    return %c0_i32, %c0_i32_0 : i32, i32
  }
  func.func @transform_21(%arg0: i32) -> (i32, i32) {
    %c0_i32 = arith.constant 0 : i32
    %c0_i32_0 = arith.constant 0 : i32
    %c0_i32_1 = arith.constant 0 : i32
    return %c0_i32, %c0_i32_0 : i32, i32
  }
  func.func @transform_22(%arg0: i32) -> (i32, i32) {
    %c0_i32 = arith.constant 0 : i32
    %c0_i32_0 = arith.constant 0 : i32
    %c0_i32_1 = arith.constant 0 : i32
    return %c0_i32, %c0_i32_0 : i32, i32
  }
  func.func @transform_23(%arg0: i32) -> (i32, i32) {
    %c0_i32 = arith.constant 0 : i32
    %c0_i32_0 = arith.constant 0 : i32
    %c0_i32_1 = arith.constant 0 : i32
    return %c0_i32, %c0_i32_0 : i32, i32
  }
  func.func @transform_24(%arg0: i32) -> (i32, i32) {
    %c0_i32 = arith.constant 0 : i32
    %c0_i32_0 = arith.constant 0 : i32
    %c0_i32_1 = arith.constant 0 : i32
    return %c0_i32, %c0_i32_0 : i32, i32
  }
  func.func @transform_25(%arg0: i32) -> (i32, i32) {
    %c0_i32 = arith.constant 0 : i32
    %c0_i32_0 = arith.constant 0 : i32
    %c0_i32_1 = arith.constant 0 : i32
    return %c0_i32, %c0_i32_0 : i32, i32
  }
  func.func @transform_26(%arg0: i32) -> (i32, i32) {
    %c0_i32 = arith.constant 0 : i32
    %c0_i32_0 = arith.constant 0 : i32
    %c0_i32_1 = arith.constant 0 : i32
    return %c0_i32, %c0_i32_0 : i32, i32
  }
  func.func @transform_27(%arg0: i32) -> (i32, i32, i32) {
    %c0_i32 = arith.constant 0 : i32
    %c0_i32_0 = arith.constant 0 : i32
    %c0_i32_1 = arith.constant 0 : i32
    return %arg0, %c0_i32, %c0_i32_0 : i32, i32, i32
  }
  func.func @transform_28(%arg0: i32) -> (i32, i32, i32) {
    %c0_i32 = arith.constant 0 : i32
    %c0_i32_0 = arith.constant 0 : i32
    %c0_i32_1 = arith.constant 0 : i32
    return %arg0, %c0_i32, %c0_i32_0 : i32, i32, i32
  }
}

</mosaic_0001>

<llo_original>
// kernel: conditional_ldm_forward.3
$region0: #{conditional_ldm_forward.3}
  #allocation0 [shape = 'u32[]', space=smem, size = 0x4, offset = 0x4, fixed_abs, tag = 'smem constant byte address 0x4 - core index']
  #allocation1 [shape = 'u32[144,128]{1,0:T(1,128)}', space=vmem, size = 0x12000, scoped, tag = 'internal scratch']
  %s0 = inlined_call_operand.vmem [shape: f32[2,1,24], index: 0, kind: input, shape index: {}]
  %s1 = inlined_call_operand.vmem [shape: f32[2,64,192], index: 1, kind: input, shape index: {}]
  %s2 = inlined_call_operand.vmem [shape: f32[2,64,4], index: 2, kind: input, shape index: {}]
  %s3 = inlined_call_operand.vmem [shape: f32[2,64,4], index: 3, kind: input, shape index: {}]
  %s4 = inlined_call_operand.vmem [shape: f32[2,1,2], index: 4, kind: input, shape index: {}]
  %s5 = inlined_call_operand.vmem [shape: f32[2,1,128], index: 5, kind: input, shape index: {}]
  %s6 = inlined_call_operand.vmem [shape: f32[9,64,64], index: 6, kind: input, shape index: {}]
  %s7 = inlined_call_operand.vmem [shape: f32[192,8], index: 7, kind: input, shape index: {}]
  %s8 = inlined_call_operand.vmem [shape: f32[1,8], index: 8, kind: input, shape index: {}]
  %s9 = inlined_call_operand.vmem [shape: f32[24,512], index: 9, kind: input, shape index: {}]
  %s10 = inlined_call_operand.vmem [shape: f32[1,512], index: 10, kind: input, shape index: {}]
  %s11 = inlined_call_operand.vmem [shape: f32[1,512], index: 11, kind: input, shape index: {}]
  %s12 = inlined_call_operand.vmem [shape: f32[1,512], index: 12, kind: input, shape index: {}]
  %s13 = inlined_call_operand.vmem [shape: f32[512,256], index: 13, kind: input, shape index: {}]
  %s14 = inlined_call_operand.vmem [shape: f32[1,256], index: 14, kind: input, shape index: {}]
  %s15 = inlined_call_operand.vmem [shape: f32[256,64], index: 15, kind: input, shape index: {}]
  %s16 = inlined_call_operand.vmem [shape: f32[1,64], index: 16, kind: input, shape index: {}]
  %s17 = inlined_call_operand.vmem [shape: f32[128,64], index: 17, kind: input, shape index: {}]
  %s18 = inlined_call_operand.vmem [shape: f32[1,64], index: 18, kind: input, shape index: {}]
  %s19 = inlined_call_operand.vmem [shape: f32[64,64], index: 19, kind: input, shape index: {}]
  %s20 = inlined_call_operand.vmem [shape: f32[1,64], index: 20, kind: input, shape index: {}]
  %s21 = inlined_call_operand.vmem [shape: f32[4,576], index: 21, kind: input, shape index: {}]
  %s22 = inlined_call_operand.vmem [shape: f32[1,64], index: 22, kind: input, shape index: {}]
  %s23 = inlined_call_operand.vmem [shape: f32[64,64], index: 23, kind: input, shape index: {}]
  %s24 = inlined_call_operand.vmem [shape: f32[64,64], index: 24, kind: input, shape index: {}]
  %s25 = inlined_call_operand.vmem [shape: f32[64,36], index: 25, kind: input, shape index: {}]
  %s26 = inlined_call_operand.vmem [shape: f32[1,4], index: 26, kind: input, shape index: {}]
  %s27 = inlined_call_operand.vmem [shape: f32[2,1,1], index: 27, kind: output, shape index: {0}]
  %s28 = inlined_call_operand.vmem [shape: f32[2,1,1], index: 28, kind: output, shape index: {1}]
  %29 = xla_tuple %s27, %s28
  %s30 = sld [smem:[#allocation0]]
  $region149: #{conditional_ldm_forward.3} parent=0
    _
  %s32 = ssub.s32 1, %s30
  %s33 = scalar_select 0, %s32, %s30
  loop: start=0, step=1, limit=4
  $region2: #{conditional_ldm_forward.3} parent=0 // loop_pre_header
    _
  $region3: #{conditional_ldm_forward.3} parent=0 // loop_header
    %s35 = sphi 0, %s39
    %p36 = scmp.ge.s32.totalorder %s35, 4
    %s45 = sphi 0, %s47
    %s48 = sphi 0, %s45
    %s49 = sphi 0, %s48
    %s65 = sphi 0, %s49
    %s71 = sphi 0, %s73
    %s74 = sphi 0, %s71
    %s75 = sphi 0, %s74
    %s91 = sphi 0, %s75
    %s97 = sphi 0, %s99
    %s100 = sphi 0, %s97
    %s101 = sphi 0, %s100
    %s117 = sphi 0, %s101
    %s123 = sphi 0, %s125
    %s126 = sphi 0, %s123
    %s127 = sphi 0, %s126
    %s143 = sphi 0, %s127
    %s149 = sphi 0, %s151
    %s152 = sphi 0, %s149
    %s153 = sphi 0, %s152
    %s169 = sphi 0, %s153
    %s175 = sphi 0, %s177
    %s178 = sphi 0, %s175
    %s179 = sphi 0, %s178
    %s195 = sphi 0, %s179
    %s199 = sphi 0, %s199
    %s201 = sphi 0, %s199
    %s202 = sphi 0, %s201
    %s216 = sphi 0, %s202
    %s220 = sphi 0, %s220
    %s222 = sphi 0, %s220
    %s223 = sphi 0, %s222
    %s237 = sphi 0, %s223
    %s241 = sphi 0, %s241
    %s243 = sphi 0, %s241
    %s244 = sphi 0, %s243
    %s258 = sphi 0, %s244
    %s262 = sphi 0, %s262
    %s264 = sphi 0, %s262
    %s265 = sphi 0, %s264
    %s279 = sphi 0, %s265
    %s283 = sphi 0, %s283
    %s285 = sphi 0, %s283
    %s286 = sphi 0, %s285
    %s300 = sphi 0, %s286
    %s304 = sphi 0, %s304
    %s306 = sphi 0, %s304
    %s307 = sphi 0, %s306
    %s321 = sphi 0, %s307
    %s325 = sphi 0, %s325
    %s327 = sphi 0, %s325
    %s328 = sphi 0, %s327
    %s342 = sphi 0, %s328
    %s346 = sphi 0, %s346
    %s348 = sphi 0, %s346
    %s349 = sphi 0, %s348
    %s363 = sphi 0, %s349
    %s367 = sphi 0, %s367
    %s369 = sphi 0, %s367
    %s370 = sphi 0, %s369
    %s384 = sphi 0, %s370
    %s388 = sphi 0, %s388
    %s390 = sphi 0, %s388
    %s391 = sphi 0, %s390
    %s405 = sphi 0, %s391
    %s409 = sphi 0, %s409
    %s411 = sphi 0, %s409
    %s412 = sphi 0, %s411
    %s426 = sphi 0, %s412
    %s430 = sphi 0, %s430
    %s432 = sphi 0, %s430
    %s433 = sphi 0, %s432
    %s447 = sphi 0, %s433
    %s451 = sphi 0, %s451
    %s453 = sphi 0, %s451
    %s454 = sphi 0, %s453
    %s468 = sphi 0, %s454
    %s472 = sphi 0, %s472
    %s474 = sphi 0, %s472
    %s475 = sphi 0, %s474
    %s489 = sphi 0, %s475
    %s493 = sphi 0, %s493
    %s495 = sphi 0, %s493
    %s496 = sphi 0, %s495
    %s510 = sphi 0, %s496
    %s514 = sphi 0, %s514
    %s516 = sphi 0, %s514
    %s517 = sphi 0, %s516
    %s531 = sphi 0, %s517
    %s535 = sphi 0, %s535
    %s537 = sphi 0, %s535
    %s538 = sphi 0, %s537
    %s552 = sphi 0, %s538
    %s556 = sphi 0, %s556
    %s558 = sphi 0, %s556
    %s559 = sphi 0, %s558
    %s573 = sphi 0, %s559
    %s577 = sphi 0, %s577
    %s579 = sphi 0, %s577
    %s580 = sphi 0, %s579
    %s594 = sphi 0, %s580
    %s598 = sphi 0, %s598
    %s600 = sphi 0, %s598
    %s601 = sphi 0, %s600
    %s615 = sphi 0, %s601
    %s619 = sphi 0, %s619
    %s621 = sphi 0, %s619
    %s622 = sphi 0, %s621
    %s636 = sphi 0, %s622
    %s642 = sphi 0, %s644
    %s645 = sphi 0, %s642
    %s646 = sphi 0, %s645
    %s662 = sphi 0, %s646
    %s668 = sphi 0, %s670
    %s671 = sphi 0, %s668
    %s672 = sphi 0, %s671
    %s688 = sphi 0, %s672
  $region4: #{conditional_ldm_forward.3} parent=0 // loop_header_branch
    %38 = sbr.rel (%p36) target = $region8
  $region5: #{conditional_ldm_forward.3} parent=0 // loop_body
    %s40 = ssub.s32 %s35, 1
    %s41 = ssub.s32 %s35, 2
    %s42 = sadd.s32 %s35, 1
    %s43 = ssub.s32 %s35, %s42
    %p44 = scmp.eq.s32.totalorder %s43, 0
    %s46 = sadd.s32 %s45, 1
    %s47 = scalar_select %p44, %s45, %s46
    %p50 = pneg %p44
    %p51 = scmp.eq.s32.totalorder %s35, 1
    %p52 = por %p50, %p51
    %p53 = scmp.ne.s32.totalorder %s45, %s48
    %p54 = scmp.eq.s32.totalorder %s35, 0
    %p55 = por %p53, %p54
    %p56 = scmp.ne.s32.totalorder %s45, %s48
    %p57 = scmp.eq.s32.totalorder %s40, 1
    %p58 = por %p56, %p57
    %p59 = scmp.ne.s32.totalorder %s48, %s49
    %p60 = scmp.eq.s32.totalorder %s40, 0
    %p61 = por %p59, %p60
    %p62 = scmp.ne.s32.totalorder %s48, %s49
    %p63 = scmp.eq.s32.totalorder %s41, 1
    %p64 = por %p62, %p63
    %p66 = scmp.ne.s32.totalorder %s49, %s65
    %p67 = scmp.eq.s32.totalorder %s41, 0
    %p68 = por %p66, %p67
    %s69 = ssub.s32 %s35, %s42
    %p70 = scmp.eq.s32.totalorder %s69, 0
    %s72 = sadd.s32 %s71, 1
    %s73 = scalar_select %p70, %s71, %s72
    %p76 = pneg %p70
    %p77 = scmp.eq.s32.totalorder %s35, 1
    %p78 = por %p76, %p77
    %p79 = scmp.ne.s32.totalorder %s71, %s74
    %p80 = scmp.eq.s32.totalorder %s35, 0
    %p81 = por %p79, %p80
    %p82 = scmp.ne.s32.totalorder %s71, %s74
    %p83 = scmp.eq.s32.totalorder %s40, 1
    %p84 = por %p82, %p83
    %p85 = scmp.ne.s32.totalorder %s74, %s75
    %p86 = scmp.eq.s32.totalorder %s40, 0
    %p87 = por %p85, %p86
    %p88 = scmp.ne.s32.totalorder %s74, %s75
    %p89 = scmp.eq.s32.totalorder %s41, 1
    %p90 = por %p88, %p89
    %p92 = scmp.ne.s32.totalorder %s75, %s91
    %p93 = scmp.eq.s32.totalorder %s41, 0
    %p94 = por %p92, %p93
    %s95 = ssub.s32 %s35, %s42
    %p96 = scmp.eq.s32.totalorder %s95, 0
    %s98 = sadd.s32 %s97, 1
    %s99 = scalar_select %p96, %s97, %s98
    %p102 = pneg %p96
    %p103 = scmp.eq.s32.totalorder %s35, 1
    %p104 = por %p102, %p103
    %p105 = scmp.ne.s32.totalorder %s97, %s100
    %p106 = scmp.eq.s32.totalorder %s35, 0
    %p107 = por %p105, %p106
    %p108 = scmp.ne.s32.totalorder %s97, %s100
    %p109 = scmp.eq.s32.totalorder %s40, 1
    %p110 = por %p108, %p109
    %p111 = scmp.ne.s32.totalorder %s100, %s101
    %p112 = scmp.eq.s32.totalorder %s40, 0
    %p113 = por %p111, %p112
    %p114 = scmp.ne.s32.totalorder %s100, %s101
    %p115 = scmp.eq.s32.totalorder %s41, 1
    %p116 = por %p114, %p115
    %p118 = scmp.ne.s32.totalorder %s101, %s117
    %p119 = scmp.eq.s32.totalorder %s41, 0
    %p120 = por %p118, %p119
    %s121 = ssub.s32 %s35, %s42
    %p122 = scmp.eq.s32.totalorder %s121, 0
    %s124 = sadd.s32 %s123, 1
    %s125 = scalar_select %p122, %s123, %s124
    %p128 = pneg %p122
    %p129 = scmp.eq.s32.totalorder %s35, 1
    %p130 = por %p128, %p129
    %p131 = scmp.ne.s32.totalorder %s123, %s126
    %p132 = scmp.eq.s32.totalorder %s35, 0
    %p133 = por %p131, %p132
    %p134 = scmp.ne.s32.totalorder %s123, %s126
    %p135 = scmp.eq.s32.totalorder %s40, 1
    %p136 = por %p134, %p135
    %p137 = scmp.ne.s32.totalorder %s126, %s127
    %p138 = scmp.eq.s32.totalorder %s40, 0
    %p139 = por %p137, %p138
    %p140 = scmp.ne.s32.totalorder %s126, %s127
    %p141 = scmp.eq.s32.totalorder %s41, 1
    %p142 = por %p140, %p141
    %p144 = scmp.ne.s32.totalorder %s127, %s143
    %p145 = scmp.eq.s32.totalorder %s41, 0
    %p146 = por %p144, %p145
    %s147 = ssub.s32 %s35, %s42
    %p148 = scmp.eq.s32.totalorder %s147, 0
    %s150 = sadd.s32 %s149, 1
    %s151 = scalar_select %p148, %s149, %s150
    %p154 = pneg %p148
    %p155 = scmp.eq.s32.totalorder %s35, 1
    %p156 = por %p154, %p155
    %p157 = scmp.ne.s32.totalorder %s149, %s152
    %p158 = scmp.eq.s32.totalorder %s35, 0
    %p159 = por %p157, %p158
    %p160 = scmp.ne.s32.totalorder %s149, %s152
    %p161 = scmp.eq.s32.totalorder %s40, 1
    %p162 = por %p160, %p161
    %p163 = scmp.ne.s32.totalorder %s152, %s153
    %p164 = scmp.eq.s32.totalorder %s40, 0
    %p165 = por %p163, %p164
    %p166 = scmp.ne.s32.totalorder %s152, %s153
    %p167 = scmp.eq.s32.totalorder %s41, 1
    %p168 = por %p166, %p167
    %p170 = scmp.ne.s32.totalorder %s153, %s169
    %p171 = scmp.eq.s32.totalorder %s41, 0
    %p172 = por %p170, %p171
    %s173 = ssub.s32 %s35, %s42
    %p174 = scmp.eq.s32.totalorder %s173, 0
    %s176 = sadd.s32 %s175, 1
    %s177 = scalar_select %p174, %s175, %s176
    %p180 = pneg %p174
    %p181 = scmp.eq.s32.totalorder %s35, 1
    %p182 = por %p180, %p181
    %p183 = scmp.ne.s32.totalorder %s175, %s178
    %p184 = scmp.eq.s32.totalorder %s35, 0
    %p185 = por %p183, %p184
    %p186 = scmp.ne.s32.totalorder %s175, %s178
    %p187 = scmp.eq.s32.totalorder %s40, 1
    %p188 = por %p186, %p187
    %p189 = scmp.ne.s32.totalorder %s178, %s179
    %p190 = scmp.eq.s32.totalorder %s40, 0
    %p191 = por %p189, %p190
    %p192 = scmp.ne.s32.totalorder %s178, %s179
    %p193 = scmp.eq.s32.totalorder %s41, 1
    %p194 = por %p192, %p193
    %p196 = scmp.ne.s32.totalorder %s179, %s195
    %p197 = scmp.eq.s32.totalorder %s41, 0
    %p198 = por %p196, %p197
    %s200 = sadd.s32 %s199, 1
    %p203 = scmp.eq.s32.totalorder %s35, 1
    %p204 = scmp.ne.s32.totalorder %s199, %s201
    %p205 = scmp.eq.s32.totalorder %s35, 0
    %p206 = por %p204, %p205
    %p207 = scmp.ne.s32.totalorder %s199, %s201
    %p208 = scmp.eq.s32.totalorder %s40, 1
    %p209 = por %p207, %p208
    %p210 = scmp.ne.s32.totalorder %s201, %s202
    %p211 = scmp.eq.s32.totalorder %s40, 0
    %p212 = por %p210, %p211
    %p213 = scmp.ne.s32.totalorder %s201, %s202
    %p214 = scmp.eq.s32.totalorder %s41, 1
    %p215 = por %p213, %p214
    %p217 = scmp.ne.s32.totalorder %s202, %s216
    %p218 = scmp.eq.s32.totalorder %s41, 0
    %p219 = por %p217, %p218
    %s221 = sadd.s32 %s220, 1
    %p224 = scmp.eq.s32.totalorder %s35, 1
    %p225 = scmp.ne.s32.totalorder %s220, %s222
    %p226 = scmp.eq.s32.totalorder %s35, 0
    %p227 = por %p225, %p226
    %p228 = scmp.ne.s32.totalorder %s220, %s222
    %p229 = scmp.eq.s32.totalorder %s40, 1
    %p230 = por %p228, %p229
    %p231 = scmp.ne.s32.totalorder %s222, %s223
    %p232 = scmp.eq.s32.totalorder %s40, 0
    %p233 = por %p231, %p232
    %p234 = scmp.ne.s32.totalorder %s222, %s223
    %p235 = scmp.eq.s32.totalorder %s41, 1
    %p236 = por %p234, %p235
    %p238 = scmp.ne.s32.totalorder %s223, %s237
    %p239 = scmp.eq.s32.totalorder %s41, 0
    %p240 = por %p238, %p239
    %s242 = sadd.s32 %s241, 1
    %p245 = scmp.eq.s32.totalorder %s35, 1
    %p246 = scmp.ne.s32.totalorder %s241, %s243
    %p247 = scmp.eq.s32.totalorder %s35, 0
    %p248 = por %p246, %p247
    %p249 = scmp.ne.s32.totalorder %s241, %s243
    %p250 = scmp.eq.s32.totalorder %s40, 1
    %p251 = por %p249, %p250
    %p252 = scmp.ne.s32.totalorder %s243, %s244
    %p253 = scmp.eq.s32.totalorder %s40, 0
    %p254 = por %p252, %p253
    %p255 = scmp.ne.s32.totalorder %s243, %s244
    %p256 = scmp.eq.s32.totalorder %s41, 1
    %p257 = por %p255, %p256
    %p259 = scmp.ne.s32.totalorder %s244, %s258
    %p260 = scmp.eq.s32.totalorder %s41, 0
    %p261 = por %p259, %p260
    %s263 = sadd.s32 %s262, 1
    %p266 = scmp.eq.s32.totalorder %s35, 1
    %p267 = scmp.ne.s32.totalorder %s262, %s264
    %p268 = scmp.eq.s32.totalorder %s35, 0
    %p269 = por %p267, %p268
    %p270 = scmp.ne.s32.totalorder %s262, %s264
    %p271 = scmp.eq.s32.totalorder %s40, 1
    %p272 = por %p270, %p271
    %p273 = scmp.ne.s32.totalorder %s264, %s265
    %p274 = scmp.eq.s32.totalorder %s40, 0
    %p275 = por %p273, %p274
    %p276 = scmp.ne.s32.totalorder %s264, %s265
    %p277 = scmp.eq.s32.totalorder %s41, 1
    %p278 = por %p276, %p277
    %p280 = scmp.ne.s32.totalorder %s265, %s279
    %p281 = scmp.eq.s32.totalorder %s41, 0
    %p282 = por %p280, %p281
    %s284 = sadd.s32 %s283, 1
    %p287 = scmp.eq.s32.totalorder %s35, 1
    %p288 = scmp.ne.s32.totalorder %s283, %s285
    %p289 = scmp.eq.s32.totalorder %s35, 0
    %p290 = por %p288, %p289
    %p291 = scmp.ne.s32.totalorder %s283, %s285
    %p292 = scmp.eq.s32.totalorder %s40, 1
    %p293 = por %p291, %p292
    %p294 = scmp.ne.s32.totalorder %s285, %s286
    %p295 = scmp.eq.s32.totalorder %s40, 0
    %p296 = por %p294, %p295
    %p297 = scmp.ne.s32.totalorder %s285, %s286
    %p298 = scmp.eq.s32.totalorder %s41, 1
    %p299 = por %p297, %p298
    %p301 = scmp.ne.s32.totalorder %s286, %s300
    %p302 = scmp.eq.s32.totalorder %s41, 0
    %p303 = por %p301, %p302
    %s305 = sadd.s32 %s304, 1
    %p308 = scmp.eq.s32.totalorder %s35, 1
    %p309 = scmp.ne.s32.totalorder %s304, %s306
    %p310 = scmp.eq.s32.totalorder %s35, 0
    %p311 = por %p309, %p310
    %p312 = scmp.ne.s32.totalorder %s304, %s306
    %p313 = scmp.eq.s32.totalorder %s40, 1
    %p314 = por %p312, %p313
    %p315 = scmp.ne.s32.totalorder %s306, %s307
    %p316 = scmp.eq.s32.totalorder %s40, 0
    %p317 = por %p315, %p316
    %p318 = scmp.ne.s32.totalorder %s306, %s307
    %p319 = scmp.eq.s32.totalorder %s41, 1
    %p320 = por %p318, %p319
    %p322 = scmp.ne.s32.totalorder %s307, %s321
    %p323 = scmp.eq.s32.totalorder %s41, 0
    %p324 = por %p322, %p323
    %s326 = sadd.s32 %s325, 1
    %p329 = scmp.eq.s32.totalorder %s35, 1
    %p330 = scmp.ne.s32.totalorder %s325, %s327
    %p331 = scmp.eq.s32.totalorder %s35, 0
    %p332 = por %p330, %p331
    %p333 = scmp.ne.s32.totalorder %s325, %s327
    %p334 = scmp.eq.s32.totalorder %s40, 1
    %p335 = por %p333, %p334
    %p336 = scmp.ne.s32.totalorder %s327, %s328
    %p337 = scmp.eq.s32.totalorder %s40, 0
    %p338 = por %p336, %p337
    %p339 = scmp.ne.s32.totalorder %s327, %s328
    %p340 = scmp.eq.s32.totalorder %s41, 1
    %p341 = por %p339, %p340
    %p343 = scmp.ne.s32.totalorder %s328, %s342
    %p344 = scmp.eq.s32.totalorder %s41, 0
    %p345 = por %p343, %p344
    %s347 = sadd.s32 %s346, 1
    %p350 = scmp.eq.s32.totalorder %s35, 1
    %p351 = scmp.ne.s32.totalorder %s346, %s348
    %p352 = scmp.eq.s32.totalorder %s35, 0
    %p353 = por %p351, %p352
    %p354 = scmp.ne.s32.totalorder %s346, %s348
    %p355 = scmp.eq.s32.totalorder %s40, 1
    %p356 = por %p354, %p355
    %p357 = scmp.ne.s32.totalorder %s348, %s349
    %p358 = scmp.eq.s32.totalorder %s40, 0
    %p359 = por %p357, %p358
    %p360 = scmp.ne.s32.totalorder %s348, %s349
    %p361 = scmp.eq.s32.totalorder %s41, 1
    %p362 = por %p360, %p361
    %p364 = scmp.ne.s32.totalorder %s349, %s363
    %p365 = scmp.eq.s32.totalorder %s41, 0
    %p366 = por %p364, %p365
    %s368 = sadd.s32 %s367, 1
    %p371 = scmp.eq.s32.totalorder %s35, 1
    %p372 = scmp.ne.s32.totalorder %s367, %s369
    %p373 = scmp.eq.s32.totalorder %s35, 0
    %p374 = por %p372, %p373
    %p375 = scmp.ne.s32.totalorder %s367, %s369
    %p376 = scmp.eq.s32.totalorder %s40, 1
    %p377 = por %p375, %p376
    %p378 = scmp.ne.s32.totalorder %s369, %s370
    %p379 = scmp.eq.s32.totalorder %s40, 0
    %p380 = por %p378, %p379
    %p381 = scmp.ne.s32.totalorder %s369, %s370
    %p382 = scmp.eq.s32.totalorder %s41, 1
    %p383 = por %p381, %p382
    %p385 = scmp.ne.s32.totalorder %s370, %s384
    %p386 = scmp.eq.s32.totalorder %s41, 0
    %p387 = por %p385, %p386
    %s389 = sadd.s32 %s388, 1
    %p392 = scmp.eq.s32.totalorder %s35, 1
    %p393 = scmp.ne.s32.totalorder %s388, %s390
    %p394 = scmp.eq.s32.totalorder %s35, 0
    %p395 = por %p393, %p394
    %p396 = scmp.ne.s32.totalorder %s388, %s390
    %p397 = scmp.eq.s32.totalorder %s40, 1
    %p398 = por %p396, %p397
    %p399 = scmp.ne.s32.totalorder %s390, %s391
    %p400 = scmp.eq.s32.totalorder %s40, 0
    %p401 = por %p399, %p400
    %p402 = scmp.ne.s32.totalorder %s390, %s391
    %p403 = scmp.eq.s32.totalorder %s41, 1
    %p404 = por %p402, %p403
    %p406 = scmp.ne.s32.totalorder %s391, %s405
    %p407 = scmp.eq.s32.totalorder %s41, 0
    %p408 = por %p406, %p407
    %s410 = sadd.s32 %s409, 1
    %p413 = scmp.eq.s32.totalorder %s35, 1
    %p414 = scmp.ne.s32.totalorder %s409, %s411
    %p415 = scmp.eq.s32.totalorder %s35, 0
    %p416 = por %p414, %p415
    %p417 = scmp.ne.s32.totalorder %s409, %s411
    %p418 = scmp.eq.s32.totalorder %s40, 1
    %p419 = por %p417, %p418
    %p420 = scmp.ne.s32.totalorder %s411, %s412
    %p421 = scmp.eq.s32.totalorder %s40, 0
    %p422 = por %p420, %p421
    %p423 = scmp.ne.s32.totalorder %s411, %s412
    %p424 = scmp.eq.s32.totalorder %s41, 1
    %p425 = por %p423, %p424
    %p427 = scmp.ne.s32.totalorder %s412, %s426
    %p428 = scmp.eq.s32.totalorder %s41, 0
    %p429 = por %p427, %p428
    %s431 = sadd.s32 %s430, 1
    %p434 = scmp.eq.s32.totalorder %s35, 1
    %p435 = scmp.ne.s32.totalorder %s430, %s432
    %p436 = scmp.eq.s32.totalorder %s35, 0
    %p437 = por %p435, %p436
    %p438 = scmp.ne.s32.totalorder %s430, %s432
    %p439 = scmp.eq.s32.totalorder %s40, 1
    %p440 = por %p438, %p439
    %p441 = scmp.ne.s32.totalorder %s432, %s433
    %p442 = scmp.eq.s32.totalorder %s40, 0
    %p443 = por %p441, %p442
    %p444 = scmp.ne.s32.totalorder %s432, %s433
    %p445 = scmp.eq.s32.totalorder %s41, 1
    %p446 = por %p444, %p445
    %p448 = scmp.ne.s32.totalorder %s433, %s447
    %p449 = scmp.eq.s32.totalorder %s41, 0
    %p450 = por %p448, %p449
    %s452 = sadd.s32 %s451, 1
    %p455 = scmp.eq.s32.totalorder %s35, 1
    %p456 = scmp.ne.s32.totalorder %s451, %s453
    %p457 = scmp.eq.s32.totalorder %s35, 0
    %p458 = por %p456, %p457
    %p459 = scmp.ne.s32.totalorder %s451, %s453
    %p460 = scmp.eq.s32.totalorder %s40, 1
    %p461 = por %p459, %p460
    %p462 = scmp.ne.s32.totalorder %s453, %s454
    %p463 = scmp.eq.s32.totalorder %s40, 0
    %p464 = por %p462, %p463
    %p465 = scmp.ne.s32.totalorder %s453, %s454
    %p466 = scmp.eq.s32.totalorder %s41, 1
    %p467 = por %p465, %p466
    %p469 = scmp.ne.s32.totalorder %s454, %s468
    %p470 = scmp.eq.s32.totalorder %s41, 0
    %p471 = por %p469, %p470
    %s473 = sadd.s32 %s472, 1
    %p476 = scmp.eq.s32.totalorder %s35, 1
    %p477 = scmp.ne.s32.totalorder %s472, %s474
    %p478 = scmp.eq.s32.totalorder %s35, 0
    %p479 = por %p477, %p478
    %p480 = scmp.ne.s32.totalorder %s472, %s474
    %p481 = scmp.eq.s32.totalorder %s40, 1
    %p482 = por %p480, %p481
    %p483 = scmp.ne.s32.totalorder %s474, %s475
    %p484 = scmp.eq.s32.totalorder %s40, 0
    %p485 = por %p483, %p484
    %p486 = scmp.ne.s32.totalorder %s474, %s475
    %p487 = scmp.eq.s32.totalorder %s41, 1
    %p488 = por %p486, %p487
    %p490 = scmp.ne.s32.totalorder %s475, %s489
    %p491 = scmp.eq.s32.totalorder %s41, 0
    %p492 = por %p490, %p491
    %s494 = sadd.s32 %s493, 1
    %p497 = scmp.eq.s32.totalorder %s35, 1
    %p498 = scmp.ne.s32.totalorder %s493, %s495
    %p499 = scmp.eq.s32.totalorder %s35, 0
    %p500 = por %p498, %p499
    %p501 = scmp.ne.s32.totalorder %s493, %s495
    %p502 = scmp.eq.s32.totalorder %s40, 1
    %p503 = por %p501, %p502
    %p504 = scmp.ne.s32.totalorder %s495, %s496
    %p505 = scmp.eq.s32.totalorder %s40, 0
    %p506 = por %p504, %p505
    %p507 = scmp.ne.s32.totalorder %s495, %s496
    %p508 = scmp.eq.s32.totalorder %s41, 1
    %p509 = por %p507, %p508
    %p511 = scmp.ne.s32.totalorder %s496, %s510
    %p512 = scmp.eq.s32.totalorder %s41, 0
    %p513 = por %p511, %p512
    %s515 = sadd.s32 %s514, 1
    %p518 = scmp.eq.s32.totalorder %s35, 1
    %p519 = scmp.ne.s32.totalorder %s514, %s516
    %p520 = scmp.eq.s32.totalorder %s35, 0
    %p521 = por %p519, %p520
    %p522 = scmp.ne.s32.totalorder %s514, %s516
    %p523 = scmp.eq.s32.totalorder %s40, 1
    %p524 = por %p522, %p523
    %p525 = scmp.ne.s32.totalorder %s516, %s517
    %p526 = scmp.eq.s32.totalorder %s40, 0
    %p527 = por %p525, %p526
    %p528 = scmp.ne.s32.totalorder %s516, %s517
    %p529 = scmp.eq.s32.totalorder %s41, 1
    %p530 = por %p528, %p529
    %p532 = scmp.ne.s32.totalorder %s517, %s531
    %p533 = scmp.eq.s32.totalorder %s41, 0
    %p534 = por %p532, %p533
    %s536 = sadd.s32 %s535, 1
    %p539 = scmp.eq.s32.totalorder %s35, 1
    %p540 = scmp.ne.s32.totalorder %s535, %s537
    %p541 = scmp.eq.s32.totalorder %s35, 0
    %p542 = por %p540, %p541
    %p543 = scmp.ne.s32.totalorder %s535, %s537
    %p544 = scmp.eq.s32.totalorder %s40, 1
    %p545 = por %p543, %p544
    %p546 = scmp.ne.s32.totalorder %s537, %s538
    %p547 = scmp.eq.s32.totalorder %s40, 0
    %p548 = por %p546, %p547
    %p549 = scmp.ne.s32.totalorder %s537, %s538
    %p550 = scmp.eq.s32.totalorder %s41, 1
    %p551 = por %p549, %p550
    %p553 = scmp.ne.s32.totalorder %s538, %s552
    %p554 = scmp.eq.s32.totalorder %s41, 0
    %p555 = por %p553, %p554
    %s557 = sadd.s32 %s556, 1
    %p560 = scmp.eq.s32.totalorder %s35, 1
    %p561 = scmp.ne.s32.totalorder %s556, %s558
    %p562 = scmp.eq.s32.totalorder %s35, 0
    %p563 = por %p561, %p562
    %p564 = scmp.ne.s32.totalorder %s556, %s558
    %p565 = scmp.eq.s32.totalorder %s40, 1
    %p566 = por %p564, %p565
    %p567 = scmp.ne.s32.totalorder %s558, %s559
    %p568 = scmp.eq.s32.totalorder %s40, 0
    %p569 = por %p567, %p568
    %p570 = scmp.ne.s32.totalorder %s558, %s559
    %p571 = scmp.eq.s32.totalorder %s41, 1
    %p572 = por %p570, %p571
    %p574 = scmp.ne.s32.totalorder %s559, %s573
    %p575 = scmp.eq.s32.totalorder %s41, 0
    %p576 = por %p574, %p575
    %s578 = sadd.s32 %s577, 1
    %p581 = scmp.eq.s32.totalorder %s35, 1
    %p582 = scmp.ne.s32.totalorder %s577, %s579
    %p583 = scmp.eq.s32.totalorder %s35, 0
    %p584 = por %p582, %p583
    %p585 = scmp.ne.s32.totalorder %s577, %s579
    %p586 = scmp.eq.s32.totalorder %s40, 1
    %p587 = por %p585, %p586
    %p588 = scmp.ne.s32.totalorder %s579, %s580
    %p589 = scmp.eq.s32.totalorder %s40, 0
    %p590 = por %p588, %p589
    %p591 = scmp.ne.s32.totalorder %s579, %s580
    %p592 = scmp.eq.s32.totalorder %s41, 1
    %p593 = por %p591, %p592
    %p595 = scmp.ne.s32.totalorder %s580, %s594
    %p596 = scmp.eq.s32.totalorder %s41, 0
    %p597 = por %p595, %p596
    %s599 = sadd.s32 %s598, 1
    %p602 = scmp.eq.s32.totalorder %s35, 1
    %p603 = scmp.ne.s32.totalorder %s598, %s600
    %p604 = scmp.eq.s32.totalorder %s35, 0
    %p605 = por %p603, %p604
    %p606 = scmp.ne.s32.totalorder %s598, %s600
    %p607 = scmp.eq.s32.totalorder %s40, 1
    %p608 = por %p606, %p607
    %p609 = scmp.ne.s32.totalorder %s600, %s601
    %p610 = scmp.eq.s32.totalorder %s40, 0
    %p611 = por %p609, %p610
    %p612 = scmp.ne.s32.totalorder %s600, %s601
    %p613 = scmp.eq.s32.totalorder %s41, 1
    %p614 = por %p612, %p613
    %p616 = scmp.ne.s32.totalorder %s601, %s615
    %p617 = scmp.eq.s32.totalorder %s41, 0
    %p618 = por %p616, %p617
    %s620 = sadd.s32 %s619, 1
    %p623 = scmp.eq.s32.totalorder %s35, 1
    %p624 = scmp.ne.s32.totalorder %s619, %s621
    %p625 = scmp.eq.s32.totalorder %s35, 0
    %p626 = por %p624, %p625
    %p627 = scmp.ne.s32.totalorder %s619, %s621
    %p628 = scmp.eq.s32.totalorder %s40, 1
    %p629 = por %p627, %p628
    %p630 = scmp.ne.s32.totalorder %s621, %s622
    %p631 = scmp.eq.s32.totalorder %s40, 0
    %p632 = por %p630, %p631
    %p633 = scmp.ne.s32.totalorder %s621, %s622
    %p634 = scmp.eq.s32.totalorder %s41, 1
    %p635 = por %p633, %p634
    %p637 = scmp.ne.s32.totalorder %s622, %s636
    %p638 = scmp.eq.s32.totalorder %s41, 0
    %p639 = por %p637, %p638
    %s640 = ssub.s32 %s35, %s42
    %p641 = scmp.eq.s32.totalorder %s640, 0
    %s643 = sadd.s32 %s642, 1
    %s644 = scalar_select %p641, %s642, %s643
    %p647 = pneg %p641
    %p648 = scmp.eq.s32.totalorder %s35, 1
    %p649 = por %p647, %p648
    %p650 = scmp.ne.s32.totalorder %s642, %s645
    %p651 = scmp.eq.s32.totalorder %s35, 0
    %p652 = por %p650, %p651
    %p653 = scmp.ne.s32.totalorder %s642, %s645
    %p654 = scmp.eq.s32.totalorder %s40, 1
    %p655 = por %p653, %p654
    %p656 = scmp.ne.s32.totalorder %s645, %s646
    %p657 = scmp.eq.s32.totalorder %s40, 0
    %p658 = por %p656, %p657
    %p659 = scmp.ne.s32.totalorder %s645, %s646
    %p660 = scmp.eq.s32.totalorder %s41, 1
    %p661 = por %p659, %p660
    %p663 = scmp.ne.s32.totalorder %s646, %s662
    %p664 = scmp.eq.s32.totalorder %s41, 0
    %p665 = por %p663, %p664
    %s666 = ssub.s32 %s35, %s42
    %p667 = scmp.eq.s32.totalorder %s666, 0
    %s669 = sadd.s32 %s668, 1
    %s670 = scalar_select %p667, %s668, %s669
    %p673 = pneg %p667
    %p674 = scmp.eq.s32.totalorder %s35, 1
    %p675 = por %p673, %p674
    %p676 = scmp.ne.s32.totalorder %s668, %s671
    %p677 = scmp.eq.s32.totalorder %s35, 0
    %p678 = por %p676, %p677
    %p679 = scmp.ne.s32.totalorder %s668, %s671
    %p680 = scmp.eq.s32.totalorder %s40, 1
    %p681 = por %p679, %p680
    %p682 = scmp.ne.s32.totalorder %s671, %s672
    %p683 = scmp.eq.s32.totalorder %s40, 0
    %p684 = por %p682, %p683
    %p685 = scmp.ne.s32.totalorder %s671, %s672
    %p686 = scmp.eq.s32.totalorder %s41, 1
    %p687 = por %p685, %p686
    %p689 = scmp.ne.s32.totalorder %s672, %s688
    %p690 = scmp.eq.s32.totalorder %s41, 0
    %p691 = por %p689, %p690
    %p692 = scmp.le.s32.totalorder 1, %s35
    %p693 = scmp.lt.s32.totalorder %s35, 3
    %p694 = pnand %p692, %p693
    %p695 = pneg %p694
    // Predicated region
    $region9: #{conditional_ldm_forward.3} parent=5 // pred_check
      _
    $region10: #{conditional_ldm_forward.3} parent=5 // pred_check_branch
      %697 = sbr.rel (%p694) target = $region12
    $region11: #{conditional_ldm_forward.3} parent=5 // pred_region
      %s698 = ssub.s32 %s35, 1
      // Predicated region
      $region13: #{conditional_ldm_forward.3} parent=11 // pred_check
        %p699 = pneg %p212
      $region14: #{conditional_ldm_forward.3} parent=11 // pred_check_branch
        %701 = sbr.rel (%p699) target = $region16
      $region15: #{conditional_ldm_forward.3} parent=11 // pred_region
        _
      $region16: #{conditional_ldm_forward.3} parent=11 // pred_fallthru
        _
      // Predicated region
      $region17: #{conditional_ldm_forward.3} parent=11 // pred_check
        %p702 = pneg %p233
      $region18: #{conditional_ldm_forward.3} parent=11 // pred_check_branch
        %704 = sbr.rel (%p702) target = $region20
      $region19: #{conditional_ldm_forward.3} parent=11 // pred_region
        _
      $region20: #{conditional_ldm_forward.3} parent=11 // pred_fallthru
        _
      // Predicated region
      $region21: #{conditional_ldm_forward.3} parent=11 // pred_check
        %p705 = pneg %p254
      $region22: #{conditional_ldm_forward.3} parent=11 // pred_check_branch
        %707 = sbr.rel (%p705) target = $region24
      $region23: #{conditional_ldm_forward.3} parent=11 // pred_region
        _
      $region24: #{conditional_ldm_forward.3} parent=11 // pred_fallthru
        _
      // Predicated region
      $region25: #{conditional_ldm_forward.3} parent=11 // pred_check
        %p708 = pneg %p275
      $region26: #{conditional_ldm_forward.3} parent=11 // pred_check_branch
        %710 = sbr.rel (%p708) target = $region28
      $region27: #{conditional_ldm_forward.3} parent=11 // pred_region
        _
      $region28: #{conditional_ldm_forward.3} parent=11 // pred_fallthru
        _
      // Predicated region
      $region29: #{conditional_ldm_forward.3} parent=11 // pred_check
        %p711 = pneg %p296
      $region30: #{conditional_ldm_forward.3} parent=11 // pred_check_branch
        %713 = sbr.rel (%p711) target = $region32
      $region31: #{conditional_ldm_forward.3} parent=11 // pred_region
        _
      $region32: #{conditional_ldm_forward.3} parent=11 // pred_fallthru
        _
      // Predicated region
      $region33: #{conditional_ldm_forward.3} parent=11 // pred_check
        %p714 = pneg %p317
      $region34: #{conditional_ldm_forward.3} parent=11 // pred_check_branch
        %716 = sbr.rel (%p714) target = $region36
      $region35: #{conditional_ldm_forward.3} parent=11 // pred_region
        _
      $region36: #{conditional_ldm_forward.3} parent=11 // pred_fallthru
        _
      // Predicated region
      $region37: #{conditional_ldm_forward.3} parent=11 // pred_check
        %p717 = pneg %p338
      $region38: #{conditional_ldm_forward.3} parent=11 // pred_check_branch
        %719 = sbr.rel (%p717) target = $region40
      $region39: #{conditional_ldm_forward.3} parent=11 // pred_region
        _
      $region40: #{conditional_ldm_forward.3} parent=11 // pred_fallthru
        _
      // Predicated region
      $region41: #{conditional_ldm_forward.3} parent=11 // pred_check
        %p720 = pneg %p359
      $region42: #{conditional_ldm_forward.3} parent=11 // pred_check_branch
        %722 = sbr.rel (%p720) target = $region44
      $region43: #{conditional_ldm_forward.3} parent=11 // pred_region
        _
      $region44: #{conditional_ldm_forward.3} parent=11 // pred_fallthru
        _
      // Predicated region
      $region45: #{conditional_ldm_forward.3} parent=11 // pred_check
        %p723 = pneg %p380
      $region46: #{conditional_ldm_forward.3} parent=11 // pred_check_branch
        %725 = sbr.rel (%p723) target = $region48
      $region47: #{conditional_ldm_forward.3} parent=11 // pred_region
        _
      $region48: #{conditional_ldm_forward.3} parent=11 // pred_fallthru
        _
      // Predicated region
      $region49: #{conditional_ldm_forward.3} parent=11 // pred_check
        %p726 = pneg %p401
      $region50: #{conditional_ldm_forward.3} parent=11 // pred_check_branch
        %728 = sbr.rel (%p726) target = $region52
      $region51: #{conditional_ldm_forward.3} parent=11 // pred_region
        _
      $region52: #{conditional_ldm_forward.3} parent=11 // pred_fallthru
        _
      // Predicated region
      $region53: #{conditional_ldm_forward.3} parent=11 // pred_check
        %p729 = pneg %p422
      $region54: #{conditional_ldm_forward.3} parent=11 // pred_check_branch
        %731 = sbr.rel (%p729) target = $region56
      $region55: #{conditional_ldm_forward.3} parent=11 // pred_region
        _
      $region56: #{conditional_ldm_forward.3} parent=11 // pred_fallthru
        _
      // Predicated region
      $region57: #{conditional_ldm_forward.3} parent=11 // pred_check
        %p732 = pneg %p443
      $region58: #{conditional_ldm_forward.3} parent=11 // pred_check_branch
        %734 = sbr.rel (%p732) target = $region60
      $region59: #{conditional_ldm_forward.3} parent=11 // pred_region
        _
      $region60: #{conditional_ldm_forward.3} parent=11 // pred_fallthru
        _
      // Predicated region
      $region61: #{conditional_ldm_forward.3} parent=11 // pred_check
        %p735 = pneg %p464
      $region62: #{conditional_ldm_forward.3} parent=11 // pred_check_branch
        %737 = sbr.rel (%p735) target = $region64
      $region63: #{conditional_ldm_forward.3} parent=11 // pred_region
        _
      $region64: #{conditional_ldm_forward.3} parent=11 // pred_fallthru
        _
      // Predicated region
      $region65: #{conditional_ldm_forward.3} parent=11 // pred_check
        %p738 = pneg %p485
      $region66: #{conditional_ldm_forward.3} parent=11 // pred_check_branch
        %740 = sbr.rel (%p738) target = $region68
      $region67: #{conditional_ldm_forward.3} parent=11 // pred_region
        _
      $region68: #{conditional_ldm_forward.3} parent=11 // pred_fallthru
        _
      // Predicated region
      $region69: #{conditional_ldm_forward.3} parent=11 // pred_check
        %p741 = pneg %p506
      $region70: #{conditional_ldm_forward.3} parent=11 // pred_check_branch
        %743 = sbr.rel (%p741) target = $region72
      $region71: #{conditional_ldm_forward.3} parent=11 // pred_region
        _
      $region72: #{conditional_ldm_forward.3} parent=11 // pred_fallthru
        _
      // Predicated region
      $region73: #{conditional_ldm_forward.3} parent=11 // pred_check
        %p744 = pneg %p527
      $region74: #{conditional_ldm_forward.3} parent=11 // pred_check_branch
        %746 = sbr.rel (%p744) target = $region76
      $region75: #{conditional_ldm_forward.3} parent=11 // pred_region
        _
      $region76: #{conditional_ldm_forward.3} parent=11 // pred_fallthru
        _
      // Predicated region
      $region77: #{conditional_ldm_forward.3} parent=11 // pred_check
        %p747 = pneg %p548
      $region78: #{conditional_ldm_forward.3} parent=11 // pred_check_branch
        %749 = sbr.rel (%p747) target = $region80
      $region79: #{conditional_ldm_forward.3} parent=11 // pred_region
        _
      $region80: #{conditional_ldm_forward.3} parent=11 // pred_fallthru
        _
      // Predicated region
      $region81: #{conditional_ldm_forward.3} parent=11 // pred_check
        %p750 = pneg %p569
      $region82: #{conditional_ldm_forward.3} parent=11 // pred_check_branch
        %752 = sbr.rel (%p750) target = $region84
      $region83: #{conditional_ldm_forward.3} parent=11 // pred_region
        _
      $region84: #{conditional_ldm_forward.3} parent=11 // pred_fallthru
        _
      // Predicated region
      $region85: #{conditional_ldm_forward.3} parent=11 // pred_check
        %p753 = pneg %p590
      $region86: #{conditional_ldm_forward.3} parent=11 // pred_check_branch
        %755 = sbr.rel (%p753) target = $region88
      $region87: #{conditional_ldm_forward.3} parent=11 // pred_region
        _
      $region88: #{conditional_ldm_forward.3} parent=11 // pred_fallthru
        _
      // Predicated region
      $region89: #{conditional_ldm_forward.3} parent=11 // pred_check
        %p756 = pneg %p611
      $region90: #{conditional_ldm_forward.3} parent=11 // pred_check_branch
        %758 = sbr.rel (%p756) target = $region92
      $region91: #{conditional_ldm_forward.3} parent=11 // pred_region
        _
      $region92: #{conditional_ldm_forward.3} parent=11 // pred_fallthru
        _
      // Predicated region
      $region93: #{conditional_ldm_forward.3} parent=11 // pred_check
        %p759 = pneg %p632
      $region94: #{conditional_ldm_forward.3} parent=11 // pred_check_branch
        %761 = sbr.rel (%p759) target = $region96
      $region95: #{conditional_ldm_forward.3} parent=11 // pred_region
        _
      $region96: #{conditional_ldm_forward.3} parent=11 // pred_fallthru
        _
    $region12: #{conditional_ldm_forward.3} parent=5 // pred_fallthru
      _
    %p762 = scmp.lt.s32.totalorder %s35, 2
    // Predicated region
    $region97: #{conditional_ldm_forward.3} parent=5 // pred_check
      %p763 = pneg %p762
    $region98: #{conditional_ldm_forward.3} parent=5 // pred_check_branch
      %765 = sbr.rel (%p763) target = $region100
    $region99: #{conditional_ldm_forward.3} parent=5 // pred_region
      // Predicated region
      $region101: #{conditional_ldm_forward.3} parent=99 // pred_check
        %p766 = pneg %p55
      $region102: #{conditional_ldm_forward.3} parent=99 // pred_check_branch
        %768 = sbr.rel (%p766) target = $region104
      $region103: #{conditional_ldm_forward.3} parent=99 // pred_region
        %p769 = scmp.lt.s32.totalorder %s35, 1
        %s770 = scalar_select %p769, %s35, 1
        %s771 = scalar_lea.vmem %s0, %s770
      $region104: #{conditional_ldm_forward.3} parent=99 // pred_fallthru
        _
      // Predicated region
      $region105: #{conditional_ldm_forward.3} parent=99 // pred_check
        %p772 = pneg %p81
      $region106: #{conditional_ldm_forward.3} parent=99 // pred_check_branch
        %774 = sbr.rel (%p772) target = $region108
      $region107: #{conditional_ldm_forward.3} parent=99 // pred_region
        %p775 = scmp.lt.s32.totalorder %s35, 1
        %s776 = scalar_select %p775, %s35, 1
        %s777 = smul.addr %s776, 16
        %s778 = smul.addr %s777, 8
        %s779 = scalar_lea.vmem %s1, %s778
      $region108: #{conditional_ldm_forward.3} parent=99 // pred_fallthru
        _
      // Predicated region
      $region109: #{conditional_ldm_forward.3} parent=99 // pred_check
        %p780 = pneg %p107
      $region110: #{conditional_ldm_forward.3} parent=99 // pred_check_branch
        %782 = sbr.rel (%p780) target = $region112
      $region111: #{conditional_ldm_forward.3} parent=99 // pred_region
        %p783 = scmp.lt.s32.totalorder %s35, 1
        %s784 = scalar_select %p783, %s35, 1
        %s785 = smul.addr %s784, 8
        %s786 = smul.addr %s785, 8
        %s787 = scalar_lea.vmem %s2, %s786
      $region112: #{conditional_ldm_forward.3} parent=99 // pred_fallthru
        _
      // Predicated region
      $region113: #{conditional_ldm_forward.3} parent=99 // pred_check
        %p788 = pneg %p133
      $region114: #{conditional_ldm_forward.3} parent=99 // pred_check_branch
        %790 = sbr.rel (%p788) target = $region116
      $region115: #{conditional_ldm_forward.3} parent=99 // pred_region
        %p791 = scmp.lt.s32.totalorder %s35, 1
        %s792 = scalar_select %p791, %s35, 1
        %s793 = smul.addr %s792, 8
        %s794 = smul.addr %s793, 8
        %s795 = scalar_lea.vmem %s3, %s794
      $region116: #{conditional_ldm_forward.3} parent=99 // pred_fallthru
        _
      // Predicated region
      $region117: #{conditional_ldm_forward.3} parent=99 // pred_check
        %p796 = pneg %p159
      $region118: #{conditional_ldm_forward.3} parent=99 // pred_check_branch
        %798 = sbr.rel (%p796) target = $region120
      $region119: #{conditional_ldm_forward.3} parent=99 // pred_region
        %p799 = scmp.lt.s32.totalorder %s35, 1
        %s800 = scalar_select %p799, %s35, 1
        %s801 = scalar_lea.vmem %s4, %s800
      $region120: #{conditional_ldm_forward.3} parent=99 // pred_fallthru
        _
      // Predicated region
      $region121: #{conditional_ldm_forward.3} parent=99 // pred_check
        %p802 = pneg %p185
      $region122: #{conditional_ldm_forward.3} parent=99 // pred_check_branch
        %804 = sbr.rel (%p802) target = $region124
      $region123: #{conditional_ldm_forward.3} parent=99 // pred_region
        %p805 = scmp.lt.s32.totalorder %s35, 1
        %s806 = scalar_select %p805, %s35, 1
        %s807 = scalar_lea.vmem %s5, %s806
      $region124: #{conditional_ldm_forward.3} parent=99 // pred_fallthru
        _
    $region100: #{conditional_ldm_forward.3} parent=5 // pred_fallthru
      _
    %p808 = scmp.le.s32.totalorder 1, %s35
    %p809 = scmp.lt.s32.totalorder %s35, 3
    %p810 = pnand %p808, %p809
    %p811 = pneg %p810
    // Predicated region
    $region125: #{conditional_ldm_forward.3} parent=5 // pred_check
      _
    $region126: #{conditional_ldm_forward.3} parent=5 // pred_check_branch
      %813 = sbr.rel (%p810) target = $region128
    $region127: #{conditional_ldm_forward.3} parent=5 // pred_region
      %s814 = ssub.s32 %s35, 1
      %p815 = scmp.lt.s32.totalorder %s40, 1
      %s816 = scalar_select %p815, %s40, 1
      %s817 = scalar_lea.vmem %s0, %s816
      %p818 = pneg %p61
      %p819 = pneg %p58
      %p820 = scmp.lt.s32.totalorder %s40, 1
      %s821 = scalar_select %p820, %s40, 1
      %s822 = smul.addr %s821, 16
      %s823 = smul.addr %s822, 8
      %s824 = scalar_lea.vmem %s1, %s823
      %p825 = pneg %p87
      %p826 = pneg %p84
      %p827 = scmp.lt.s32.totalorder %s40, 1
      %s828 = scalar_select %p827, %s40, 1
      %s829 = smul.addr %s828, 8
      %s830 = smul.addr %s829, 8
      %s831 = scalar_lea.vmem %s2, %s830
      %p832 = pneg %p113
      %p833 = pneg %p110
      %p834 = scmp.lt.s32.totalorder %s40, 1
      %s835 = scalar_select %p834, %s40, 1
      %s836 = smul.addr %s835, 8
      %s837 = smul.addr %s836, 8
      %s838 = scalar_lea.vmem %s3, %s837
      %p839 = pneg %p139
      %p840 = pneg %p136
      %p841 = scmp.lt.s32.totalorder %s40, 1
      %s842 = scalar_select %p841, %s40, 1
      %s843 = scalar_lea.vmem %s4, %s842
      %p844 = pneg %p165
      %p845 = pneg %p162
      %p846 = scmp.lt.s32.totalorder %s40, 1
      %s847 = scalar_select %p846, %s40, 1
      %s848 = scalar_lea.vmem %s5, %s847
      %p849 = pneg %p191
      %p850 = pneg %p188
      %p851 = pneg %p212
      %p852 = pneg %p209
      %p853 = pneg %p233
      %p854 = pneg %p230
      %p855 = pneg %p254
      %p856 = pneg %p251
      %p857 = pneg %p275
      %p858 = pneg %p272
      %p859 = pneg %p296
      %p860 = pneg %p293
      %p861 = pneg %p317
      %p862 = pneg %p314
      %p863 = pneg %p338
      %p864 = pneg %p335
      %p865 = pneg %p359
      %p866 = pneg %p356
      %p867 = pneg %p380
      %p868 = pneg %p377
      %p869 = pneg %p401
      %p870 = pneg %p398
      %p871 = pneg %p422
      %p872 = pneg %p419
      %p873 = pneg %p443
      %p874 = pneg %p440
      %p875 = pneg %p464
      %p876 = pneg %p461
      %p877 = pneg %p485
      %p878 = pneg %p482
      %p879 = pneg %p506
      %p880 = pneg %p503
      %p881 = pneg %p527
      %p882 = pneg %p524
      %p883 = pneg %p548
      %p884 = pneg %p545
      %p885 = pneg %p569
      %p886 = pneg %p566
      %p887 = pneg %p590
      %p888 = pneg %p587
      %p889 = pneg %p611
      %p890 = pneg %p608
      %p891 = pneg %p632
      %p892 = pneg %p629
      %p893 = pneg %p658
      %p894 = pneg %p655
      %p895 = scmp.lt.s32.totalorder %s40, 1
      %s896 = scalar_select %p895, %s40, 1
      %s897 = scalar_lea.vmem %s27, %s896
      %p898 = pneg %p684
      %p899 = pneg %p681
      %p900 = scmp.lt.s32.totalorder %s40, 1
      %s901 = scalar_select %p900, %s40, 1
      %s902 = scalar_lea.vmem %s28, %s901
      %p903 = scmp.lt.s32.totalorder %s40, 1
      %s904 = scalar_select %p903, %s40, 1
      %s905 = scalar_lea.vmem %s0, %s904
      %p906 = scmp.lt.s32.totalorder %s40, 1
      %s907 = scalar_select %p906, %s40, 1
      %s908 = smul.addr %s907, 16
      %s909 = smul.addr %s908, 8
      %s910 = scalar_lea.vmem %s1, %s909
      %p911 = scmp.lt.s32.totalorder %s40, 1
      %s912 = scalar_select %p911, %s40, 1
      %s913 = smul.addr %s912, 8
      %s914 = smul.addr %s913, 8
      %s915 = scalar_lea.vmem %s2, %s914
      %p916 = scmp.lt.s32.totalorder %s40, 1
      %s917 = scalar_select %p916, %s40, 1
      %s918 = smul.addr %s917, 8
      %s919 = smul.addr %s918, 8
      %s920 = scalar_lea.vmem %s3, %s919
      %p921 = scmp.lt.s32.totalorder %s40, 1
      %s922 = scalar_select %p921, %s40, 1
      %s923 = scalar_lea.vmem %s4, %s922
      %p924 = scmp.lt.s32.totalorder %s40, 1
      %s925 = scalar_select %p924, %s40, 1
      %s926 = scalar_lea.vmem %s5, %s925
      %p927 = scmp.lt.s32.totalorder %s40, 1
      %s928 = scalar_select %p927, %s40, 1
      %s929 = scalar_lea.vmem %s27, %s928
      %p930 = scmp.lt.s32.totalorder %s40, 1
      %s931 = scalar_select %p930, %s40, 1
      %s932 = scalar_lea.vmem %s28, %s931
      %v933 = vld [vmem:[%s910] sm:$0xff]
      %v934 = vld [vmem:[%s910 + $0x8] sm:$0xff]
      %v935 = vld [vmem:[%s910 + $0x10] sm:$0xff]
      %v936 = vld [vmem:[%s910 + $0x18] sm:$0xff]
      %v937 = vld [vmem:[%s910 + $0x20] sm:$0xff]
      %v938 = vld [vmem:[%s910 + $0x28] sm:$0xff]
      %v939 = vld [vmem:[%s910 + $0x30] sm:$0xff]
      %v940 = vld [vmem:[%s910 + $0x38] sm:$0xff]
      %v941 = vld [vmem:[%s910 + $0x40] sm:$0xff]
      %v942 = vld [vmem:[%s910 + $0x48] sm:$0xff]
      %v943 = vld [vmem:[%s910 + $0x50] sm:$0xff]
      %v944 = vld [vmem:[%s910 + $0x58] sm:$0xff]
      %v945 = vld [vmem:[%s910 + $0x60] sm:$0xff]
      %v946 = vld [vmem:[%s910 + $0x68] sm:$0xff]
      %v947 = vld [vmem:[%s910 + $0x70] sm:$0xff]
      %v948 = vld [vmem:[%s910 + $0x78] sm:$0xff]
      %v949 = vld [vmem:[%s7] sm:$0xff]
      %v950 = vld [vmem:[%s7 + $0x8] sm:$0xff]
      %v951 = vld [vmem:[%s7 + $0x10] sm:$0xff]
      %v952 = vld [vmem:[%s7 + $0x18] sm:$0xff]
      %v953 = vld [vmem:[%s7 + $0x20] sm:$0xff]
      %v954 = vld [vmem:[%s7 + $0x28] sm:$0xff]
      %v955 = vld [vmem:[%s7 + $0x30] sm:$0xff]
      %v956 = vld [vmem:[%s7 + $0x38] sm:$0xff]
      %v957 = vld [vmem:[%s7 + $0x40] sm:$0xff]
      %v958 = vld [vmem:[%s7 + $0x48] sm:$0xff]
      %v959 = vld [vmem:[%s7 + $0x50] sm:$0xff]
      %v960 = vld [vmem:[%s7 + $0x58] sm:$0xff]
      %v961 = vld [vmem:[%s7 + $0x60] sm:$0xff]
      %v962 = vld [vmem:[%s7 + $0x68] sm:$0xff]
      %v963 = vld [vmem:[%s7 + $0x70] sm:$0xff]
      %v964 = vld [vmem:[%s7 + $0x78] sm:$0xff]
      %v965 = vld [vmem:[%s7 + $0x80] sm:$0xff]
      %v966 = vld [vmem:[%s7 + $0x88] sm:$0xff]
      %v967 = vld [vmem:[%s7 + $0x90] sm:$0xff]
      %v968 = vld [vmem:[%s7 + $0x98] sm:$0xff]
      %v969 = vld [vmem:[%s7 + $0xa0] sm:$0xff]
      %v970 = vld [vmem:[%s7 + $0xa8] sm:$0xff]
      %v971 = vld [vmem:[%s7 + $0xb0] sm:$0xff]
      %v972 = vld [vmem:[%s7 + $0xb8] sm:$0xff]
      %v973 = vld [vmem:[%s8] sm:$0x1]
      %v975 = vlaneseq
      %v976 = vshrl.u32 %v975, 7
      %v977 = vsub.s32 0, %v976
      %v978 = vrot.slane %v973, %v977
      %vm980 = vcmask 523264
      %v982 = vsel %vm980, %v934, 0
      %v985 = vsel %vm980, %v936, 0
      %v988 = vsel %vm980, %v938, 0
      %v991 = vsel %vm980, %v940, 0
      %v994 = vsel %vm980, %v942, 0
      %v997 = vsel %vm980, %v944, 0
      %v1000 = vsel %vm980, %v946, 0
      %v1003 = vsel %vm980, %v948, 0
      %1005 = vmatprep.subr.mxu0 0.0
      %1006 = vmatpush1.msra.mxu0 %v964
      %1007 = vmatprep.subr.mxu0 0.0
      %1008 = vmatpush1.msra.mxu0 %v963
      %1009 = vmatprep.subr.mxu0 0.0
      %1010 = vmatpush1.msra.mxu0 %v962
      %1011 = vmatprep.subr.mxu0 0.0
      %1012 = vmatpush1.msra.mxu0 %v961
      %1013 = vmatprep.subr.mxu0 0.0
      %1014 = vmatpush1.msra.mxu0 %v960
      %1015 = vmatprep.subr.mxu0 0.0
      %1016 = vmatpush1.msra.mxu0 %v959
      %1017 = vmatprep.subr.mxu0 0.0
      %1018 = vmatpush1.msra.mxu0 %v958
      %1019 = vmatprep.subr.mxu0 0.0
      %1020 = vmatpush1.msra.mxu0 %v957
      %1021 = vmatprep.subr.mxu0 0.0
      %1022 = vmatpush1.msra.mxu0 %v956
      %1023 = vmatprep.subr.mxu0 0.0
      %1024 = vmatpush1.msra.mxu0 %v955
      %1025 = vmatprep.subr.mxu0 0.0
      %1026 = vmatpush1.msra.mxu0 %v954
      %1027 = vmatprep.subr.mxu0 0.0
      %1028 = vmatpush1.msra.mxu0 %v953
      %1029 = vmatprep.subr.mxu0 0.0
      %1030 = vmatpush1.msra.mxu0 %v952
      %1031 = vmatprep.subr.mxu0 0.0
      %1032 = vmatpush1.msra.mxu0 %v951
      %1033 = vmatprep.subr.mxu0 0.0
      %1034 = vmatpush1.msra.mxu0 %v950
      %1035 = vmatprep.subr.mxu0 0.0
      %1036 = vmatpush1.msra.mxu0 %v949
      %1037 = vmatprep.subr.mxu0 0.0
      %1038 = vmatpush2.msra.mxu0 0.0
      %1039 = vmatprep.subr.mxu0 0.0
      %1040 = vmatpush2.msra.mxu0 0.0
      %1041 = vmatprep.subr.mxu0 0.0
      %1042 = vmatpush2.msra.mxu0 0.0
      %1043 = vmatprep.subr.mxu0 0.0
      %1044 = vmatpush2.msra.mxu0 0.0
      %1045 = vmatprep.subr.mxu0 0.0
      %1046 = vmatpush2.msra.mxu0 0.0
      %1047 = vmatprep.subr.mxu0 0.0
      %1048 = vmatpush2.msra.mxu0 0.0
      %1049 = vmatprep.subr.mxu0 0.0
      %1050 = vmatpush2.msra.mxu0 0.0
      %1051 = vmatprep.subr.mxu0 0.0
      %1052 = vmatpush2.msra.mxu0 0.0
      %1053 = vmatprep.subr.mxu0 0.0
      %1054 = vmatpush2.msra.mxu0 %v972
      %1055 = vmatprep.subr.mxu0 0.0
      %1056 = vmatpush2.msra.mxu0 %v971
      %1057 = vmatprep.subr.mxu0 0.0
      %1058 = vmatpush2.msra.mxu0 %v970
      %1059 = vmatprep.subr.mxu0 0.0
      %1060 = vmatpush2.msra.mxu0 %v969
      %1061 = vmatprep.subr.mxu0 0.0
      %1062 = vmatpush2.msra.mxu0 %v968
      %1063 = vmatprep.subr.mxu0 0.0
      %1064 = vmatpush2.msra.mxu0 %v967
      %1065 = vmatprep.subr.mxu0 0.0
      %1066 = vmatpush2.msra.mxu0 %v966
      %1067 = vmatprep.subr.mxu0 0.0
      %1068 = vmatpush2.msra.mxu0 %v965
      %1069 = vmatprep.mubr.f32.mxu0 %v982
      %1070 = vmatmul.mubr.f32.gmra.mxu0 %v933
      %v1071 = vpop.f32.mrf.mxu0
      %v1072 = vadd.f32 %v978, %v1071
      %v1073 = vpop.f32.mrf.mxu0
      %1074 = vmatprep.mubr.f32.mxu0 %v985
      %1075 = vmatmul.mubr.f32.gmra.mxu0 %v935
      %v1076 = vpop.f32.mrf.mxu0
      %v1077 = vadd.f32 %v978, %v1076
      %v1078 = vpop.f32.mrf.mxu0
      %1079 = vmatprep.mubr.f32.mxu0 %v988
      %1080 = vmatmul.mubr.f32.gmra.mxu0 %v937
      %v1081 = vpop.f32.mrf.mxu0
      %v1082 = vadd.f32 %v978, %v1081
      %v1083 = vpop.f32.mrf.mxu0
      %1084 = vmatprep.mubr.f32.mxu0 %v991
      %1085 = vmatmul.mubr.f32.gmra.mxu0 %v939
      %v1086 = vpop.f32.mrf.mxu0
      %v1087 = vadd.f32 %v978, %v1086
      %v1088 = vpop.f32.mrf.mxu0
      %1089 = vmatprep.mubr.f32.mxu0 %v994
      %1090 = vmatmul.mubr.f32.gmra.mxu0 %v941
      %v1091 = vpop.f32.mrf.mxu0
      %v1092 = vadd.f32 %v978, %v1091
      %v1093 = vpop.f32.mrf.mxu0
      %1094 = vmatprep.mubr.f32.mxu0 %v997
      %1095 = vmatmul.mubr.f32.gmra.mxu0 %v943
      %v1096 = vpop.f32.mrf.mxu0
      %v1097 = vadd.f32 %v978, %v1096
      %v1098 = vpop.f32.mrf.mxu0
      %1099 = vmatprep.mubr.f32.mxu0 %v1000
      %1100 = vmatmul.mubr.f32.gmra.mxu0 %v945
      %v1101 = vpop.f32.mrf.mxu0
      %v1102 = vadd.f32 %v978, %v1101
      %v1103 = vpop.f32.mrf.mxu0
      %1104 = vmatprep.mubr.f32.mxu0 %v1003
      %1105 = vmatmul.mubr.f32.gmra.mxu0 %v947
      %v1106 = vpop.f32.mrf.mxu0
      %v1107 = vadd.f32 %v978, %v1106
      %v1108 = vpop.f32.mrf.mxu0
      %1109 = vdwg.mxu0
      %v1110 = vmax.f32 %v1072, -30.0
      %v1111 = vmax.f32 %v1077, -30.0
      %v1112 = vmax.f32 %v1082, -30.0
      %v1113 = vmax.f32 %v1087, -30.0
      %v1114 = vmax.f32 %v1092, -30.0
      %v1115 = vmax.f32 %v1097, -30.0
      %v1116 = vmax.f32 %v1102, -30.0
      %v1117 = vmax.f32 %v1107, -30.0
      %v1118 = vmin.f32 %v1110, 20.0
      %v1119 = vmin.f32 %v1111, 20.0
      %v1120 = vmin.f32 %v1112, 20.0
      %v1121 = vmin.f32 %v1113, 20.0
      %v1122 = vmin.f32 %v1114, 20.0
      %v1123 = vmin.f32 %v1115, 20.0
      %v1124 = vmin.f32 %v1116, 20.0
      %v1125 = vmin.f32 %v1117, 20.0
      %v1126 = vmul.f32 %v1118, 0.5
      %v1127 = vmul.f32 %v1119, 0.5
      %v1128 = vmul.f32 %v1120, 0.5
      %v1129 = vmul.f32 %v1121, 0.5
      %v1130 = vmul.f32 %v1122, 0.5
      %v1131 = vmul.f32 %v1123, 0.5
      %v1132 = vmul.f32 %v1124, 0.5
      %v1133 = vmul.f32 %v1125, 0.5
      %v1134 = vmul.f32 %v1126, 1.442695
      %v1135 = vpow.pop %v1134
      %v1136 = vmul.f32 %v1127, 1.442695
      %v1137 = vpow.pop %v1136
      %v1138 = vmul.f32 %v1128, 1.442695
      %v1139 = vpow.pop %v1138
      %v1140 = vmul.f32 %v1129, 1.442695
      %v1141 = vpow.pop %v1140
      %v1142 = vmul.f32 %v1130, 1.442695
      %v1143 = vpow.pop %v1142
      %v1144 = vmul.f32 %v1131, 1.442695
      %v1145 = vpow.pop %v1144
      %v1146 = vmul.f32 %v1132, 1.442695
      %v1147 = vpow.pop %v1146
      %v1148 = vmul.f32 %v1133, 1.442695
      %v1149 = vpow.pop %v1148
      %v1150 = vld [vmem:[%s915] sm:$0xff]
      %v1151 = vld [vmem:[%s915 + $0x8] sm:$0xff]
      %v1152 = vld [vmem:[%s915 + $0x10] sm:$0xff]
      %v1153 = vld [vmem:[%s915 + $0x18] sm:$0xff]
      %v1154 = vld [vmem:[%s915 + $0x20] sm:$0xff]
      %v1155 = vld [vmem:[%s915 + $0x28] sm:$0xff]
      %v1156 = vld [vmem:[%s915 + $0x30] sm:$0xff]
      %v1157 = vld [vmem:[%s915 + $0x38] sm:$0xff]
      %1166 = vrot.lane.b32.xlu0 %v1150, 4
      %v1167 = vpop.permute.xlu0 %1166
      %1168 = vrot.lane.b32.xlu0 %v1151, 4
      %v1169 = vpop.permute.xlu0 %1168
      %1170 = vrot.lane.b32.xlu0 %v1152, 4
      %v1171 = vpop.permute.xlu0 %1170
      %1172 = vrot.lane.b32.xlu0 %v1153, 4
      %v1173 = vpop.permute.xlu0 %1172
      %1174 = vrot.lane.b32.xlu0 %v1154, 4
      %v1175 = vpop.permute.xlu0 %1174
      %1176 = vrot.lane.b32.xlu0 %v1155, 4
      %v1177 = vpop.permute.xlu0 %1176
      %1178 = vrot.lane.b32.xlu0 %v1156, 4
      %v1179 = vpop.permute.xlu0 %1178
      %1180 = vrot.lane.b32.xlu0 %v1157, 4
      %v1181 = vpop.permute.xlu0 %1180
      %v1190 = vmul.f32 %v1135, %v1167
      %v1191 = vmul.f32 %v1137, %v1169
      %v1192 = vmul.f32 %v1139, %v1171
      %v1193 = vmul.f32 %v1141, %v1173
      %v1194 = vmul.f32 %v1143, %v1175
      %v1195 = vmul.f32 %v1145, %v1177
      %v1196 = vmul.f32 %v1147, %v1179
      %v1197 = vmul.f32 %v1149, %v1181
      %1206 = vrot.lane.b32.xlu0 %v1190, 124
      %v1207 = vpop.permute.xlu0 %1206
      %1208 = vrot.lane.b32.xlu0 %v1191, 124
      %v1209 = vpop.permute.xlu0 %1208
      %1210 = vrot.lane.b32.xlu0 %v1192, 124
      %v1211 = vpop.permute.xlu0 %1210
      %1212 = vrot.lane.b32.xlu0 %v1193, 124
      %v1213 = vpop.permute.xlu0 %1212
      %1214 = vrot.lane.b32.xlu0 %v1194, 124
      %v1215 = vpop.permute.xlu0 %1214
      %1216 = vrot.lane.b32.xlu0 %v1195, 124
      %v1217 = vpop.permute.xlu0 %1216
      %1218 = vrot.lane.b32.xlu0 %v1196, 124
      %v1219 = vpop.permute.xlu0 %1218
      %1220 = vrot.lane.b32.xlu0 %v1197, 124
      %v1221 = vpop.permute.xlu0 %1220
      %v1230 = vadd.f32 %v1072, %v1207
      %v1231 = vadd.f32 %v1077, %v1209
      %v1232 = vadd.f32 %v1082, %v1211
      %v1233 = vadd.f32 %v1087, %v1213
      %v1234 = vadd.f32 %v1092, %v1215
      %v1235 = vadd.f32 %v1097, %v1217
      %v1236 = vadd.f32 %v1102, %v1219
      %v1237 = vadd.f32 %v1107, %v1221
      %v1238 = vmul.f32 %v1230, 0.18215
      %v1239 = vmul.f32 %v1231, 0.18215
      %v1240 = vmul.f32 %v1232, 0.18215
      %v1241 = vmul.f32 %v1233, 0.18215
      %v1242 = vmul.f32 %v1234, 0.18215
      %v1243 = vmul.f32 %v1235, 0.18215
      %v1244 = vmul.f32 %v1236, 0.18215
      %v1245 = vmul.f32 %v1237, 0.18215
      %v1246 = vld [vmem:[%s923] sm:$0x1]
      %v1247 = vld [vmem:[%s920] sm:$0xff]
      %v1248 = vld [vmem:[%s920 + $0x8] sm:$0xff]
      %v1249 = vld [vmem:[%s920 + $0x10] sm:$0xff]
      %v1250 = vld [vmem:[%s920 + $0x18] sm:$0xff]
      %v1251 = vld [vmem:[%s920 + $0x20] sm:$0xff]
      %v1252 = vld [vmem:[%s920 + $0x28] sm:$0xff]
      %v1253 = vld [vmem:[%s920 + $0x30] sm:$0xff]
      %v1254 = vld [vmem:[%s920 + $0x38] sm:$0xff]
      %v1256 = vlaneseq
      %v1257 = vshrl.u32 %v1256, 7
      %v1258 = vsub.s32 0, %v1257
      %v1259 = vrot.slane %v1246, %v1258
      %1260 = vset.pattern.permute.xlu0 0
      %1261 = vperm.xlu0 %1260, %v1259
      %v1262 = vpop.permute.xlu0 %1261
      %v1264 = vmul.f32 %v1262, %v1238
      %v1265 = vmul.f32 %v1262, %v1239
      %v1266 = vmul.f32 %v1262, %v1240
      %v1267 = vmul.f32 %v1262, %v1241
      %v1268 = vmul.f32 %v1262, %v1242
      %v1269 = vmul.f32 %v1262, %v1243
      %v1270 = vmul.f32 %v1262, %v1244
      %v1271 = vmul.f32 %v1262, %v1245
      %1272 = vset.pattern.permute.xlu0 1
      %1273 = vperm.xlu0 %1272, %v1259
      %v1274 = vpop.permute.xlu0 %1273
      %v1276 = vmul.f32 %v1274, %v1247
      %v1277 = vmul.f32 %v1274, %v1248
      %v1278 = vmul.f32 %v1274, %v1249
      %v1279 = vmul.f32 %v1274, %v1250
      %v1280 = vmul.f32 %v1274, %v1251
      %v1281 = vmul.f32 %v1274, %v1252
      %v1282 = vmul.f32 %v1274, %v1253
      %v1283 = vmul.f32 %v1274, %v1254
      %v1284 = vadd.f32 %v1264, %v1276
      %v1285 = vadd.f32 %v1265, %v1277
      %v1286 = vadd.f32 %v1266, %v1278
      %v1287 = vadd.f32 %v1267, %v1279
      %v1288 = vadd.f32 %v1268, %v1280
      %v1289 = vadd.f32 %v1269, %v1281
      %v1290 = vadd.f32 %v1270, %v1282
      %v1291 = vadd.f32 %v1271, %v1283
      %v1292 = vld [vmem:[%s905] sm:$0x1]
      %v1293 = vld [vmem:[%s9] sm:$0xff]
      %v1294 = vld [vmem:[%s9 + $0x8] sm:$0xff]
      %v1295 = vld [vmem:[%s9 + $0x10] sm:$0xff]
      %v1296 = vld [vmem:[%s9 + $0x18] sm:$0xff]
      %v1297 = vld [vmem:[%s9 + $0x20] sm:$0xff]
      %v1298 = vld [vmem:[%s9 + $0x28] sm:$0xff]
      %v1299 = vld [vmem:[%s9 + $0x30] sm:$0xff]
      %v1300 = vld [vmem:[%s9 + $0x38] sm:$0xff]
      %v1301 = vld [vmem:[%s9 + $0x40] sm:$0xff]
      %v1302 = vld [vmem:[%s9 + $0x48] sm:$0xff]
      %v1303 = vld [vmem:[%s9 + $0x50] sm:$0xff]
      %v1304 = vld [vmem:[%s9 + $0x58] sm:$0xff]
      %v1305 = vld [vmem:[%s10] sm:$0xf]
      %v1307 = vlaneseq
      %v1308 = vshrl.u32 %v1307, 7
      %v1309 = vsub.s32 0, %v1308
      %v1310 = vrot.slane %v1305, %v1309
      %v1311 = vlaneseq
      %v1312 = vshrl.u32 %v1311, 7
      %v1313 = vsub.s32 1, %v1312
      %v1314 = vrot.slane %v1305, %v1313
      %v1315 = vlaneseq
      %v1316 = vshrl.u32 %v1315, 7
      %v1317 = vsub.s32 2, %v1316
      %v1318 = vrot.slane %v1305, %v1317
      %v1319 = vlaneseq
      %v1320 = vshrl.u32 %v1319, 7
      %v1321 = vsub.s32 3, %v1320
      %v1322 = vrot.slane %v1305, %v1321
      %vm1327 = vcmask 195584
      %v1329 = vsel %vm1327, %v1292, 0
      %1331 = vmatprep.subr.mxu0 0.0
      %1332 = vmatpush1.msra.mxu0 0.0
      %1333 = vmatprep.subr.mxu0 0.0
      %1334 = vmatpush1.msra.mxu0 0.0
      %1335 = vmatprep.subr.mxu0 0.0
      %1336 = vmatpush1.msra.mxu0 0.0
      %1337 = vmatprep.subr.mxu0 0.0
      %1338 = vmatpush1.msra.mxu0 0.0
      %1339 = vmatprep.subr.mxu0 0.0
      %1340 = vmatpush1.msra.mxu0 0.0
      %1341 = vmatprep.subr.mxu0 0.0
      %1342 = vmatpush1.msra.mxu0 0.0
      %1343 = vmatprep.subr.mxu0 0.0
      %1344 = vmatpush1.msra.mxu0 0.0
      %1345 = vmatprep.subr.mxu0 0.0
      %1346 = vmatpush1.msra.mxu0 0.0
      %1347 = vmatprep.subr.mxu0 0.0
      %1348 = vmatpush1.msra.mxu0 0.0
      %1349 = vmatprep.subr.mxu0 0.0
      %1350 = vmatpush1.msra.mxu0 0.0
      %1351 = vmatprep.subr.mxu0 0.0
      %1352 = vmatpush1.msra.mxu0 0.0
      %1353 = vmatprep.subr.mxu0 0.0
      %1354 = vmatpush1.msra.mxu0 0.0
      %1355 = vmatprep.subr.mxu0 0.0
      %1356 = vmatpush1.msra.mxu0 0.0
      %1357 = vmatprep.subr.mxu0 %v1302
      %1358 = vmatpush1.msra.mxu0 %v1301
      %1359 = vmatprep.subr.mxu0 %v1298
      %1360 = vmatpush1.msra.mxu0 %v1297
      %1361 = vmatprep.subr.mxu0 %v1294
      %1362 = vmatpush1.msra.mxu0 %v1293
      %1363 = vmatprep.subr.mxu0 0.0
      %1364 = vmatpush2.msra.mxu0 0.0
      %1365 = vmatprep.subr.mxu0 0.0
      %1366 = vmatpush2.msra.mxu0 0.0
      %1367 = vmatprep.subr.mxu0 0.0
      %1368 = vmatpush2.msra.mxu0 0.0
      %1369 = vmatprep.subr.mxu0 0.0
      %1370 = vmatpush2.msra.mxu0 0.0
      %1371 = vmatprep.subr.mxu0 0.0
      %1372 = vmatpush2.msra.mxu0 0.0
      %1373 = vmatprep.subr.mxu0 0.0
      %1374 = vmatpush2.msra.mxu0 0.0
      %1375 = vmatprep.subr.mxu0 0.0
      %1376 = vmatpush2.msra.mxu0 0.0
      %1377 = vmatprep.subr.mxu0 0.0
      %1378 = vmatpush2.msra.mxu0 0.0
      %1379 = vmatprep.subr.mxu0 0.0
      %1380 = vmatpush2.msra.mxu0 0.0
      %1381 = vmatprep.subr.mxu0 0.0
      %1382 = vmatpush2.msra.mxu0 0.0
      %1383 = vmatprep.subr.mxu0 0.0
      %1384 = vmatpush2.msra.mxu0 0.0
      %1385 = vmatprep.subr.mxu0 0.0
      %1386 = vmatpush2.msra.mxu0 0.0
      %1387 = vmatprep.subr.mxu0 0.0
      %1388 = vmatpush2.msra.mxu0 0.0
      %1389 = vmatprep.subr.mxu0 0.0
      %1390 = vmatpush2.msra.mxu0 0.0
      %1391 = vmatprep.subr.mxu0 0.0
      %1392 = vmatpush2.msra.mxu0 0.0
      %1393 = vmatprep.subr.mxu0 0.0
      %1394 = vmatpush2.msra.mxu0 0.0
      %1395 = vmatprep.mubr.f32.mxu0 0.0
      %1396 = vmatmul.mubr.f32.gmra.mxu0 %v1329
      %v1397 = vpop.f32.mrf.mxu0
      %v1398 = vadd.f32 %v1310, %v1397
      %v1399 = vpop.f32.mrf.mxu0
      %v1400 = vadd.f32 %v1314, %v1399
      %1401 = vdwg.mxu0
      %1402 = vmatprep.subr.mxu0 0.0
      %1403 = vmatpush1.msra.mxu0 0.0
      %1404 = vmatprep.subr.mxu0 0.0
      %1405 = vmatpush1.msra.mxu0 0.0
      %1406 = vmatprep.subr.mxu0 0.0
      %1407 = vmatpush1.msra.mxu0 0.0
      %1408 = vmatprep.subr.mxu0 0.0
      %1409 = vmatpush1.msra.mxu0 0.0
      %1410 = vmatprep.subr.mxu0 0.0
      %1411 = vmatpush1.msra.mxu0 0.0
      %1412 = vmatprep.subr.mxu0 0.0
      %1413 = vmatpush1.msra.mxu0 0.0
      %1414 = vmatprep.subr.mxu0 0.0
      %1415 = vmatpush1.msra.mxu0 0.0
      %1416 = vmatprep.subr.mxu0 0.0
      %1417 = vmatpush1.msra.mxu0 0.0
      %1418 = vmatprep.subr.mxu0 0.0
      %1419 = vmatpush1.msra.mxu0 0.0
      %1420 = vmatprep.subr.mxu0 0.0
      %1421 = vmatpush1.msra.mxu0 0.0
      %1422 = vmatprep.subr.mxu0 0.0
      %1423 = vmatpush1.msra.mxu0 0.0
      %1424 = vmatprep.subr.mxu0 0.0
      %1425 = vmatpush1.msra.mxu0 0.0
      %1426 = vmatprep.subr.mxu0 0.0
      %1427 = vmatpush1.msra.mxu0 0.0
      %1428 = vmatprep.subr.mxu0 %v1304
      %1429 = vmatpush1.msra.mxu0 %v1303
      %1430 = vmatprep.subr.mxu0 %v1300
      %1431 = vmatpush1.msra.mxu0 %v1299
      %1432 = vmatprep.subr.mxu0 %v1296
      %1433 = vmatpush1.msra.mxu0 %v1295
      %1434 = vmatprep.subr.mxu0 0.0
      %1435 = vmatpush2.msra.mxu0 0.0
      %1436 = vmatprep.subr.mxu0 0.0
      %1437 = vmatpush2.msra.mxu0 0.0
      %1438 = vmatprep.subr.mxu0 0.0
      %1439 = vmatpush2.msra.mxu0 0.0
      %1440 = vmatprep.subr.mxu0 0.0
      %1441 = vmatpush2.msra.mxu0 0.0
      %1442 = vmatprep.subr.mxu0 0.0
      %1443 = vmatpush2.msra.mxu0 0.0
      %1444 = vmatprep.subr.mxu0 0.0
      %1445 = vmatpush2.msra.mxu0 0.0
      %1446 = vmatprep.subr.mxu0 0.0
      %1447 = vmatpush2.msra.mxu0 0.0
      %1448 = vmatprep.subr.mxu0 0.0
      %1449 = vmatpush2.msra.mxu0 0.0
      %1450 = vmatprep.subr.mxu0 0.0
      %1451 = vmatpush2.msra.mxu0 0.0
      %1452 = vmatprep.subr.mxu0 0.0
      %1453 = vmatpush2.msra.mxu0 0.0
      %1454 = vmatprep.subr.mxu0 0.0
      %1455 = vmatpush2.msra.mxu0 0.0
      %1456 = vmatprep.subr.mxu0 0.0
      %1457 = vmatpush2.msra.mxu0 0.0
      %1458 = vmatprep.subr.mxu0 0.0
      %1459 = vmatpush2.msra.mxu0 0.0
      %1460 = vmatprep.subr.mxu0 0.0
      %1461 = vmatpush2.msra.mxu0 0.0
      %1462 = vmatprep.subr.mxu0 0.0
      %1463 = vmatpush2.msra.mxu0 0.0
      %1464 = vmatprep.subr.mxu0 0.0
      %1465 = vmatpush2.msra.mxu0 0.0
      %1466 = vmatprep.mubr.f32.mxu0 0.0
      %1467 = vmatmul.mubr.f32.gmra.mxu0 %v1329
      %v1468 = vpop.f32.mrf.mxu0
      %v1469 = vadd.f32 %v1318, %v1468
      %v1470 = vpop.f32.mrf.mxu0
      %v1471 = vadd.f32 %v1322, %v1470
      %1472 = vdwg.mxu0
      %v1473 = vxor.u32 %v1398, 2147483648
      %v1474 = vxor.u32 %v1400, 2147483648
      %v1475 = vxor.u32 %v1469, 2147483648
      %v1476 = vxor.u32 %v1471, 2147483648
      %v1477 = vmul.f32 %v1473, 1.442695
      %v1478 = vpow.pop %v1477
      %v1479 = vmul.f32 %v1474, 1.442695
      %v1480 = vpow.pop %v1479
      %v1481 = vmul.f32 %v1475, 1.442695
      %v1482 = vpow.pop %v1481
      %v1483 = vmul.f32 %v1476, 1.442695
      %v1484 = vpow.pop %v1483
      %v1485 = vadd.f32 %v1478, 1.0
      %v1486 = vadd.f32 %v1480, 1.0
      %v1487 = vadd.f32 %v1482, 1.0
      %v1488 = vadd.f32 %v1484, 1.0
      %v1489 = vrcp.pop %v1485
      %v1490 = vmul.f32 1.0, %v1489
      %v1491 = vrcp.pop %v1486
      %v1492 = vmul.f32 1.0, %v1491
      %v1493 = vrcp.pop %v1487
      %v1494 = vmul.f32 1.0, %v1493
      %v1495 = vrcp.pop %v1488
      %v1496 = vmul.f32 1.0, %v1495
      %v1497 = vmul.f32 %v1398, %v1490
      %v1498 = vmul.f32 %v1400, %v1492
      %v1499 = vmul.f32 %v1469, %v1494
      %v1500 = vmul.f32 %v1471, %v1496
      %vm1501 = vcmask 1040384
      %v1502 = vsel %vm1501, %v1497, 0.0
      %v1503 = vsel %vm1501, %v1498, 0.0
      %v1504 = vadd.f32 %v1502, %v1503
      %v1505 = vsel %vm1501, %v1499, 0.0
      %v1506 = vadd.f32 %v1504, %v1505
      %v1507 = vsel %vm1501, %v1500, 0.0
      %v1508 = vadd.f32 %v1506, %v1507
      %1509 = vadd.xlane.f32.xlu0 %v1508
      %v1510 = vpop.xlane.xlu0 %1509
      %v1511 = vrcp.pop 512.0
      %v1512 = vmul.f32 %v1510, %v1511
      %v1513 = vsub.f32 %v1497, %v1512
      %v1514 = vsub.f32 %v1498, %v1512
      %v1515 = vsub.f32 %v1499, %v1512
      %v1516 = vsub.f32 %v1500, %v1512
      %v1517 = vmul.f32 %v1513, %v1513
      %v1518 = vmul.f32 %v1514, %v1514
      %v1519 = vmul.f32 %v1515, %v1515
      %v1520 = vmul.f32 %v1516, %v1516
      %v1521 = vsel %vm1501, %v1517, 0.0
      %v1522 = vsel %vm1501, %v1518, 0.0
      %v1523 = vadd.f32 %v1521, %v1522
      %v1524 = vsel %vm1501, %v1519, 0.0
      %v1525 = vadd.f32 %v1523, %v1524
      %v1526 = vsel %vm1501, %v1520, 0.0
      %v1527 = vadd.f32 %v1525, %v1526
      %1528 = vadd.xlane.f32.xlu0 %v1527
      %v1529 = vpop.xlane.xlu0 %1528
      %v1530 = vmul.f32 %v1529, %v1511
      %v1531 = vadd.f32 %v1530, 1e-05
      %v1532 = vrsqrt.pop %v1531
      %v1533 = vmul.f32 %v1513, %v1532
      %v1534 = vmul.f32 %v1514, %v1532
      %v1535 = vmul.f32 %v1515, %v1532
      %v1536 = vmul.f32 %v1516, %v1532
      %v1537 = vld [vmem:[%s11] sm:$0xf]
      %v1539 = vlaneseq
      %v1540 = vshrl.u32 %v1539, 7
      %v1541 = vsub.s32 0, %v1540
      %v1542 = vrot.slane %v1537, %v1541
      %v1543 = vlaneseq
      %v1544 = vshrl.u32 %v1543, 7
      %v1545 = vsub.s32 1, %v1544
      %v1546 = vrot.slane %v1537, %v1545
      %v1547 = vlaneseq
      %v1548 = vshrl.u32 %v1547, 7
      %v1549 = vsub.s32 2, %v1548
      %v1550 = vrot.slane %v1537, %v1549
      %v1551 = vlaneseq
      %v1552 = vshrl.u32 %v1551, 7
      %v1553 = vsub.s32 3, %v1552
      %v1554 = vrot.slane %v1537, %v1553
      %v1559 = vmul.f32 %v1533, %v1542
      %v1560 = vmul.f32 %v1534, %v1546
      %v1561 = vmul.f32 %v1535, %v1550
      %v1562 = vmul.f32 %v1536, %v1554
      %v1563 = vld [vmem:[%s12] sm:$0xf]
      %v1565 = vlaneseq
      %v1566 = vshrl.u32 %v1565, 7
      %v1567 = vsub.s32 0, %v1566
      %v1568 = vrot.slane %v1563, %v1567
      %v1569 = vlaneseq
      %v1570 = vshrl.u32 %v1569, 7
      %v1571 = vsub.s32 1, %v1570
      %v1572 = vrot.slane %v1563, %v1571
      %v1573 = vlaneseq
      %v1574 = vshrl.u32 %v1573, 7
      %v1575 = vsub.s32 2, %v1574
      %v1576 = vrot.slane %v1563, %v1575
      %v1577 = vlaneseq
      %v1578 = vshrl.u32 %v1577, 7
      %v1579 = vsub.s32 3, %v1578
      %v1580 = vrot.slane %v1563, %v1579
      %v1585 = vadd.f32 %v1559, %v1568
      %v1586 = vadd.f32 %v1560, %v1572
      %v1587 = vadd.f32 %v1561, %v1576
      %v1588 = vadd.f32 %v1562, %v1580
      %v1589 = vld [vmem:[%s13] sm:$0xff]
      %v1590 = vld [vmem:[%s13 + $0x8] sm:$0xff]
      %v1591 = vld [vmem:[%s13 + $0x10] sm:$0xff]
      %v1592 = vld [vmem:[%s13 + $0x18] sm:$0xff]
      %v1593 = vld [vmem:[%s13 + $0x20] sm:$0xff]
      %v1594 = vld [vmem:[%s13 + $0x28] sm:$0xff]
      %v1595 = vld [vmem:[%s13 + $0x30] sm:$0xff]
      %v1596 = vld [vmem:[%s13 + $0x38] sm:$0xff]
      %v1597 = vld [vmem:[%s13 + $0x40] sm:$0xff]
      %v1598 = vld [vmem:[%s13 + $0x48] sm:$0xff]
      %v1599 = vld [vmem:[%s13 + $0x50] sm:$0xff]
      %v1600 = vld [vmem:[%s13 + $0x58] sm:$0xff]
      %v1601 = vld [vmem:[%s13 + $0x60] sm:$0xff]
      %v1602 = vld [vmem:[%s13 + $0x68] sm:$0xff]
      %v1603 = vld [vmem:[%s13 + $0x70] sm:$0xff]
      %v1604 = vld [vmem:[%s13 + $0x78] sm:$0xff]
      %v1605 = vld [vmem:[%s13 + $0x80] sm:$0xff]
      %v1606 = vld [vmem:[%s13 + $0x88] sm:$0xff]
      %v1607 = vld [vmem:[%s13 + $0x90] sm:$0xff]
      %v1608 = vld [vmem:[%s13 + $0x98] sm:$0xff]
      %v1609 = vld [vmem:[%s13 + $0xa0] sm:$0xff]
      %v1610 = vld [vmem:[%s13 + $0xa8] sm:$0xff]
      %v1611 = vld [vmem:[%s13 + $0xb0] sm:$0xff]
      %v1612 = vld [vmem:[%s13 + $0xb8] sm:$0xff]
      %v1613 = vld [vmem:[%s13 + $0xc0] sm:$0xff]
      %v1614 = vld [vmem:[%s13 + $0xc8] sm:$0xff]
      %v1615 = vld [vmem:[%s13 + $0xd0] sm:$0xff]
      %v1616 = vld [vmem:[%s13 + $0xd8] sm:$0xff]
      %v1617 = vld [vmem:[%s13 + $0xe0] sm:$0xff]
      %v1618 = vld [vmem:[%s13 + $0xe8] sm:$0xff]
      %v1619 = vld [vmem:[%s13 + $0xf0] sm:$0xff]
      %v1620 = vld [vmem:[%s13 + $0xf8] sm:$0xff]
      %v1621 = vld [vmem:[%s13 + $0x100] sm:$0xff]
      %v1622 = vld [vmem:[%s13 + $0x108] sm:$0xff]
      %v1623 = vld [vmem:[%s13 + $0x110] sm:$0xff]
      %v1624 = vld [vmem:[%s13 + $0x118] sm:$0xff]
      %v1625 = vld [vmem:[%s13 + $0x120] sm:$0xff]
      %v1626 = vld [vmem:[%s13 + $0x128] sm:$0xff]
      %v1627 = vld [vmem:[%s13 + $0x130] sm:$0xff]
      %v1628 = vld [vmem:[%s13 + $0x138] sm:$0xff]
      %v1629 = vld [vmem:[%s13 + $0x140] sm:$0xff]
      %v1630 = vld [vmem:[%s13 + $0x148] sm:$0xff]
      %v1631 = vld [vmem:[%s13 + $0x150] sm:$0xff]
      %v1632 = vld [vmem:[%s13 + $0x158] sm:$0xff]
      %v1633 = vld [vmem:[%s13 + $0x160] sm:$0xff]
      %v1634 = vld [vmem:[%s13 + $0x168] sm:$0xff]
      %v1635 = vld [vmem:[%s13 + $0x170] sm:$0xff]
      %v1636 = vld [vmem:[%s13 + $0x178] sm:$0xff]
      %v1637 = vld [vmem:[%s13 + $0x180] sm:$0xff]
      %v1638 = vld [vmem:[%s13 + $0x188] sm:$0xff]
      %v1639 = vld [vmem:[%s13 + $0x190] sm:$0xff]
      %v1640 = vld [vmem:[%s13 + $0x198] sm:$0xff]
      %v1641 = vld [vmem:[%s13 + $0x1a0] sm:$0xff]
      %v1642 = vld [vmem:[%s13 + $0x1a8] sm:$0xff]
      %v1643 = vld [vmem:[%s13 + $0x1b0] sm:$0xff]
      %v1644 = vld [vmem:[%s13 + $0x1b8] sm:$0xff]
      %v1645 = vld [vmem:[%s13 + $0x1c0] sm:$0xff]
      %v1646 = vld [vmem:[%s13 + $0x1c8] sm:$0xff]
      %v1647 = vld [vmem:[%s13 + $0x1d0] sm:$0xff]
      %v1648 = vld [vmem:[%s13 + $0x1d8] sm:$0xff]
      %v1649 = vld [vmem:[%s13 + $0x1e0] sm:$0xff]
      %v1650 = vld [vmem:[%s13 + $0x1e8] sm:$0xff]
      %v1651 = vld [vmem:[%s13 + $0x1f0] sm:$0xff]
      %v1652 = vld [vmem:[%s13 + $0x1f8] sm:$0xff]
      %v1653 = vld [vmem:[%s13 + $0x200] sm:$0xff]
      %v1654 = vld [vmem:[%s13 + $0x208] sm:$0xff]
      %v1655 = vld [vmem:[%s13 + $0x210] sm:$0xff]
      %v1656 = vld [vmem:[%s13 + $0x218] sm:$0xff]
      %v1657 = vld [vmem:[%s13 + $0x220] sm:$0xff]
      %v1658 = vld [vmem:[%s13 + $0x228] sm:$0xff]
      %v1659 = vld [vmem:[%s13 + $0x230] sm:$0xff]
      %v1660 = vld [vmem:[%s13 + $0x238] sm:$0xff]
      %v1661 = vld [vmem:[%s13 + $0x240] sm:$0xff]
      %v1662 = vld [vmem:[%s13 + $0x248] sm:$0xff]
      %v1663 = vld [vmem:[%s13 + $0x250] sm:$0xff]
      %v1664 = vld [vmem:[%s13 + $0x258] sm:$0xff]
      %v1665 = vld [vmem:[%s13 + $0x260] sm:$0xff]
      %v1666 = vld [vmem:[%s13 + $0x268] sm:$0xff]
      %v1667 = vld [vmem:[%s13 + $0x270] sm:$0xff]
      %v1668 = vld [vmem:[%s13 + $0x278] sm:$0xff]
      %v1669 = vld [vmem:[%s13 + $0x280] sm:$0xff]
      %v1670 = vld [vmem:[%s13 + $0x288] sm:$0xff]
      %v1671 = vld [vmem:[%s13 + $0x290] sm:$0xff]
      %v1672 = vld [vmem:[%s13 + $0x298] sm:$0xff]
      %v1673 = vld [vmem:[%s13 + $0x2a0] sm:$0xff]
      %v1674 = vld [vmem:[%s13 + $0x2a8] sm:$0xff]
      %v1675 = vld [vmem:[%s13 + $0x2b0] sm:$0xff]
      %v1676 = vld [vmem:[%s13 + $0x2b8] sm:$0xff]
      %v1677 = vld [vmem:[%s13 + $0x2c0] sm:$0xff]
      %v1678 = vld [vmem:[%s13 + $0x2c8] sm:$0xff]
      %v1679 = vld [vmem:[%s13 + $0x2d0] sm:$0xff]
      %v1680 = vld [vmem:[%s13 + $0x2d8] sm:$0xff]
      %v1681 = vld [vmem:[%s13 + $0x2e0] sm:$0xff]
      %v1682 = vld [vmem:[%s13 + $0x2e8] sm:$0xff]
      %v1683 = vld [vmem:[%s13 + $0x2f0] sm:$0xff]
      %v1684 = vld [vmem:[%s13 + $0x2f8] sm:$0xff]
      %v1685 = vld [vmem:[%s13 + $0x300] sm:$0xff]
      %v1686 = vld [vmem:[%s13 + $0x308] sm:$0xff]
      %v1687 = vld [vmem:[%s13 + $0x310] sm:$0xff]
      %v1688 = vld [vmem:[%s13 + $0x318] sm:$0xff]
      %v1689 = vld [vmem:[%s13 + $0x320] sm:$0xff]
      %v1690 = vld [vmem:[%s13 + $0x328] sm:$0xff]
      %v1691 = vld [vmem:[%s13 + $0x330] sm:$0xff]
      %v1692 = vld [vmem:[%s13 + $0x338] sm:$0xff]
      %v1693 = vld [vmem:[%s13 + $0x340] sm:$0xff]
      %v1694 = vld [vmem:[%s13 + $0x348] sm:$0xff]
      %v1695 = vld [vmem:[%s13 + $0x350] sm:$0xff]
      %v1696 = vld [vmem:[%s13 + $0x358] sm:$0xff]
      %v1697 = vld [vmem:[%s13 + $0x360] sm:$0xff]
      %v1698 = vld [vmem:[%s13 + $0x368] sm:$0xff]
      %v1699 = vld [vmem:[%s13 + $0x370] sm:$0xff]
      %v1700 = vld [vmem:[%s13 + $0x378] sm:$0xff]
      %v1701 = vld [vmem:[%s13 + $0x380] sm:$0xff]
      %v1702 = vld [vmem:[%s13 + $0x388] sm:$0xff]
      %v1703 = vld [vmem:[%s13 + $0x390] sm:$0xff]
      %v1704 = vld [vmem:[%s13 + $0x398] sm:$0xff]
      %v1705 = vld [vmem:[%s13 + $0x3a0] sm:$0xff]
      %v1706 = vld [vmem:[%s13 + $0x3a8] sm:$0xff]
      %v1707 = vld [vmem:[%s13 + $0x3b0] sm:$0xff]
      %v1708 = vld [vmem:[%s13 + $0x3b8] sm:$0xff]
      %v1709 = vld [vmem:[%s13 + $0x3c0] sm:$0xff]
      %v1710 = vld [vmem:[%s13 + $0x3c8] sm:$0xff]
      %v1711 = vld [vmem:[%s13 + $0x3d0] sm:$0xff]
      %v1712 = vld [vmem:[%s13 + $0x3d8] sm:$0xff]
      %v1713 = vld [vmem:[%s13 + $0x3e0] sm:$0xff]
      %v1714 = vld [vmem:[%s13 + $0x3e8] sm:$0xff]
      %v1715 = vld [vmem:[%s13 + $0x3f0] sm:$0xff]
      %v1716 = vld [vmem:[%s13 + $0x3f8] sm:$0xff]
      %v1717 = vld [vmem:[%s14] sm:$0x3]
      %v1719 = vlaneseq
      %v1720 = vshrl.u32 %v1719, 7
      %v1721 = vsub.s32 0, %v1720
      %v1722 = vrot.slane %v1717, %v1721
      %v1723 = vlaneseq
      %v1724 = vshrl.u32 %v1723, 7
      %v1725 = vsub.s32 1, %v1724
      %v1726 = vrot.slane %v1717, %v1725
      %1729 = vmatprep.subr.mxu0 %v1620
      %1730 = vmatpush1.msra.mxu0 %v1619
      %1731 = vmatprep.subr.mxu0 %v1618
      %1732 = vmatpush1.msra.mxu0 %v1617
      %1733 = vmatprep.subr.mxu0 %v1616
      %1734 = vmatpush1.msra.mxu0 %v1615
      %1735 = vmatprep.subr.mxu0 %v1614
      %1736 = vmatpush1.msra.mxu0 %v1613
      %1737 = vmatprep.subr.mxu0 %v1612
      %1738 = vmatpush1.msra.mxu0 %v1611
      %1739 = vmatprep.subr.mxu0 %v1610
      %1740 = vmatpush1.msra.mxu0 %v1609
      %1741 = vmatprep.subr.mxu0 %v1608
      %1742 = vmatpush1.msra.mxu0 %v1607
      %1743 = vmatprep.subr.mxu0 %v1606
      %1744 = vmatpush1.msra.mxu0 %v1605
      %1745 = vmatprep.subr.mxu0 %v1604
      %1746 = vmatpush1.msra.mxu0 %v1603
      %1747 = vmatprep.subr.mxu0 %v1602
      %1748 = vmatpush1.msra.mxu0 %v1601
      %1749 = vmatprep.subr.mxu0 %v1600
      %1750 = vmatpush1.msra.mxu0 %v1599
      %1751 = vmatprep.subr.mxu0 %v1598
      %1752 = vmatpush1.msra.mxu0 %v1597
      %1753 = vmatprep.subr.mxu0 %v1596
      %1754 = vmatpush1.msra.mxu0 %v1595
      %1755 = vmatprep.subr.mxu0 %v1594
      %1756 = vmatpush1.msra.mxu0 %v1593
      %1757 = vmatprep.subr.mxu0 %v1592
      %1758 = vmatpush1.msra.mxu0 %v1591
      %1759 = vmatprep.subr.mxu0 %v1590
      %1760 = vmatpush1.msra.mxu0 %v1589
      %1761 = vmatprep.subr.mxu0 %v1652
      %1762 = vmatpush2.msra.mxu0 %v1651
      %1763 = vmatprep.subr.mxu0 %v1650
      %1764 = vmatpush2.msra.mxu0 %v1649
      %1765 = vmatprep.subr.mxu0 %v1648
      %1766 = vmatpush2.msra.mxu0 %v1647
      %1767 = vmatprep.subr.mxu0 %v1646
      %1768 = vmatpush2.msra.mxu0 %v1645
      %1769 = vmatprep.subr.mxu0 %v1644
      %1770 = vmatpush2.msra.mxu0 %v1643
      %1771 = vmatprep.subr.mxu0 %v1642
      %1772 = vmatpush2.msra.mxu0 %v1641
      %1773 = vmatprep.subr.mxu0 %v1640
      %1774 = vmatpush2.msra.mxu0 %v1639
      %1775 = vmatprep.subr.mxu0 %v1638
      %1776 = vmatpush2.msra.mxu0 %v1637
      %1777 = vmatprep.subr.mxu0 %v1636
      %1778 = vmatpush2.msra.mxu0 %v1635
      %1779 = vmatprep.subr.mxu0 %v1634
      %1780 = vmatpush2.msra.mxu0 %v1633
      %1781 = vmatprep.subr.mxu0 %v1632
      %1782 = vmatpush2.msra.mxu0 %v1631
      %1783 = vmatprep.subr.mxu0 %v1630
      %1784 = vmatpush2.msra.mxu0 %v1629
      %1785 = vmatprep.subr.mxu0 %v1628
      %1786 = vmatpush2.msra.mxu0 %v1627
      %1787 = vmatprep.subr.mxu0 %v1626
      %1788 = vmatpush2.msra.mxu0 %v1625
      %1789 = vmatprep.subr.mxu0 %v1624
      %1790 = vmatpush2.msra.mxu0 %v1623
      %1791 = vmatprep.subr.mxu0 %v1622
      %1792 = vmatpush2.msra.mxu0 %v1621
      %1793 = vmatprep.mubr.f32.mxu0 %v1586
      %1794 = vmatmul.mubr.f32.gmra.mxu0 %v1585
      %v1795 = vpop.f32.mrf.mxu0
      %v1796 = vadd.f32 %v1722, %v1795
      %v1797 = vpop.f32.mrf.mxu0
      %v1798 = vadd.f32 %v1726, %v1797
      %1799 = vdwg.mxu0
      %1800 = vmatprep.subr.mxu0 %v1684
      %1801 = vmatpush1.msra.mxu0 %v1683
      %1802 = vmatprep.subr.mxu0 %v1682
      %1803 = vmatpush1.msra.mxu0 %v1681
      %1804 = vmatprep.subr.mxu0 %v1680
      %1805 = vmatpush1.msra.mxu0 %v1679
      %1806 = vmatprep.subr.mxu0 %v1678
      %1807 = vmatpush1.msra.mxu0 %v1677
      %1808 = vmatprep.subr.mxu0 %v1676
      %1809 = vmatpush1.msra.mxu0 %v1675
      %1810 = vmatprep.subr.mxu0 %v1674
      %1811 = vmatpush1.msra.mxu0 %v1673
      %1812 = vmatprep.subr.mxu0 %v1672
      %1813 = vmatpush1.msra.mxu0 %v1671
      %1814 = vmatprep.subr.mxu0 %v1670
      %1815 = vmatpush1.msra.mxu0 %v1669
      %1816 = vmatprep.subr.mxu0 %v1668
      %1817 = vmatpush1.msra.mxu0 %v1667
      %1818 = vmatprep.subr.mxu0 %v1666
      %1819 = vmatpush1.msra.mxu0 %v1665
      %1820 = vmatprep.subr.mxu0 %v1664
      %1821 = vmatpush1.msra.mxu0 %v1663
      %1822 = vmatprep.subr.mxu0 %v1662
      %1823 = vmatpush1.msra.mxu0 %v1661
      %1824 = vmatprep.subr.mxu0 %v1660
      %1825 = vmatpush1.msra.mxu0 %v1659
      %1826 = vmatprep.subr.mxu0 %v1658
      %1827 = vmatpush1.msra.mxu0 %v1657
      %1828 = vmatprep.subr.mxu0 %v1656
      %1829 = vmatpush1.msra.mxu0 %v1655
      %1830 = vmatprep.subr.mxu0 %v1654
      %1831 = vmatpush1.msra.mxu0 %v1653
      %1832 = vmatprep.subr.mxu0 %v1716
      %1833 = vmatpush2.msra.mxu0 %v1715
      %1834 = vmatprep.subr.mxu0 %v1714
      %1835 = vmatpush2.msra.mxu0 %v1713
      %1836 = vmatprep.subr.mxu0 %v1712
      %1837 = vmatpush2.msra.mxu0 %v1711
      %1838 = vmatprep.subr.mxu0 %v1710
      %1839 = vmatpush2.msra.mxu0 %v1709
      %1840 = vmatprep.subr.mxu0 %v1708
      %1841 = vmatpush2.msra.mxu0 %v1707
      %1842 = vmatprep.subr.mxu0 %v1706
      %1843 = vmatpush2.msra.mxu0 %v1705
      %1844 = vmatprep.subr.mxu0 %v1704
      %1845 = vmatpush2.msra.mxu0 %v1703
      %1846 = vmatprep.subr.mxu0 %v1702
      %1847 = vmatpush2.msra.mxu0 %v1701
      %1848 = vmatprep.subr.mxu0 %v1700
      %1849 = vmatpush2.msra.mxu0 %v1699
      %1850 = vmatprep.subr.mxu0 %v1698
      %1851 = vmatpush2.msra.mxu0 %v1697
      %1852 = vmatprep.subr.mxu0 %v1696
      %1853 = vmatpush2.msra.mxu0 %v1695
      %1854 = vmatprep.subr.mxu0 %v1694
      %1855 = vmatpush2.msra.mxu0 %v1693
      %1856 = vmatprep.subr.mxu0 %v1692
      %1857 = vmatpush2.msra.mxu0 %v1691
      %1858 = vmatprep.subr.mxu0 %v1690
      %1859 = vmatpush2.msra.mxu0 %v1689
      %1860 = vmatprep.subr.mxu0 %v1688
      %1861 = vmatpush2.msra.mxu0 %v1687
      %1862 = vmatprep.subr.mxu0 %v1686
      %1863 = vmatpush2.msra.mxu0 %v1685
      %1864 = vmatprep.mubr.f32.mxu0 %v1588
      %1865 = vmatmul.mubr.f32.gmra.mxu0 %v1587
      %v1866 = vpop.f32.mrf.mxu0
      %v1867 = vadd.f32 %v1796, %v1866
      %v1868 = vpop.f32.mrf.mxu0
      %v1869 = vadd.f32 %v1798, %v1868
      %1870 = vdwg.mxu0
      %v1871 = vxor.u32 %v1867, 2147483648
      %v1872 = vxor.u32 %v1869, 2147483648
      %v1873 = vmul.f32 %v1871, 1.442695
      %v1874 = vpow.pop %v1873
      %v1875 = vmul.f32 %v1872, 1.442695
      %v1876 = vpow.pop %v1875
      %v1877 = vadd.f32 %v1874, 1.0
      %v1878 = vadd.f32 %v1876, 1.0
      %v1879 = vrcp.pop %v1877
      %v1880 = vmul.f32 1.0, %v1879
      %v1881 = vrcp.pop %v1878
      %v1882 = vmul.f32 1.0, %v1881
      %v1883 = vmul.f32 %v1867, %v1880
      %v1884 = vmul.f32 %v1869, %v1882
      %v1885 = vld [vmem:[%s15] sm:$0xff]
      %v1886 = vld [vmem:[%s15 + $0x8] sm:$0xff]
      %v1887 = vld [vmem:[%s15 + $0x10] sm:$0xff]
      %v1888 = vld [vmem:[%s15 + $0x18] sm:$0xff]
      %v1889 = vld [vmem:[%s15 + $0x20] sm:$0xff]
      %v1890 = vld [vmem:[%s15 + $0x28] sm:$0xff]
      %v1891 = vld [vmem:[%s15 + $0x30] sm:$0xff]
      %v1892 = vld [vmem:[%s15 + $0x38] sm:$0xff]
      %v1893 = vld [vmem:[%s15 + $0x40] sm:$0xff]
      %v1894 = vld [vmem:[%s15 + $0x48] sm:$0xff]
      %v1895 = vld [vmem:[%s15 + $0x50] sm:$0xff]
      %v1896 = vld [vmem:[%s15 + $0x58] sm:$0xff]
      %v1897 = vld [vmem:[%s15 + $0x60] sm:$0xff]
      %v1898 = vld [vmem:[%s15 + $0x68] sm:$0xff]
      %v1899 = vld [vmem:[%s15 + $0x70] sm:$0xff]
      %v1900 = vld [vmem:[%s15 + $0x78] sm:$0xff]
      %v1901 = vld [vmem:[%s15 + $0x80] sm:$0xff]
      %v1902 = vld [vmem:[%s15 + $0x88] sm:$0xff]
      %v1903 = vld [vmem:[%s15 + $0x90] sm:$0xff]
      %v1904 = vld [vmem:[%s15 + $0x98] sm:$0xff]
      %v1905 = vld [vmem:[%s15 + $0xa0] sm:$0xff]
      %v1906 = vld [vmem:[%s15 + $0xa8] sm:$0xff]
      %v1907 = vld [vmem:[%s15 + $0xb0] sm:$0xff]
      %v1908 = vld [vmem:[%s15 + $0xb8] sm:$0xff]
      %v1909 = vld [vmem:[%s15 + $0xc0] sm:$0xff]
      %v1910 = vld [vmem:[%s15 + $0xc8] sm:$0xff]
      %v1911 = vld [vmem:[%s15 + $0xd0] sm:$0xff]
      %v1912 = vld [vmem:[%s15 + $0xd8] sm:$0xff]
      %v1913 = vld [vmem:[%s15 + $0xe0] sm:$0xff]
      %v1914 = vld [vmem:[%s15 + $0xe8] sm:$0xff]
      %v1915 = vld [vmem:[%s15 + $0xf0] sm:$0xff]
      %v1916 = vld [vmem:[%s15 + $0xf8] sm:$0xff]
      %v1917 = vld [vmem:[%s16] sm:$0x1]
      %1918 = vmatprep.subr.mxu0 0.0
      %1919 = vmatpush1.msra.mxu0 %v1900
      %1920 = vmatprep.subr.mxu0 0.0
      %1921 = vmatpush1.msra.mxu0 %v1899
      %1922 = vmatprep.subr.mxu0 0.0
      %1923 = vmatpush1.msra.mxu0 %v1898
      %1924 = vmatprep.subr.mxu0 0.0
      %1925 = vmatpush1.msra.mxu0 %v1897
      %1926 = vmatprep.subr.mxu0 0.0
      %1927 = vmatpush1.msra.mxu0 %v1896
      %1928 = vmatprep.subr.mxu0 0.0
      %1929 = vmatpush1.msra.mxu0 %v1895
      %1930 = vmatprep.subr.mxu0 0.0
      %1931 = vmatpush1.msra.mxu0 %v1894
      %1932 = vmatprep.subr.mxu0 0.0
      %1933 = vmatpush1.msra.mxu0 %v1893
      %1934 = vmatprep.subr.mxu0 0.0
      %1935 = vmatpush1.msra.mxu0 %v1892
      %1936 = vmatprep.subr.mxu0 0.0
      %1937 = vmatpush1.msra.mxu0 %v1891
      %1938 = vmatprep.subr.mxu0 0.0
      %1939 = vmatpush1.msra.mxu0 %v1890
      %1940 = vmatprep.subr.mxu0 0.0
      %1941 = vmatpush1.msra.mxu0 %v1889
      %1942 = vmatprep.subr.mxu0 0.0
      %1943 = vmatpush1.msra.mxu0 %v1888
      %1944 = vmatprep.subr.mxu0 0.0
      %1945 = vmatpush1.msra.mxu0 %v1887
      %1946 = vmatprep.subr.mxu0 0.0
      %1947 = vmatpush1.msra.mxu0 %v1886
      %1948 = vmatprep.subr.mxu0 0.0
      %1949 = vmatpush1.msra.mxu0 %v1885
      %1950 = vmatprep.subr.mxu0 0.0
      %1951 = vmatpush2.msra.mxu0 %v1916
      %1952 = vmatprep.subr.mxu0 0.0
      %1953 = vmatpush2.msra.mxu0 %v1915
      %1954 = vmatprep.subr.mxu0 0.0
      %1955 = vmatpush2.msra.mxu0 %v1914
      %1956 = vmatprep.subr.mxu0 0.0
      %1957 = vmatpush2.msra.mxu0 %v1913
      %1958 = vmatprep.subr.mxu0 0.0
      %1959 = vmatpush2.msra.mxu0 %v1912
      %1960 = vmatprep.subr.mxu0 0.0
      %1961 = vmatpush2.msra.mxu0 %v1911
      %1962 = vmatprep.subr.mxu0 0.0
      %1963 = vmatpush2.msra.mxu0 %v1910
      %1964 = vmatprep.subr.mxu0 0.0
      %1965 = vmatpush2.msra.mxu0 %v1909
      %1966 = vmatprep.subr.mxu0 0.0
      %1967 = vmatpush2.msra.mxu0 %v1908
      %1968 = vmatprep.subr.mxu0 0.0
      %1969 = vmatpush2.msra.mxu0 %v1907
      %1970 = vmatprep.subr.mxu0 0.0
      %1971 = vmatpush2.msra.mxu0 %v1906
      %1972 = vmatprep.subr.mxu0 0.0
      %1973 = vmatpush2.msra.mxu0 %v1905
      %1974 = vmatprep.subr.mxu0 0.0
      %1975 = vmatpush2.msra.mxu0 %v1904
      %1976 = vmatprep.subr.mxu0 0.0
      %1977 = vmatpush2.msra.mxu0 %v1903
      %1978 = vmatprep.subr.mxu0 0.0
      %1979 = vmatpush2.msra.mxu0 %v1902
      %1980 = vmatprep.subr.mxu0 0.0
      %1981 = vmatpush2.msra.mxu0 %v1901
      %1982 = vmatprep.mubr.f32.mxu0 %v1884
      %1983 = vmatmul.mubr.f32.gmra.mxu0 %v1883
      %v1984 = vpop.f32.mrf.mxu0
      %v1985 = vadd.f32 %v1917, %v1984
      %v1986 = vpop.f32.mrf.mxu0
      %1987 = vdwg.mxu0
      %v1988 = vxor.u32 %v1985, 2147483648
      %v1989 = vmul.f32 %v1988, 1.442695
      %v1990 = vpow.pop %v1989
      %v1991 = vadd.f32 %v1990, 1.0
      %v1992 = vrcp.pop %v1991
      %v1993 = vmul.f32 1.0, %v1992
      %v1994 = vmul.f32 %v1985, %v1993
      %v1995 = vld [vmem:[%s23] sm:$0xff]
      %v1996 = vld [vmem:[%s23 + $0x8] sm:$0xff]
      %v1997 = vld [vmem:[%s23 + $0x10] sm:$0xff]
      %v1998 = vld [vmem:[%s23 + $0x18] sm:$0xff]
      %v1999 = vld [vmem:[%s23 + $0x20] sm:$0xff]
      %v2000 = vld [vmem:[%s23 + $0x28] sm:$0xff]
      %v2001 = vld [vmem:[%s23 + $0x30] sm:$0xff]
      %v2002 = vld [vmem:[%s23 + $0x38] sm:$0xff]
      %v2004 = vsel %vm980, %v1994, 0
      %2006 = vmatprep.subr.mxu0 0.0
      %2007 = vmatpush1.msra.mxu0 0.0
      %2008 = vmatprep.subr.mxu0 0.0
      %2009 = vmatpush1.msra.mxu0 0.0
      %2010 = vmatprep.subr.mxu0 0.0
      %2011 = vmatpush1.msra.mxu0 0.0
      %2012 = vmatprep.subr.mxu0 0.0
      %2013 = vmatpush1.msra.mxu0 0.0
      %2014 = vmatprep.subr.mxu0 0.0
      %2015 = vmatpush1.msra.mxu0 0.0
      %2016 = vmatprep.subr.mxu0 0.0
      %2017 = vmatpush1.msra.mxu0 0.0
      %2018 = vmatprep.subr.mxu0 0.0
      %2019 = vmatpush1.msra.mxu0 0.0
      %2020 = vmatprep.subr.mxu0 0.0
      %2021 = vmatpush1.msra.mxu0 0.0
      %2022 = vmatprep.subr.mxu0 0.0
      %2023 = vmatpush1.msra.mxu0 %v2002
      %2024 = vmatprep.subr.mxu0 0.0
      %2025 = vmatpush1.msra.mxu0 %v2001
      %2026 = vmatprep.subr.mxu0 0.0
      %2027 = vmatpush1.msra.mxu0 %v2000
      %2028 = vmatprep.subr.mxu0 0.0
      %2029 = vmatpush1.msra.mxu0 %v1999
      %2030 = vmatprep.subr.mxu0 0.0
      %2031 = vmatpush1.msra.mxu0 %v1998
      %2032 = vmatprep.subr.mxu0 0.0
      %2033 = vmatpush1.msra.mxu0 %v1997
      %2034 = vmatprep.subr.mxu0 0.0
      %2035 = vmatpush1.msra.mxu0 %v1996
      %2036 = vmatprep.subr.mxu0 0.0
      %2037 = vmatpush1.msra.mxu0 %v1995
      %2038 = vmatprep.subr.mxu0 0.0
      %2039 = vmatpush2.msra.mxu0 0.0
      %2040 = vmatprep.subr.mxu0 0.0
      %2041 = vmatpush2.msra.mxu0 0.0
      %2042 = vmatprep.subr.mxu0 0.0
      %2043 = vmatpush2.msra.mxu0 0.0
      %2044 = vmatprep.subr.mxu0 0.0
      %2045 = vmatpush2.msra.mxu0 0.0
      %2046 = vmatprep.subr.mxu0 0.0
      %2047 = vmatpush2.msra.mxu0 0.0
      %2048 = vmatprep.subr.mxu0 0.0
      %2049 = vmatpush2.msra.mxu0 0.0
      %2050 = vmatprep.subr.mxu0 0.0
      %2051 = vmatpush2.msra.mxu0 0.0
      %2052 = vmatprep.subr.mxu0 0.0
      %2053 = vmatpush2.msra.mxu0 0.0
      %2054 = vmatprep.subr.mxu0 0.0
      %2055 = vmatpush2.msra.mxu0 0.0
      %2056 = vmatprep.subr.mxu0 0.0
      %2057 = vmatpush2.msra.mxu0 0.0
      %2058 = vmatprep.subr.mxu0 0.0
      %2059 = vmatpush2.msra.mxu0 0.0
      %2060 = vmatprep.subr.mxu0 0.0
      %2061 = vmatpush2.msra.mxu0 0.0
      %2062 = vmatprep.subr.mxu0 0.0
      %2063 = vmatpush2.msra.mxu0 0.0
      %2064 = vmatprep.subr.mxu0 0.0
      %2065 = vmatpush2.msra.mxu0 0.0
      %2066 = vmatprep.subr.mxu0 0.0
      %2067 = vmatpush2.msra.mxu0 0.0
      %2068 = vmatprep.subr.mxu0 0.0
      %2069 = vmatpush2.msra.mxu0 0.0
      %2070 = vmatprep.mubr.f32.mxu0 0.0
      %2071 = vmatmul.mubr.f32.gmra.mxu0 %v2004
      %v2072 = vpop.f32.mrf.mxu0
      %v2073 = vadd.f32 0.0, %v2072
      %v2074 = vpop.f32.mrf.mxu0
      %2075 = vdwg.mxu0
      %v2076 = vld [vmem:[%s24] sm:$0xff]
      %v2077 = vld [vmem:[%s24 + $0x8] sm:$0xff]
      %v2078 = vld [vmem:[%s24 + $0x10] sm:$0xff]
      %v2079 = vld [vmem:[%s24 + $0x18] sm:$0xff]
      %v2080 = vld [vmem:[%s24 + $0x20] sm:$0xff]
      %v2081 = vld [vmem:[%s24 + $0x28] sm:$0xff]
      %v2082 = vld [vmem:[%s24 + $0x30] sm:$0xff]
      %v2083 = vld [vmem:[%s24 + $0x38] sm:$0xff]
      %v2085 = vsel %vm980, %v2073, 0
      %2087 = vmatprep.subr.mxu0 0.0
      %2088 = vmatpush1.msra.mxu0 0.0
      %2089 = vmatprep.subr.mxu0 0.0
      %2090 = vmatpush1.msra.mxu0 0.0
      %2091 = vmatprep.subr.mxu0 0.0
      %2092 = vmatpush1.msra.mxu0 0.0
      %2093 = vmatprep.subr.mxu0 0.0
      %2094 = vmatpush1.msra.mxu0 0.0
      %2095 = vmatprep.subr.mxu0 0.0
      %2096 = vmatpush1.msra.mxu0 0.0
      %2097 = vmatprep.subr.mxu0 0.0
      %2098 = vmatpush1.msra.mxu0 0.0
      %2099 = vmatprep.subr.mxu0 0.0
      %2100 = vmatpush1.msra.mxu0 0.0
      %2101 = vmatprep.subr.mxu0 0.0
      %2102 = vmatpush1.msra.mxu0 0.0
      %2103 = vmatprep.subr.mxu0 0.0
      %2104 = vmatpush1.msra.mxu0 %v2083
      %2105 = vmatprep.subr.mxu0 0.0
      %2106 = vmatpush1.msra.mxu0 %v2082
      %2107 = vmatprep.subr.mxu0 0.0
      %2108 = vmatpush1.msra.mxu0 %v2081
      %2109 = vmatprep.subr.mxu0 0.0
      %2110 = vmatpush1.msra.mxu0 %v2080
      %2111 = vmatprep.subr.mxu0 0.0
      %2112 = vmatpush1.msra.mxu0 %v2079
      %2113 = vmatprep.subr.mxu0 0.0
      %2114 = vmatpush1.msra.mxu0 %v2078
      %2115 = vmatprep.subr.mxu0 0.0
      %2116 = vmatpush1.msra.mxu0 %v2077
      %2117 = vmatprep.subr.mxu0 0.0
      %2118 = vmatpush1.msra.mxu0 %v2076
      %2119 = vmatprep.subr.mxu0 0.0
      %2120 = vmatpush2.msra.mxu0 0.0
      %2121 = vmatprep.subr.mxu0 0.0
      %2122 = vmatpush2.msra.mxu0 0.0
      %2123 = vmatprep.subr.mxu0 0.0
      %2124 = vmatpush2.msra.mxu0 0.0
      %2125 = vmatprep.subr.mxu0 0.0
      %2126 = vmatpush2.msra.mxu0 0.0
      %2127 = vmatprep.subr.mxu0 0.0
      %2128 = vmatpush2.msra.mxu0 0.0
      %2129 = vmatprep.subr.mxu0 0.0
      %2130 = vmatpush2.msra.mxu0 0.0
      %2131 = vmatprep.subr.mxu0 0.0
      %2132 = vmatpush2.msra.mxu0 0.0
      %2133 = vmatprep.subr.mxu0 0.0
      %2134 = vmatpush2.msra.mxu0 0.0
      %2135 = vmatprep.subr.mxu0 0.0
      %2136 = vmatpush2.msra.mxu0 0.0
      %2137 = vmatprep.subr.mxu0 0.0
      %2138 = vmatpush2.msra.mxu0 0.0
      %2139 = vmatprep.subr.mxu0 0.0
      %2140 = vmatpush2.msra.mxu0 0.0
      %2141 = vmatprep.subr.mxu0 0.0
      %2142 = vmatpush2.msra.mxu0 0.0
      %2143 = vmatprep.subr.mxu0 0.0
      %2144 = vmatpush2.msra.mxu0 0.0
      %2145 = vmatprep.subr.mxu0 0.0
      %2146 = vmatpush2.msra.mxu0 0.0
      %2147 = vmatprep.subr.mxu0 0.0
      %2148 = vmatpush2.msra.mxu0 0.0
      %2149 = vmatprep.subr.mxu0 0.0
      %2150 = vmatpush2.msra.mxu0 0.0
      %2151 = vmatprep.mubr.f32.mxu0 0.0
      %2152 = vmatmul.mubr.f32.gmra.mxu0 %v2085
      %v2153 = vpop.f32.mrf.mxu0
      %v2154 = vadd.f32 0.0, %v2153
      %v2155 = vpop.f32.mrf.mxu0
      %2156 = vdwg.mxu0
      %v2157 = vld [vmem:[%s926] sm:$0x1]
      %v2158 = vld [vmem:[%s17] sm:$0xff]
      %v2159 = vld [vmem:[%s17 + $0x8] sm:$0xff]
      %v2160 = vld [vmem:[%s17 + $0x10] sm:$0xff]
      %v2161 = vld [vmem:[%s17 + $0x18] sm:$0xff]
      %v2162 = vld [vmem:[%s17 + $0x20] sm:$0xff]
      %v2163 = vld [vmem:[%s17 + $0x28] sm:$0xff]
      %v2164 = vld [vmem:[%s17 + $0x30] sm:$0xff]
      %v2165 = vld [vmem:[%s17 + $0x38] sm:$0xff]
      %v2166 = vld [vmem:[%s17 + $0x40] sm:$0xff]
      %v2167 = vld [vmem:[%s17 + $0x48] sm:$0xff]
      %v2168 = vld [vmem:[%s17 + $0x50] sm:$0xff]
      %v2169 = vld [vmem:[%s17 + $0x58] sm:$0xff]
      %v2170 = vld [vmem:[%s17 + $0x60] sm:$0xff]
      %v2171 = vld [vmem:[%s17 + $0x68] sm:$0xff]
      %v2172 = vld [vmem:[%s17 + $0x70] sm:$0xff]
      %v2173 = vld [vmem:[%s17 + $0x78] sm:$0xff]
      %v2174 = vld [vmem:[%s18] sm:$0x1]
      %2175 = vmatprep.subr.mxu0 0.0
      %2176 = vmatpush1.msra.mxu0 %v2173
      %2177 = vmatprep.subr.mxu0 0.0
      %2178 = vmatpush1.msra.mxu0 %v2172
      %2179 = vmatprep.subr.mxu0 0.0
      %2180 = vmatpush1.msra.mxu0 %v2171
      %2181 = vmatprep.subr.mxu0 0.0
      %2182 = vmatpush1.msra.mxu0 %v2170
      %2183 = vmatprep.subr.mxu0 0.0
      %2184 = vmatpush1.msra.mxu0 %v2169
      %2185 = vmatprep.subr.mxu0 0.0
      %2186 = vmatpush1.msra.mxu0 %v2168
      %2187 = vmatprep.subr.mxu0 0.0
      %2188 = vmatpush1.msra.mxu0 %v2167
      %2189 = vmatprep.subr.mxu0 0.0
      %2190 = vmatpush1.msra.mxu0 %v2166
      %2191 = vmatprep.subr.mxu0 0.0
      %2192 = vmatpush1.msra.mxu0 %v2165
      %2193 = vmatprep.subr.mxu0 0.0
      %2194 = vmatpush1.msra.mxu0 %v2164
      %2195 = vmatprep.subr.mxu0 0.0
      %2196 = vmatpush1.msra.mxu0 %v2163
      %2197 = vmatprep.subr.mxu0 0.0
      %2198 = vmatpush1.msra.mxu0 %v2162
      %2199 = vmatprep.subr.mxu0 0.0
      %2200 = vmatpush1.msra.mxu0 %v2161
      %2201 = vmatprep.subr.mxu0 0.0
      %2202 = vmatpush1.msra.mxu0 %v2160
      %2203 = vmatprep.subr.mxu0 0.0
      %2204 = vmatpush1.msra.mxu0 %v2159
      %2205 = vmatprep.subr.mxu0 0.0
      %2206 = vmatpush1.msra.mxu0 %v2158
      %2207 = vmatprep.subr.mxu0 0.0
      %2208 = vmatpush2.msra.mxu0 0.0
      %2209 = vmatprep.subr.mxu0 0.0
      %2210 = vmatpush2.msra.mxu0 0.0
      %2211 = vmatprep.subr.mxu0 0.0
      %2212 = vmatpush2.msra.mxu0 0.0
      %2213 = vmatprep.subr.mxu0 0.0
      %2214 = vmatpush2.msra.mxu0 0.0
      %2215 = vmatprep.subr.mxu0 0.0
      %2216 = vmatpush2.msra.mxu0 0.0
      %2217 = vmatprep.subr.mxu0 0.0
      %2218 = vmatpush2.msra.mxu0 0.0
      %2219 = vmatprep.subr.mxu0 0.0
      %2220 = vmatpush2.msra.mxu0 0.0
      %2221 = vmatprep.subr.mxu0 0.0
      %2222 = vmatpush2.msra.mxu0 0.0
      %2223 = vmatprep.subr.mxu0 0.0
      %2224 = vmatpush2.msra.mxu0 0.0
      %2225 = vmatprep.subr.mxu0 0.0
      %2226 = vmatpush2.msra.mxu0 0.0
      %2227 = vmatprep.subr.mxu0 0.0
      %2228 = vmatpush2.msra.mxu0 0.0
      %2229 = vmatprep.subr.mxu0 0.0
      %2230 = vmatpush2.msra.mxu0 0.0
      %2231 = vmatprep.subr.mxu0 0.0
      %2232 = vmatpush2.msra.mxu0 0.0
      %2233 = vmatprep.subr.mxu0 0.0
      %2234 = vmatpush2.msra.mxu0 0.0
      %2235 = vmatprep.subr.mxu0 0.0
      %2236 = vmatpush2.msra.mxu0 0.0
      %2237 = vmatprep.subr.mxu0 0.0
      %2238 = vmatpush2.msra.mxu0 0.0
      %2239 = vmatprep.mubr.f32.mxu0 0.0
      %2240 = vmatmul.mubr.f32.gmra.mxu0 %v2157
      %v2241 = vpop.f32.mrf.mxu0
      %v2242 = vadd.f32 %v2174, %v2241
      %v2243 = vpop.f32.mrf.mxu0
      %2244 = vdwg.mxu0
      %v2245 = vxor.u32 %v2242, 2147483648
      %v2246 = vmul.f32 %v2245, 1.442695
      %v2247 = vpow.pop %v2246
      %v2248 = vadd.f32 %v2247, 1.0
      %v2249 = vrcp.pop %v2248
      %v2250 = vmul.f32 1.0, %v2249
      %v2251 = vmul.f32 %v2242, %v2250
      %v2252 = vld [vmem:[%s19] sm:$0xff]
      %v2253 = vld [vmem:[%s19 + $0x8] sm:$0xff]
      %v2254 = vld [vmem:[%s19 + $0x10] sm:$0xff]
      %v2255 = vld [vmem:[%s19 + $0x18] sm:$0xff]
      %v2256 = vld [vmem:[%s19 + $0x20] sm:$0xff]
      %v2257 = vld [vmem:[%s19 + $0x28] sm:$0xff]
      %v2258 = vld [vmem:[%s19 + $0x30] sm:$0xff]
      %v2259 = vld [vmem:[%s19 + $0x38] sm:$0xff]
      %v2260 = vld [vmem:[%s20] sm:$0x1]
      %v2262 = vsel %vm980, %v2251, 0
      %2264 = vmatprep.subr.mxu0 0.0
      %2265 = vmatpush1.msra.mxu0 0.0
      %2266 = vmatprep.subr.mxu0 0.0
      %2267 = vmatpush1.msra.mxu0 0.0
      %2268 = vmatprep.subr.mxu0 0.0
      %2269 = vmatpush1.msra.mxu0 0.0
      %2270 = vmatprep.subr.mxu0 0.0
      %2271 = vmatpush1.msra.mxu0 0.0
      %2272 = vmatprep.subr.mxu0 0.0
      %2273 = vmatpush1.msra.mxu0 0.0
      %2274 = vmatprep.subr.mxu0 0.0
      %2275 = vmatpush1.msra.mxu0 0.0
      %2276 = vmatprep.subr.mxu0 0.0
      %2277 = vmatpush1.msra.mxu0 0.0
      %2278 = vmatprep.subr.mxu0 0.0
      %2279 = vmatpush1.msra.mxu0 0.0
      %2280 = vmatprep.subr.mxu0 0.0
      %2281 = vmatpush1.msra.mxu0 %v2259
      %2282 = vmatprep.subr.mxu0 0.0
      %2283 = vmatpush1.msra.mxu0 %v2258
      %2284 = vmatprep.subr.mxu0 0.0
      %2285 = vmatpush1.msra.mxu0 %v2257
      %2286 = vmatprep.subr.mxu0 0.0
      %2287 = vmatpush1.msra.mxu0 %v2256
      %2288 = vmatprep.subr.mxu0 0.0
      %2289 = vmatpush1.msra.mxu0 %v2255
      %2290 = vmatprep.subr.mxu0 0.0
      %2291 = vmatpush1.msra.mxu0 %v2254
      %2292 = vmatprep.subr.mxu0 0.0
      %2293 = vmatpush1.msra.mxu0 %v2253
      %2294 = vmatprep.subr.mxu0 0.0
      %2295 = vmatpush1.msra.mxu0 %v2252
      %2296 = vmatprep.subr.mxu0 0.0
      %2297 = vmatpush2.msra.mxu0 0.0
      %2298 = vmatprep.subr.mxu0 0.0
      %2299 = vmatpush2.msra.mxu0 0.0
      %2300 = vmatprep.subr.mxu0 0.0
      %2301 = vmatpush2.msra.mxu0 0.0
      %2302 = vmatprep.subr.mxu0 0.0
      %2303 = vmatpush2.msra.mxu0 0.0
      %2304 = vmatprep.subr.mxu0 0.0
      %2305 = vmatpush2.msra.mxu0 0.0
      %2306 = vmatprep.subr.mxu0 0.0
      %2307 = vmatpush2.msra.mxu0 0.0
      %2308 = vmatprep.subr.mxu0 0.0
      %2309 = vmatpush2.msra.mxu0 0.0
      %2310 = vmatprep.subr.mxu0 0.0
      %2311 = vmatpush2.msra.mxu0 0.0
      %2312 = vmatprep.subr.mxu0 0.0
      %2313 = vmatpush2.msra.mxu0 0.0
      %2314 = vmatprep.subr.mxu0 0.0
      %2315 = vmatpush2.msra.mxu0 0.0
      %2316 = vmatprep.subr.mxu0 0.0
      %2317 = vmatpush2.msra.mxu0 0.0
      %2318 = vmatprep.subr.mxu0 0.0
      %2319 = vmatpush2.msra.mxu0 0.0
      %2320 = vmatprep.subr.mxu0 0.0
      %2321 = vmatpush2.msra.mxu0 0.0
      %2322 = vmatprep.subr.mxu0 0.0
      %2323 = vmatpush2.msra.mxu0 0.0
      %2324 = vmatprep.subr.mxu0 0.0
      %2325 = vmatpush2.msra.mxu0 0.0
      %2326 = vmatprep.subr.mxu0 0.0
      %2327 = vmatpush2.msra.mxu0 0.0
      %2328 = vmatprep.mubr.f32.mxu0 0.0
      %2329 = vmatmul.mubr.f32.gmra.mxu0 %v2262
      %v2330 = vpop.f32.mrf.mxu0
      %v2331 = vadd.f32 %v2260, %v2330
      %v2332 = vpop.f32.mrf.mxu0
      %2333 = vdwg.mxu0
      %v2334 = vld [vmem:[%s21] sm:$0xff]
      %v2335 = vld [vmem:[%s21 + $0x8] sm:$0xff]
      %v2336 = vld [vmem:[%s21 + $0x10] sm:$0xf]
      %v2337 = vld [vmem:[%s22] sm:$0x1]
      %v2341 = vcombine.high %v2334, %v2334
      %v2342 = vcombine.high %v2335, %v2335
      %vm2343 = vcmask 31744
      %v2345 = vsel %vm2343, %v1284, 0
      %v2348 = vsel %vm2343, %v1285, 0
      %v2351 = vsel %vm2343, %v1286, 0
      %v2354 = vsel %vm2343, %v1287, 0
      %v2357 = vsel %vm2343, %v1288, 0
      %v2360 = vsel %vm2343, %v1289, 0
      %v2363 = vsel %vm2343, %v1290, 0
      %v2366 = vsel %vm2343, %v1291, 0
      %vm2368 = vcmask 1043456
      %v2369 = vsel %vm2368, %v2334, 0
      %v2371 = vsel %vm2368, %v2341, 0
      %v2373 = vsel %vm2368, %v2335, 0
      %v2375 = vsel %vm2368, %v2342, 0
      %v2377 = vsel %vm2368, %v2336, 0
      %2379 = vmatprep.subr.mxu0 0.0
      %2380 = vmatpush1.msra.mxu0 0.0
      %2381 = vmatprep.subr.mxu0 0.0
      %2382 = vmatpush1.msra.mxu0 0.0
      %2383 = vmatprep.subr.mxu0 0.0
      %2384 = vmatpush1.msra.mxu0 0.0
      %2385 = vmatprep.subr.mxu0 0.0
      %2386 = vmatpush1.msra.mxu0 0.0
      %2387 = vmatprep.subr.mxu0 0.0
      %2388 = vmatpush1.msra.mxu0 0.0
      %2389 = vmatprep.subr.mxu0 0.0
      %2390 = vmatpush1.msra.mxu0 0.0
      %2391 = vmatprep.subr.mxu0 0.0
      %2392 = vmatpush1.msra.mxu0 0.0
      %2393 = vmatprep.subr.mxu0 0.0
      %2394 = vmatpush1.msra.mxu0 0.0
      %2395 = vmatprep.subr.mxu0 0.0
      %2396 = vmatpush1.msra.mxu0 0.0
      %2397 = vmatprep.subr.mxu0 0.0
      %2398 = vmatpush1.msra.mxu0 0.0
      %2399 = vmatprep.subr.mxu0 0.0
      %2400 = vmatpush1.msra.mxu0 0.0
      %2401 = vmatprep.subr.mxu0 0.0
      %2402 = vmatpush1.msra.mxu0 0.0
      %2403 = vmatprep.subr.mxu0 0.0
      %2404 = vmatpush1.msra.mxu0 0.0
      %2405 = vmatprep.subr.mxu0 0.0
      %2406 = vmatpush1.msra.mxu0 0.0
      %2407 = vmatprep.subr.mxu0 0.0
      %2408 = vmatpush1.msra.mxu0 0.0
      %2409 = vmatprep.subr.mxu0 %v2371
      %2410 = vmatpush1.msra.mxu0 %v2369
      %2411 = vmatprep.subr.mxu0 0.0
      %2412 = vmatpush2.msra.mxu0 0.0
      %2413 = vmatprep.subr.mxu0 0.0
      %2414 = vmatpush2.msra.mxu0 0.0
      %2415 = vmatprep.subr.mxu0 0.0
      %2416 = vmatpush2.msra.mxu0 0.0
      %2417 = vmatprep.subr.mxu0 0.0
      %2418 = vmatpush2.msra.mxu0 0.0
      %2419 = vmatprep.subr.mxu0 0.0
      %2420 = vmatpush2.msra.mxu0 0.0
      %2421 = vmatprep.subr.mxu0 0.0
      %2422 = vmatpush2.msra.mxu0 0.0
      %2423 = vmatprep.subr.mxu0 0.0
      %2424 = vmatpush2.msra.mxu0 0.0
      %2425 = vmatprep.subr.mxu0 0.0
      %2426 = vmatpush2.msra.mxu0 0.0
      %2427 = vmatprep.subr.mxu0 0.0
      %2428 = vmatpush2.msra.mxu0 0.0
      %2429 = vmatprep.subr.mxu0 0.0
      %2430 = vmatpush2.msra.mxu0 0.0
      %2431 = vmatprep.subr.mxu0 0.0
      %2432 = vmatpush2.msra.mxu0 0.0
      %2433 = vmatprep.subr.mxu0 0.0
      %2434 = vmatpush2.msra.mxu0 0.0
      %2435 = vmatprep.subr.mxu0 0.0
      %2436 = vmatpush2.msra.mxu0 0.0
      %2437 = vmatprep.subr.mxu0 0.0
      %2438 = vmatpush2.msra.mxu0 0.0
      %2439 = vmatprep.subr.mxu0 0.0
      %2440 = vmatpush2.msra.mxu0 0.0
      %2441 = vmatprep.subr.mxu0 0.0
      %2442 = vmatpush2.msra.mxu0 0.0
      %2443 = vmatprep.mubr.f32.mxu0 0.0
      %2444 = vmatmul.mubr.f32.gmra.mxu0 %v2345
      %v2445 = vpop.f32.mrf.mxu0
      %v2446 = vadd.f32 0.0, %v2445
      %v2447 = vpop.f32.mrf.mxu0
      %v2448 = vadd.f32 0.0, %v2447
      %2449 = vmatprep.mubr.f32.mxu0 0.0
      %2450 = vmatmul.mubr.f32.gmra.mxu0 %v2348
      %v2451 = vpop.f32.mrf.mxu0
      %v2452 = vadd.f32 0.0, %v2451
      %v2453 = vpop.f32.mrf.mxu0
      %v2454 = vadd.f32 0.0, %v2453
      %2455 = vmatprep.mubr.f32.mxu0 0.0
      %2456 = vmatmul.mubr.f32.gmra.mxu0 %v2351
      %v2457 = vpop.f32.mrf.mxu0
      %v2458 = vadd.f32 0.0, %v2457
      %v2459 = vpop.f32.mrf.mxu0
      %v2460 = vadd.f32 0.0, %v2459
      %2461 = vmatprep.mubr.f32.mxu0 0.0
      %2462 = vmatmul.mubr.f32.gmra.mxu0 %v2354
      %v2463 = vpop.f32.mrf.mxu0
      %v2464 = vadd.f32 0.0, %v2463
      %v2465 = vpop.f32.mrf.mxu0
      %v2466 = vadd.f32 0.0, %v2465
      %2467 = vmatprep.mubr.f32.mxu0 0.0
      %2468 = vmatmul.mubr.f32.gmra.mxu0 %v2357
      %v2469 = vpop.f32.mrf.mxu0
      %v2470 = vadd.f32 0.0, %v2469
      %v2471 = vpop.f32.mrf.mxu0
      %v2472 = vadd.f32 0.0, %v2471
      %2473 = vmatprep.mubr.f32.mxu0 0.0
      %2474 = vmatmul.mubr.f32.gmra.mxu0 %v2360
      %v2475 = vpop.f32.mrf.mxu0
      %v2476 = vadd.f32 0.0, %v2475
      %v2477 = vpop.f32.mrf.mxu0
      %v2478 = vadd.f32 0.0, %v2477
      %2479 = vmatprep.mubr.f32.mxu0 0.0
      %2480 = vmatmul.mubr.f32.gmra.mxu0 %v2363
      %v2481 = vpop.f32.mrf.mxu0
      %v2482 = vadd.f32 0.0, %v2481
      %v2483 = vpop.f32.mrf.mxu0
      %v2484 = vadd.f32 0.0, %v2483
      %2485 = vmatprep.mubr.f32.mxu0 0.0
      %2486 = vmatmul.mubr.f32.gmra.mxu0 %v2366
      %v2487 = vpop.f32.mrf.mxu0
      %v2488 = vadd.f32 0.0, %v2487
      %v2489 = vpop.f32.mrf.mxu0
      %v2490 = vadd.f32 0.0, %v2489
      %2491 = vdwg.mxu0
      %2492 = vmatprep.subr.mxu0 0.0
      %2493 = vmatpush1.msra.mxu0 0.0
      %2494 = vmatprep.subr.mxu0 0.0
      %2495 = vmatpush1.msra.mxu0 0.0
      %2496 = vmatprep.subr.mxu0 0.0
      %2497 = vmatpush1.msra.mxu0 0.0
      %2498 = vmatprep.subr.mxu0 0.0
      %2499 = vmatpush1.msra.mxu0 0.0
      %2500 = vmatprep.subr.mxu0 0.0
      %2501 = vmatpush1.msra.mxu0 0.0
      %2502 = vmatprep.subr.mxu0 0.0
      %2503 = vmatpush1.msra.mxu0 0.0
      %2504 = vmatprep.subr.mxu0 0.0
      %2505 = vmatpush1.msra.mxu0 0.0
      %2506 = vmatprep.subr.mxu0 0.0
      %2507 = vmatpush1.msra.mxu0 0.0
      %2508 = vmatprep.subr.mxu0 0.0
      %2509 = vmatpush1.msra.mxu0 0.0
      %2510 = vmatprep.subr.mxu0 0.0
      %2511 = vmatpush1.msra.mxu0 0.0
      %2512 = vmatprep.subr.mxu0 0.0
      %2513 = vmatpush1.msra.mxu0 0.0
      %2514 = vmatprep.subr.mxu0 0.0
      %2515 = vmatpush1.msra.mxu0 0.0
      %2516 = vmatprep.subr.mxu0 0.0
      %2517 = vmatpush1.msra.mxu0 0.0
      %2518 = vmatprep.subr.mxu0 0.0
      %2519 = vmatpush1.msra.mxu0 0.0
      %2520 = vmatprep.subr.mxu0 0.0
      %2521 = vmatpush1.msra.mxu0 0.0
      %2522 = vmatprep.subr.mxu0 %v2375
      %2523 = vmatpush1.msra.mxu0 %v2373
      %2524 = vmatprep.subr.mxu0 0.0
      %2525 = vmatpush2.msra.mxu0 0.0
      %2526 = vmatprep.subr.mxu0 0.0
      %2527 = vmatpush2.msra.mxu0 0.0
      %2528 = vmatprep.subr.mxu0 0.0
      %2529 = vmatpush2.msra.mxu0 0.0
      %2530 = vmatprep.subr.mxu0 0.0
      %2531 = vmatpush2.msra.mxu0 0.0
      %2532 = vmatprep.subr.mxu0 0.0
      %2533 = vmatpush2.msra.mxu0 0.0
      %2534 = vmatprep.subr.mxu0 0.0
      %2535 = vmatpush2.msra.mxu0 0.0
      %2536 = vmatprep.subr.mxu0 0.0
      %2537 = vmatpush2.msra.mxu0 0.0
      %2538 = vmatprep.subr.mxu0 0.0
      %2539 = vmatpush2.msra.mxu0 0.0
      %2540 = vmatprep.subr.mxu0 0.0
      %2541 = vmatpush2.msra.mxu0 0.0
      %2542 = vmatprep.subr.mxu0 0.0
      %2543 = vmatpush2.msra.mxu0 0.0
      %2544 = vmatprep.subr.mxu0 0.0
      %2545 = vmatpush2.msra.mxu0 0.0
      %2546 = vmatprep.subr.mxu0 0.0
      %2547 = vmatpush2.msra.mxu0 0.0
      %2548 = vmatprep.subr.mxu0 0.0
      %2549 = vmatpush2.msra.mxu0 0.0
      %2550 = vmatprep.subr.mxu0 0.0
      %2551 = vmatpush2.msra.mxu0 0.0
      %2552 = vmatprep.subr.mxu0 0.0
      %2553 = vmatpush2.msra.mxu0 0.0
      %2554 = vmatprep.subr.mxu0 0.0
      %2555 = vmatpush2.msra.mxu0 0.0
      %2556 = vmatprep.mubr.f32.mxu0 0.0
      %2557 = vmatmul.mubr.f32.gmra.mxu0 %v2345
      %v2558 = vpop.f32.mrf.mxu0
      %v2559 = vadd.f32 0.0, %v2558
      %v2560 = vpop.f32.mrf.mxu0
      %v2561 = vadd.f32 0.0, %v2560
      %2562 = vmatprep.mubr.f32.mxu0 0.0
      %2563 = vmatmul.mubr.f32.gmra.mxu0 %v2348
      %v2564 = vpop.f32.mrf.mxu0
      %v2565 = vadd.f32 0.0, %v2564
      %v2566 = vpop.f32.mrf.mxu0
      %v2567 = vadd.f32 0.0, %v2566
      %2568 = vmatprep.mubr.f32.mxu0 0.0
      %2569 = vmatmul.mubr.f32.gmra.mxu0 %v2351
      %v2570 = vpop.f32.mrf.mxu0
      %v2571 = vadd.f32 0.0, %v2570
      %v2572 = vpop.f32.mrf.mxu0
      %v2573 = vadd.f32 0.0, %v2572
      %2574 = vmatprep.mubr.f32.mxu0 0.0
      %2575 = vmatmul.mubr.f32.gmra.mxu0 %v2354
      %v2576 = vpop.f32.mrf.mxu0
      %v2577 = vadd.f32 0.0, %v2576
      %v2578 = vpop.f32.mrf.mxu0
      %v2579 = vadd.f32 0.0, %v2578
      %2580 = vmatprep.mubr.f32.mxu0 0.0
      %2581 = vmatmul.mubr.f32.gmra.mxu0 %v2357
      %v2582 = vpop.f32.mrf.mxu0
      %v2583 = vadd.f32 0.0, %v2582
      %v2584 = vpop.f32.mrf.mxu0
      %v2585 = vadd.f32 0.0, %v2584
      %2586 = vmatprep.mubr.f32.mxu0 0.0
      %2587 = vmatmul.mubr.f32.gmra.mxu0 %v2360
      %v2588 = vpop.f32.mrf.mxu0
      %v2589 = vadd.f32 0.0, %v2588
      %v2590 = vpop.f32.mrf.mxu0
      %v2591 = vadd.f32 0.0, %v2590
      %2592 = vmatprep.mubr.f32.mxu0 0.0
      %2593 = vmatmul.mubr.f32.gmra.mxu0 %v2363
      %v2594 = vpop.f32.mrf.mxu0
      %v2595 = vadd.f32 0.0, %v2594
      %v2596 = vpop.f32.mrf.mxu0
      %v2597 = vadd.f32 0.0, %v2596
      %2598 = vmatprep.mubr.f32.mxu0 0.0
      %2599 = vmatmul.mubr.f32.gmra.mxu0 %v2366
      %v2600 = vpop.f32.mrf.mxu0
      %v2601 = vadd.f32 0.0, %v2600
      %v2602 = vpop.f32.mrf.mxu0
      %v2603 = vadd.f32 0.0, %v2602
      %2604 = vdwg.mxu0
      %2605 = vmatprep.subr.mxu0 0.0
      %2606 = vmatpush1.msra.mxu0 0.0
      %2607 = vmatprep.subr.mxu0 0.0
      %2608 = vmatpush1.msra.mxu0 0.0
      %2609 = vmatprep.subr.mxu0 0.0
      %2610 = vmatpush1.msra.mxu0 0.0
      %2611 = vmatprep.subr.mxu0 0.0
      %2612 = vmatpush1.msra.mxu0 0.0
      %2613 = vmatprep.subr.mxu0 0.0
      %2614 = vmatpush1.msra.mxu0 0.0
      %2615 = vmatprep.subr.mxu0 0.0
      %2616 = vmatpush1.msra.mxu0 0.0
      %2617 = vmatprep.subr.mxu0 0.0
      %2618 = vmatpush1.msra.mxu0 0.0
      %2619 = vmatprep.subr.mxu0 0.0
      %2620 = vmatpush1.msra.mxu0 0.0
      %2621 = vmatprep.subr.mxu0 0.0
      %2622 = vmatpush1.msra.mxu0 0.0
      %2623 = vmatprep.subr.mxu0 0.0
      %2624 = vmatpush1.msra.mxu0 0.0
      %2625 = vmatprep.subr.mxu0 0.0
      %2626 = vmatpush1.msra.mxu0 0.0
      %2627 = vmatprep.subr.mxu0 0.0
      %2628 = vmatpush1.msra.mxu0 0.0
      %2629 = vmatprep.subr.mxu0 0.0
      %2630 = vmatpush1.msra.mxu0 0.0
      %2631 = vmatprep.subr.mxu0 0.0
      %2632 = vmatpush1.msra.mxu0 0.0
      %2633 = vmatprep.subr.mxu0 0.0
      %2634 = vmatpush1.msra.mxu0 0.0
      %2635 = vmatprep.subr.mxu0 0.0
      %2636 = vmatpush1.msra.mxu0 %v2377
      %2637 = vmatprep.subr.mxu0 0.0
      %2638 = vmatpush2.msra.mxu0 0.0
      %2639 = vmatprep.subr.mxu0 0.0
      %2640 = vmatpush2.msra.mxu0 0.0
      %2641 = vmatprep.subr.mxu0 0.0
      %2642 = vmatpush2.msra.mxu0 0.0
      %2643 = vmatprep.subr.mxu0 0.0
      %2644 = vmatpush2.msra.mxu0 0.0
      %2645 = vmatprep.subr.mxu0 0.0
      %2646 = vmatpush2.msra.mxu0 0.0
      %2647 = vmatprep.subr.mxu0 0.0
      %2648 = vmatpush2.msra.mxu0 0.0
      %2649 = vmatprep.subr.mxu0 0.0
      %2650 = vmatpush2.msra.mxu0 0.0
      %2651 = vmatprep.subr.mxu0 0.0
      %2652 = vmatpush2.msra.mxu0 0.0
      %2653 = vmatprep.subr.mxu0 0.0
      %2654 = vmatpush2.msra.mxu0 0.0
      %2655 = vmatprep.subr.mxu0 0.0
      %2656 = vmatpush2.msra.mxu0 0.0
      %2657 = vmatprep.subr.mxu0 0.0
      %2658 = vmatpush2.msra.mxu0 0.0
      %2659 = vmatprep.subr.mxu0 0.0
      %2660 = vmatpush2.msra.mxu0 0.0
      %2661 = vmatprep.subr.mxu0 0.0
      %2662 = vmatpush2.msra.mxu0 0.0
      %2663 = vmatprep.subr.mxu0 0.0
      %2664 = vmatpush2.msra.mxu0 0.0
      %2665 = vmatprep.subr.mxu0 0.0
      %2666 = vmatpush2.msra.mxu0 0.0
      %2667 = vmatprep.subr.mxu0 0.0
      %2668 = vmatpush2.msra.mxu0 0.0
      %2669 = vmatprep.mubr.f32.mxu0 0.0
      %2670 = vmatmul.mubr.f32.gmra.mxu0 %v2345
      %v2671 = vpop.f32.mrf.mxu0
      %v2672 = vadd.f32 0.0, %v2671
      %v2673 = vpop.f32.mrf.mxu0
      %2674 = vmatprep.mubr.f32.mxu0 0.0
      %2675 = vmatmul.mubr.f32.gmra.mxu0 %v2348
      %v2676 = vpop.f32.mrf.mxu0
      %v2677 = vadd.f32 0.0, %v2676
      %v2678 = vpop.f32.mrf.mxu0
      %2679 = vmatprep.mubr.f32.mxu0 0.0
      %2680 = vmatmul.mubr.f32.gmra.mxu0 %v2351
      %v2681 = vpop.f32.mrf.mxu0
      %v2682 = vadd.f32 0.0, %v2681
      %v2683 = vpop.f32.mrf.mxu0
      %2684 = vmatprep.mubr.f32.mxu0 0.0
      %2685 = vmatmul.mubr.f32.gmra.mxu0 %v2354
      %v2686 = vpop.f32.mrf.mxu0
      %v2687 = vadd.f32 0.0, %v2686
      %v2688 = vpop.f32.mrf.mxu0
      %2689 = vmatprep.mubr.f32.mxu0 0.0
      %2690 = vmatmul.mubr.f32.gmra.mxu0 %v2357
      %v2691 = vpop.f32.mrf.mxu0
      %v2692 = vadd.f32 0.0, %v2691
      %v2693 = vpop.f32.mrf.mxu0
      %2694 = vmatprep.mubr.f32.mxu0 0.0
      %2695 = vmatmul.mubr.f32.gmra.mxu0 %v2360
      %v2696 = vpop.f32.mrf.mxu0
      %v2697 = vadd.f32 0.0, %v2696
      %v2698 = vpop.f32.mrf.mxu0
      %2699 = vmatprep.mubr.f32.mxu0 0.0
      %2700 = vmatmul.mubr.f32.gmra.mxu0 %v2363
      %v2701 = vpop.f32.mrf.mxu0
      %v2702 = vadd.f32 0.0, %v2701
      %v2703 = vpop.f32.mrf.mxu0
      %2704 = vmatprep.mubr.f32.mxu0 0.0
      %2705 = vmatmul.mubr.f32.gmra.mxu0 %v2366
      %v2706 = vpop.f32.mrf.mxu0
      %v2707 = vadd.f32 0.0, %v2706
      %v2708 = vpop.f32.mrf.mxu0
      %2709 = vdwg.mxu0
      %v2710 = vld [vmem:[%s6] sm:$0xff]
      %v2711 = vld [vmem:[%s6 + $0x8] sm:$0xff]
      %v2712 = vld [vmem:[%s6 + $0x10] sm:$0xff]
      %v2713 = vld [vmem:[%s6 + $0x18] sm:$0xff]
      %v2714 = vld [vmem:[%s6 + $0x20] sm:$0xff]
      %v2715 = vld [vmem:[%s6 + $0x28] sm:$0xff]
      %v2716 = vld [vmem:[%s6 + $0x30] sm:$0xff]
      %v2717 = vld [vmem:[%s6 + $0x38] sm:$0xff]
      %s2718 = scalar_lea.vmem %s6, 64
      %v2719 = vld [vmem:[%s2718] sm:$0xff]
      %v2720 = vld [vmem:[%s2718 + $0x8] sm:$0xff]
      %v2721 = vld [vmem:[%s2718 + $0x10] sm:$0xff]
      %v2722 = vld [vmem:[%s2718 + $0x18] sm:$0xff]
      %v2723 = vld [vmem:[%s2718 + $0x20] sm:$0xff]
      %v2724 = vld [vmem:[%s2718 + $0x28] sm:$0xff]
      %v2725 = vld [vmem:[%s2718 + $0x30] sm:$0xff]
      %v2726 = vld [vmem:[%s2718 + $0x38] sm:$0xff]
      %2735 = vrot.lane.b32.xlu0 %v2446, 64
      %v2736 = vpop.permute.xlu0 %2735
      %2737 = vrot.lane.b32.xlu0 %v2452, 64
      %v2738 = vpop.permute.xlu0 %2737
      %2739 = vrot.lane.b32.xlu0 %v2458, 64
      %v2740 = vpop.permute.xlu0 %2739
      %2741 = vrot.lane.b32.xlu0 %v2464, 64
      %v2742 = vpop.permute.xlu0 %2741
      %2743 = vrot.lane.b32.xlu0 %v2470, 64
      %v2744 = vpop.permute.xlu0 %2743
      %2745 = vrot.lane.b32.xlu0 %v2476, 64
      %v2746 = vpop.permute.xlu0 %2745
      %2747 = vrot.lane.b32.xlu0 %v2482, 64
      %v2748 = vpop.permute.xlu0 %2747
      %2749 = vrot.lane.b32.xlu0 %v2488, 64
      %v2750 = vpop.permute.xlu0 %2749
      %v2760 = vsel %vm980, %v2719, 0
      %v2763 = vsel %vm980, %v2720, 0
      %v2766 = vsel %vm980, %v2721, 0
      %v2769 = vsel %vm980, %v2722, 0
      %v2772 = vsel %vm980, %v2723, 0
      %v2775 = vsel %vm980, %v2724, 0
      %v2778 = vsel %vm980, %v2725, 0
      %v2781 = vsel %vm980, %v2726, 0
      %2783 = vmatprep.subr.mxu0 0.0
      %2784 = vmatpush1.msra.mxu0 0.0
      %2785 = vmatprep.subr.mxu0 0.0
      %2786 = vmatpush1.msra.mxu0 0.0
      %2787 = vmatprep.subr.mxu0 0.0
      %2788 = vmatpush1.msra.mxu0 0.0
      %2789 = vmatprep.subr.mxu0 0.0
      %2790 = vmatpush1.msra.mxu0 0.0
      %2791 = vmatprep.subr.mxu0 0.0
      %2792 = vmatpush1.msra.mxu0 0.0
      %2793 = vmatprep.subr.mxu0 0.0
      %2794 = vmatpush1.msra.mxu0 0.0
      %2795 = vmatprep.subr.mxu0 0.0
      %2796 = vmatpush1.msra.mxu0 0.0
      %2797 = vmatprep.subr.mxu0 0.0
      %2798 = vmatpush1.msra.mxu0 0.0
      %2799 = vmatprep.subr.mxu0 0.0
      %2800 = vmatpush1.msra.mxu0 %v2750
      %2801 = vmatprep.subr.mxu0 0.0
      %2802 = vmatpush1.msra.mxu0 %v2748
      %2803 = vmatprep.subr.mxu0 0.0
      %2804 = vmatpush1.msra.mxu0 %v2746
      %2805 = vmatprep.subr.mxu0 0.0
      %2806 = vmatpush1.msra.mxu0 %v2744
      %2807 = vmatprep.subr.mxu0 0.0
      %2808 = vmatpush1.msra.mxu0 %v2742
      %2809 = vmatprep.subr.mxu0 0.0
      %2810 = vmatpush1.msra.mxu0 %v2740
      %2811 = vmatprep.subr.mxu0 0.0
      %2812 = vmatpush1.msra.mxu0 %v2738
      %2813 = vmatprep.subr.mxu0 0.0
      %2814 = vmatpush1.msra.mxu0 %v2736
      %2815 = vmatprep.subr.mxu0 0.0
      %2816 = vmatpush2.msra.mxu0 0.0
      %2817 = vmatprep.subr.mxu0 0.0
      %2818 = vmatpush2.msra.mxu0 0.0
      %2819 = vmatprep.subr.mxu0 0.0
      %2820 = vmatpush2.msra.mxu0 0.0
      %2821 = vmatprep.subr.mxu0 0.0
      %2822 = vmatpush2.msra.mxu0 0.0
      %2823 = vmatprep.subr.mxu0 0.0
      %2824 = vmatpush2.msra.mxu0 0.0
      %2825 = vmatprep.subr.mxu0 0.0
      %2826 = vmatpush2.msra.mxu0 0.0
      %2827 = vmatprep.subr.mxu0 0.0
      %2828 = vmatpush2.msra.mxu0 0.0
      %2829 = vmatprep.subr.mxu0 0.0
      %2830 = vmatpush2.msra.mxu0 0.0
      %2831 = vmatprep.subr.mxu0 0.0
      %2832 = vmatpush2.msra.mxu0 0.0
      %2833 = vmatprep.subr.mxu0 0.0
      %2834 = vmatpush2.msra.mxu0 0.0
      %2835 = vmatprep.subr.mxu0 0.0
      %2836 = vmatpush2.msra.mxu0 0.0
      %2837 = vmatprep.subr.mxu0 0.0
      %2838 = vmatpush2.msra.mxu0 0.0
      %2839 = vmatprep.subr.mxu0 0.0
      %2840 = vmatpush2.msra.mxu0 0.0
      %2841 = vmatprep.subr.mxu0 0.0
      %2842 = vmatpush2.msra.mxu0 0.0
      %2843 = vmatprep.subr.mxu0 0.0
      %2844 = vmatpush2.msra.mxu0 0.0
      %2845 = vmatprep.subr.mxu0 0.0
      %2846 = vmatpush2.msra.mxu0 0.0
      %2847 = vmatprep.mubr.f32.mxu0 0.0
      %2848 = vmatmul.mubr.f32.gmra.mxu0 %v2760
      %v2849 = vpop.f32.mrf.mxu0
      %v2850 = vadd.f32 0.0, %v2849
      %v2851 = vpop.f32.mrf.mxu0
      %2852 = vmatprep.mubr.f32.mxu0 0.0
      %2853 = vmatmul.mubr.f32.gmra.mxu0 %v2763
      %v2854 = vpop.f32.mrf.mxu0
      %v2855 = vadd.f32 0.0, %v2854
      %v2856 = vpop.f32.mrf.mxu0
      %2857 = vmatprep.mubr.f32.mxu0 0.0
      %2858 = vmatmul.mubr.f32.gmra.mxu0 %v2766
      %v2859 = vpop.f32.mrf.mxu0
      %v2860 = vadd.f32 0.0, %v2859
      %v2861 = vpop.f32.mrf.mxu0
      %2862 = vmatprep.mubr.f32.mxu0 0.0
      %2863 = vmatmul.mubr.f32.gmra.mxu0 %v2769
      %v2864 = vpop.f32.mrf.mxu0
      %v2865 = vadd.f32 0.0, %v2864
      %v2866 = vpop.f32.mrf.mxu0
      %2867 = vmatprep.mubr.f32.mxu0 0.0
      %2868 = vmatmul.mubr.f32.gmra.mxu0 %v2772
      %v2869 = vpop.f32.mrf.mxu0
      %v2870 = vadd.f32 0.0, %v2869
      %v2871 = vpop.f32.mrf.mxu0
      %2872 = vmatprep.mubr.f32.mxu0 0.0
      %2873 = vmatmul.mubr.f32.gmra.mxu0 %v2775
      %v2874 = vpop.f32.mrf.mxu0
      %v2875 = vadd.f32 0.0, %v2874
      %v2876 = vpop.f32.mrf.mxu0
      %2877 = vmatprep.mubr.f32.mxu0 0.0
      %2878 = vmatmul.mubr.f32.gmra.mxu0 %v2778
      %v2879 = vpop.f32.mrf.mxu0
      %v2880 = vadd.f32 0.0, %v2879
      %v2881 = vpop.f32.mrf.mxu0
      %2882 = vmatprep.mubr.f32.mxu0 0.0
      %2883 = vmatmul.mubr.f32.gmra.mxu0 %v2781
      %v2884 = vpop.f32.mrf.mxu0
      %v2885 = vadd.f32 0.0, %v2884
      %v2886 = vpop.f32.mrf.mxu0
      %2887 = vdwg.mxu0
      %v2889 = vsel %vm980, %v2710, 0
      %v2892 = vsel %vm980, %v2711, 0
      %v2895 = vsel %vm980, %v2712, 0
      %v2898 = vsel %vm980, %v2713, 0
      %v2901 = vsel %vm980, %v2714, 0
      %v2904 = vsel %vm980, %v2715, 0
      %v2907 = vsel %vm980, %v2716, 0
      %v2910 = vsel %vm980, %v2717, 0
      %2912 = vmatprep.subr.mxu0 0.0
      %2913 = vmatpush1.msra.mxu0 0.0
      %2914 = vmatprep.subr.mxu0 0.0
      %2915 = vmatpush1.msra.mxu0 0.0
      %2916 = vmatprep.subr.mxu0 0.0
      %2917 = vmatpush1.msra.mxu0 0.0
      %2918 = vmatprep.subr.mxu0 0.0
      %2919 = vmatpush1.msra.mxu0 0.0
      %2920 = vmatprep.subr.mxu0 0.0
      %2921 = vmatpush1.msra.mxu0 0.0
      %2922 = vmatprep.subr.mxu0 0.0
      %2923 = vmatpush1.msra.mxu0 0.0
      %2924 = vmatprep.subr.mxu0 0.0
      %2925 = vmatpush1.msra.mxu0 0.0
      %2926 = vmatprep.subr.mxu0 0.0
      %2927 = vmatpush1.msra.mxu0 0.0
      %2928 = vmatprep.subr.mxu0 0.0
      %2929 = vmatpush1.msra.mxu0 %v2488
      %2930 = vmatprep.subr.mxu0 0.0
      %2931 = vmatpush1.msra.mxu0 %v2482
      %2932 = vmatprep.subr.mxu0 0.0
      %2933 = vmatpush1.msra.mxu0 %v2476
      %2934 = vmatprep.subr.mxu0 0.0
      %2935 = vmatpush1.msra.mxu0 %v2470
      %2936 = vmatprep.subr.mxu0 0.0
      %2937 = vmatpush1.msra.mxu0 %v2464
      %2938 = vmatprep.subr.mxu0 0.0
      %2939 = vmatpush1.msra.mxu0 %v2458
      %2940 = vmatprep.subr.mxu0 0.0
      %2941 = vmatpush1.msra.mxu0 %v2452
      %2942 = vmatprep.subr.mxu0 0.0
      %2943 = vmatpush1.msra.mxu0 %v2446
      %2944 = vmatprep.subr.mxu0 0.0
      %2945 = vmatpush2.msra.mxu0 0.0
      %2946 = vmatprep.subr.mxu0 0.0
      %2947 = vmatpush2.msra.mxu0 0.0
      %2948 = vmatprep.subr.mxu0 0.0
      %2949 = vmatpush2.msra.mxu0 0.0
      %2950 = vmatprep.subr.mxu0 0.0
      %2951 = vmatpush2.msra.mxu0 0.0
      %2952 = vmatprep.subr.mxu0 0.0
      %2953 = vmatpush2.msra.mxu0 0.0
      %2954 = vmatprep.subr.mxu0 0.0
      %2955 = vmatpush2.msra.mxu0 0.0
      %2956 = vmatprep.subr.mxu0 0.0
      %2957 = vmatpush2.msra.mxu0 0.0
      %2958 = vmatprep.subr.mxu0 0.0
      %2959 = vmatpush2.msra.mxu0 0.0
      %2960 = vmatprep.subr.mxu0 0.0
      %2961 = vmatpush2.msra.mxu0 0.0
      %2962 = vmatprep.subr.mxu0 0.0
      %2963 = vmatpush2.msra.mxu0 0.0
      %2964 = vmatprep.subr.mxu0 0.0
      %2965 = vmatpush2.msra.mxu0 0.0
      %2966 = vmatprep.subr.mxu0 0.0
      %2967 = vmatpush2.msra.mxu0 0.0
      %2968 = vmatprep.subr.mxu0 0.0
      %2969 = vmatpush2.msra.mxu0 0.0
      %2970 = vmatprep.subr.mxu0 0.0
      %2971 = vmatpush2.msra.mxu0 0.0
      %2972 = vmatprep.subr.mxu0 0.0
      %2973 = vmatpush2.msra.mxu0 0.0
      %2974 = vmatprep.subr.mxu0 0.0
      %2975 = vmatpush2.msra.mxu0 0.0
      %2976 = vmatprep.mubr.f32.mxu0 0.0
      %2977 = vmatmul.mubr.f32.gmra.mxu0 %v2889
      %v2978 = vpop.f32.mrf.mxu0
      %v2979 = vadd.f32 %v2850, %v2978
      %v2980 = vpop.f32.mrf.mxu0
      %2981 = vmatprep.mubr.f32.mxu0 0.0
      %2982 = vmatmul.mubr.f32.gmra.mxu0 %v2892
      %v2983 = vpop.f32.mrf.mxu0
      %v2984 = vadd.f32 %v2855, %v2983
      %v2985 = vpop.f32.mrf.mxu0
      %2986 = vmatprep.mubr.f32.mxu0 0.0
      %2987 = vmatmul.mubr.f32.gmra.mxu0 %v2895
      %v2988 = vpop.f32.mrf.mxu0
      %v2989 = vadd.f32 %v2860, %v2988
      %v2990 = vpop.f32.mrf.mxu0
      %2991 = vmatprep.mubr.f32.mxu0 0.0
      %2992 = vmatmul.mubr.f32.gmra.mxu0 %v2898
      %v2993 = vpop.f32.mrf.mxu0
      %v2994 = vadd.f32 %v2865, %v2993
      %v2995 = vpop.f32.mrf.mxu0
      %2996 = vmatprep.mubr.f32.mxu0 0.0
      %2997 = vmatmul.mubr.f32.gmra.mxu0 %v2901
      %v2998 = vpop.f32.mrf.mxu0
      %v2999 = vadd.f32 %v2870, %v2998
      %v3000 = vpop.f32.mrf.mxu0
      %3001 = vmatprep.mubr.f32.mxu0 0.0
      %3002 = vmatmul.mubr.f32.gmra.mxu0 %v2904
      %v3003 = vpop.f32.mrf.mxu0
      %v3004 = vadd.f32 %v2875, %v3003
      %v3005 = vpop.f32.mrf.mxu0
      %3006 = vmatprep.mubr.f32.mxu0 0.0
      %3007 = vmatmul.mubr.f32.gmra.mxu0 %v2907
      %v3008 = vpop.f32.mrf.mxu0
      %v3009 = vadd.f32 %v2880, %v3008
      %v3010 = vpop.f32.mrf.mxu0
      %3011 = vmatprep.mubr.f32.mxu0 0.0
      %3012 = vmatmul.mubr.f32.gmra.mxu0 %v2910
      %v3013 = vpop.f32.mrf.mxu0
      %v3014 = vadd.f32 %v2885, %v3013
      %v3015 = vpop.f32.mrf.mxu0
      %3016 = vdwg.mxu0
      %s3017 = scalar_lea.vmem %s6, 128
      %v3018 = vld [vmem:[%s3017] sm:$0xff]
      %v3019 = vld [vmem:[%s3017 + $0x8] sm:$0xff]
      %v3020 = vld [vmem:[%s3017 + $0x10] sm:$0xff]
      %v3021 = vld [vmem:[%s3017 + $0x18] sm:$0xff]
      %v3022 = vld [vmem:[%s3017 + $0x20] sm:$0xff]
      %v3023 = vld [vmem:[%s3017 + $0x28] sm:$0xff]
      %v3024 = vld [vmem:[%s3017 + $0x30] sm:$0xff]
      %v3025 = vld [vmem:[%s3017 + $0x38] sm:$0xff]
      %v3027 = vsel %vm980, %v3018, 0
      %v3030 = vsel %vm980, %v3019, 0
      %v3033 = vsel %vm980, %v3020, 0
      %v3036 = vsel %vm980, %v3021, 0
      %v3039 = vsel %vm980, %v3022, 0
      %v3042 = vsel %vm980, %v3023, 0
      %v3045 = vsel %vm980, %v3024, 0
      %v3048 = vsel %vm980, %v3025, 0
      %3050 = vmatprep.subr.mxu0 0.0
      %3051 = vmatpush1.msra.mxu0 0.0
      %3052 = vmatprep.subr.mxu0 0.0
      %3053 = vmatpush1.msra.mxu0 0.0
      %3054 = vmatprep.subr.mxu0 0.0
      %3055 = vmatpush1.msra.mxu0 0.0
      %3056 = vmatprep.subr.mxu0 0.0
      %3057 = vmatpush1.msra.mxu0 0.0
      %3058 = vmatprep.subr.mxu0 0.0
      %3059 = vmatpush1.msra.mxu0 0.0
      %3060 = vmatprep.subr.mxu0 0.0
      %3061 = vmatpush1.msra.mxu0 0.0
      %3062 = vmatprep.subr.mxu0 0.0
      %3063 = vmatpush1.msra.mxu0 0.0
      %3064 = vmatprep.subr.mxu0 0.0
      %3065 = vmatpush1.msra.mxu0 0.0
      %3066 = vmatprep.subr.mxu0 0.0
      %3067 = vmatpush1.msra.mxu0 %v2490
      %3068 = vmatprep.subr.mxu0 0.0
      %3069 = vmatpush1.msra.mxu0 %v2484
      %3070 = vmatprep.subr.mxu0 0.0
      %3071 = vmatpush1.msra.mxu0 %v2478
      %3072 = vmatprep.subr.mxu0 0.0
      %3073 = vmatpush1.msra.mxu0 %v2472
      %3074 = vmatprep.subr.mxu0 0.0
      %3075 = vmatpush1.msra.mxu0 %v2466
      %3076 = vmatprep.subr.mxu0 0.0
      %3077 = vmatpush1.msra.mxu0 %v2460
      %3078 = vmatprep.subr.mxu0 0.0
      %3079 = vmatpush1.msra.mxu0 %v2454
      %3080 = vmatprep.subr.mxu0 0.0
      %3081 = vmatpush1.msra.mxu0 %v2448
      %3082 = vmatprep.subr.mxu0 0.0
      %3083 = vmatpush2.msra.mxu0 0.0
      %3084 = vmatprep.subr.mxu0 0.0
      %3085 = vmatpush2.msra.mxu0 0.0
      %3086 = vmatprep.subr.mxu0 0.0
      %3087 = vmatpush2.msra.mxu0 0.0
      %3088 = vmatprep.subr.mxu0 0.0
      %3089 = vmatpush2.msra.mxu0 0.0
      %3090 = vmatprep.subr.mxu0 0.0
      %3091 = vmatpush2.msra.mxu0 0.0
      %3092 = vmatprep.subr.mxu0 0.0
      %3093 = vmatpush2.msra.mxu0 0.0
      %3094 = vmatprep.subr.mxu0 0.0
      %3095 = vmatpush2.msra.mxu0 0.0
      %3096 = vmatprep.subr.mxu0 0.0
      %3097 = vmatpush2.msra.mxu0 0.0
      %3098 = vmatprep.subr.mxu0 0.0
      %3099 = vmatpush2.msra.mxu0 0.0
      %3100 = vmatprep.subr.mxu0 0.0
      %3101 = vmatpush2.msra.mxu0 0.0
      %3102 = vmatprep.subr.mxu0 0.0
      %3103 = vmatpush2.msra.mxu0 0.0
      %3104 = vmatprep.subr.mxu0 0.0
      %3105 = vmatpush2.msra.mxu0 0.0
      %3106 = vmatprep.subr.mxu0 0.0
      %3107 = vmatpush2.msra.mxu0 0.0
      %3108 = vmatprep.subr.mxu0 0.0
      %3109 = vmatpush2.msra.mxu0 0.0
      %3110 = vmatprep.subr.mxu0 0.0
      %3111 = vmatpush2.msra.mxu0 0.0
      %3112 = vmatprep.subr.mxu0 0.0
      %3113 = vmatpush2.msra.mxu0 0.0
      %3114 = vmatprep.mubr.f32.mxu0 0.0
      %3115 = vmatmul.mubr.f32.gmra.mxu0 %v3027
      %v3116 = vpop.f32.mrf.mxu0
      %v3117 = vadd.f32 0.0, %v3116
      %v3118 = vpop.f32.mrf.mxu0
      %3119 = vmatprep.mubr.f32.mxu0 0.0
      %3120 = vmatmul.mubr.f32.gmra.mxu0 %v3030
      %v3121 = vpop.f32.mrf.mxu0
      %v3122 = vadd.f32 0.0, %v3121
      %v3123 = vpop.f32.mrf.mxu0
      %3124 = vmatprep.mubr.f32.mxu0 0.0
      %3125 = vmatmul.mubr.f32.gmra.mxu0 %v3033
      %v3126 = vpop.f32.mrf.mxu0
      %v3127 = vadd.f32 0.0, %v3126
      %v3128 = vpop.f32.mrf.mxu0
      %3129 = vmatprep.mubr.f32.mxu0 0.0
      %3130 = vmatmul.mubr.f32.gmra.mxu0 %v3036
      %v3131 = vpop.f32.mrf.mxu0
      %v3132 = vadd.f32 0.0, %v3131
      %v3133 = vpop.f32.mrf.mxu0
      %3134 = vmatprep.mubr.f32.mxu0 0.0
      %3135 = vmatmul.mubr.f32.gmra.mxu0 %v3039
      %v3136 = vpop.f32.mrf.mxu0
      %v3137 = vadd.f32 0.0, %v3136
      %v3138 = vpop.f32.mrf.mxu0
      %3139 = vmatprep.mubr.f32.mxu0 0.0
      %3140 = vmatmul.mubr.f32.gmra.mxu0 %v3042
      %v3141 = vpop.f32.mrf.mxu0
      %v3142 = vadd.f32 0.0, %v3141
      %v3143 = vpop.f32.mrf.mxu0
      %3144 = vmatprep.mubr.f32.mxu0 0.0
      %3145 = vmatmul.mubr.f32.gmra.mxu0 %v3045
      %v3146 = vpop.f32.mrf.mxu0
      %v3147 = vadd.f32 0.0, %v3146
      %v3148 = vpop.f32.mrf.mxu0
      %3149 = vmatprep.mubr.f32.mxu0 0.0
      %3150 = vmatmul.mubr.f32.gmra.mxu0 %v3048
      %v3151 = vpop.f32.mrf.mxu0
      %v3152 = vadd.f32 0.0, %v3151
      %v3153 = vpop.f32.mrf.mxu0
      %3154 = vdwg.mxu0
      %v3155 = vadd.f32 %v2979, %v3117
      %v3156 = vadd.f32 %v2984, %v3122
      %v3157 = vadd.f32 %v2989, %v3127
      %v3158 = vadd.f32 %v2994, %v3132
      %v3159 = vadd.f32 %v2999, %v3137
      %v3160 = vadd.f32 %v3004, %v3142
      %v3161 = vadd.f32 %v3009, %v3147
      %v3162 = vadd.f32 %v3014, %v3152
      %s3163 = scalar_lea.vmem %s6, 192
      %v3164 = vld [vmem:[%s3163] sm:$0xff]
      %v3165 = vld [vmem:[%s3163 + $0x8] sm:$0xff]
      %v3166 = vld [vmem:[%s3163 + $0x10] sm:$0xff]
      %v3167 = vld [vmem:[%s3163 + $0x18] sm:$0xff]
      %v3168 = vld [vmem:[%s3163 + $0x20] sm:$0xff]
      %v3169 = vld [vmem:[%s3163 + $0x28] sm:$0xff]
      %v3170 = vld [vmem:[%s3163 + $0x30] sm:$0xff]
      %v3171 = vld [vmem:[%s3163 + $0x38] sm:$0xff]
      %3180 = vrot.lane.b32.xlu0 %v2448, 64
      %v3181 = vpop.permute.xlu0 %3180
      %3182 = vrot.lane.b32.xlu0 %v2454, 64
      %v3183 = vpop.permute.xlu0 %3182
      %3184 = vrot.lane.b32.xlu0 %v2460, 64
      %v3185 = vpop.permute.xlu0 %3184
      %3186 = vrot.lane.b32.xlu0 %v2466, 64
      %v3187 = vpop.permute.xlu0 %3186
      %3188 = vrot.lane.b32.xlu0 %v2472, 64
      %v3189 = vpop.permute.xlu0 %3188
      %3190 = vrot.lane.b32.xlu0 %v2478, 64
      %v3191 = vpop.permute.xlu0 %3190
      %3192 = vrot.lane.b32.xlu0 %v2484, 64
      %v3193 = vpop.permute.xlu0 %3192
      %3194 = vrot.lane.b32.xlu0 %v2490, 64
      %v3195 = vpop.permute.xlu0 %3194
      %v3205 = vsel %vm980, %v3164, 0
      %v3208 = vsel %vm980, %v3165, 0
      %v3211 = vsel %vm980, %v3166, 0
      %v3214 = vsel %vm980, %v3167, 0
      %v3217 = vsel %vm980, %v3168, 0
      %v3220 = vsel %vm980, %v3169, 0
      %v3223 = vsel %vm980, %v3170, 0
      %v3226 = vsel %vm980, %v3171, 0
      %3228 = vmatprep.subr.mxu0 0.0
      %3229 = vmatpush1.msra.mxu0 0.0
      %3230 = vmatprep.subr.mxu0 0.0
      %3231 = vmatpush1.msra.mxu0 0.0
      %3232 = vmatprep.subr.mxu0 0.0
      %3233 = vmatpush1.msra.mxu0 0.0
      %3234 = vmatprep.subr.mxu0 0.0
      %3235 = vmatpush1.msra.mxu0 0.0
      %3236 = vmatprep.subr.mxu0 0.0
      %3237 = vmatpush1.msra.mxu0 0.0
      %3238 = vmatprep.subr.mxu0 0.0
      %3239 = vmatpush1.msra.mxu0 0.0
      %3240 = vmatprep.subr.mxu0 0.0
      %3241 = vmatpush1.msra.mxu0 0.0
      %3242 = vmatprep.subr.mxu0 0.0
      %3243 = vmatpush1.msra.mxu0 0.0
      %3244 = vmatprep.subr.mxu0 0.0
      %3245 = vmatpush1.msra.mxu0 %v3195
      %3246 = vmatprep.subr.mxu0 0.0
      %3247 = vmatpush1.msra.mxu0 %v3193
      %3248 = vmatprep.subr.mxu0 0.0
      %3249 = vmatpush1.msra.mxu0 %v3191
      %3250 = vmatprep.subr.mxu0 0.0
      %3251 = vmatpush1.msra.mxu0 %v3189
      %3252 = vmatprep.subr.mxu0 0.0
      %3253 = vmatpush1.msra.mxu0 %v3187
      %3254 = vmatprep.subr.mxu0 0.0
      %3255 = vmatpush1.msra.mxu0 %v3185
      %3256 = vmatprep.subr.mxu0 0.0
      %3257 = vmatpush1.msra.mxu0 %v3183
      %3258 = vmatprep.subr.mxu0 0.0
      %3259 = vmatpush1.msra.mxu0 %v3181
      %3260 = vmatprep.subr.mxu0 0.0
      %3261 = vmatpush2.msra.mxu0 0.0
      %3262 = vmatprep.subr.mxu0 0.0
      %3263 = vmatpush2.msra.mxu0 0.0
      %3264 = vmatprep.subr.mxu0 0.0
      %3265 = vmatpush2.msra.mxu0 0.0
      %3266 = vmatprep.subr.mxu0 0.0
      %3267 = vmatpush2.msra.mxu0 0.0
      %3268 = vmatprep.subr.mxu0 0.0
      %3269 = vmatpush2.msra.mxu0 0.0
      %3270 = vmatprep.subr.mxu0 0.0
      %3271 = vmatpush2.msra.mxu0 0.0
      %3272 = vmatprep.subr.mxu0 0.0
      %3273 = vmatpush2.msra.mxu0 0.0
      %3274 = vmatprep.subr.mxu0 0.0
      %3275 = vmatpush2.msra.mxu0 0.0
      %3276 = vmatprep.subr.mxu0 0.0
      %3277 = vmatpush2.msra.mxu0 0.0
      %3278 = vmatprep.subr.mxu0 0.0
      %3279 = vmatpush2.msra.mxu0 0.0
      %3280 = vmatprep.subr.mxu0 0.0
      %3281 = vmatpush2.msra.mxu0 0.0
      %3282 = vmatprep.subr.mxu0 0.0
      %3283 = vmatpush2.msra.mxu0 0.0
      %3284 = vmatprep.subr.mxu0 0.0
      %3285 = vmatpush2.msra.mxu0 0.0
      %3286 = vmatprep.subr.mxu0 0.0
      %3287 = vmatpush2.msra.mxu0 0.0
      %3288 = vmatprep.subr.mxu0 0.0
      %3289 = vmatpush2.msra.mxu0 0.0
      %3290 = vmatprep.subr.mxu0 0.0
      %3291 = vmatpush2.msra.mxu0 0.0
      %3292 = vmatprep.mubr.f32.mxu0 0.0
      %3293 = vmatmul.mubr.f32.gmra.mxu0 %v3205
      %v3294 = vpop.f32.mrf.mxu0
      %v3295 = vadd.f32 0.0, %v3294
      %v3296 = vpop.f32.mrf.mxu0
      %3297 = vmatprep.mubr.f32.mxu0 0.0
      %3298 = vmatmul.mubr.f32.gmra.mxu0 %v3208
      %v3299 = vpop.f32.mrf.mxu0
      %v3300 = vadd.f32 0.0, %v3299
      %v3301 = vpop.f32.mrf.mxu0
      %3302 = vmatprep.mubr.f32.mxu0 0.0
      %3303 = vmatmul.mubr.f32.gmra.mxu0 %v3211
      %v3304 = vpop.f32.mrf.mxu0
      %v3305 = vadd.f32 0.0, %v3304
      %v3306 = vpop.f32.mrf.mxu0
      %3307 = vmatprep.mubr.f32.mxu0 0.0
      %3308 = vmatmul.mubr.f32.gmra.mxu0 %v3214
      %v3309 = vpop.f32.mrf.mxu0
      %v3310 = vadd.f32 0.0, %v3309
      %v3311 = vpop.f32.mrf.mxu0
      %3312 = vmatprep.mubr.f32.mxu0 0.0
      %3313 = vmatmul.mubr.f32.gmra.mxu0 %v3217
      %v3314 = vpop.f32.mrf.mxu0
      %v3315 = vadd.f32 0.0, %v3314
      %v3316 = vpop.f32.mrf.mxu0
      %3317 = vmatprep.mubr.f32.mxu0 0.0
      %3318 = vmatmul.mubr.f32.gmra.mxu0 %v3220
      %v3319 = vpop.f32.mrf.mxu0
      %v3320 = vadd.f32 0.0, %v3319
      %v3321 = vpop.f32.mrf.mxu0
      %3322 = vmatprep.mubr.f32.mxu0 0.0
      %3323 = vmatmul.mubr.f32.gmra.mxu0 %v3223
      %v3324 = vpop.f32.mrf.mxu0
      %v3325 = vadd.f32 0.0, %v3324
      %v3326 = vpop.f32.mrf.mxu0
      %3327 = vmatprep.mubr.f32.mxu0 0.0
      %3328 = vmatmul.mubr.f32.gmra.mxu0 %v3226
      %v3329 = vpop.f32.mrf.mxu0
      %v3330 = vadd.f32 0.0, %v3329
      %v3331 = vpop.f32.mrf.mxu0
      %3332 = vdwg.mxu0
      %v3333 = vadd.f32 %v3155, %v3295
      %v3334 = vadd.f32 %v3156, %v3300
      %v3335 = vadd.f32 %v3157, %v3305
      %v3336 = vadd.f32 %v3158, %v3310
      %v3337 = vadd.f32 %v3159, %v3315
      %v3338 = vadd.f32 %v3160, %v3320
      %v3339 = vadd.f32 %v3161, %v3325
      %v3340 = vadd.f32 %v3162, %v3330
      %s3341 = scalar_lea.vmem %s6, 256
      %v3342 = vld [vmem:[%s3341] sm:$0xff]
      %v3343 = vld [vmem:[%s3341 + $0x8] sm:$0xff]
      %v3344 = vld [vmem:[%s3341 + $0x10] sm:$0xff]
      %v3345 = vld [vmem:[%s3341 + $0x18] sm:$0xff]
      %v3346 = vld [vmem:[%s3341 + $0x20] sm:$0xff]
      %v3347 = vld [vmem:[%s3341 + $0x28] sm:$0xff]
      %v3348 = vld [vmem:[%s3341 + $0x30] sm:$0xff]
      %v3349 = vld [vmem:[%s3341 + $0x38] sm:$0xff]
      %v3351 = vsel %vm980, %v3342, 0
      %v3354 = vsel %vm980, %v3343, 0
      %v3357 = vsel %vm980, %v3344, 0
      %v3360 = vsel %vm980, %v3345, 0
      %v3363 = vsel %vm980, %v3346, 0
      %v3366 = vsel %vm980, %v3347, 0
      %v3369 = vsel %vm980, %v3348, 0
      %v3372 = vsel %vm980, %v3349, 0
      %3374 = vmatprep.subr.mxu0 0.0
      %3375 = vmatpush1.msra.mxu0 0.0
      %3376 = vmatprep.subr.mxu0 0.0
      %3377 = vmatpush1.msra.mxu0 0.0
      %3378 = vmatprep.subr.mxu0 0.0
      %3379 = vmatpush1.msra.mxu0 0.0
      %3380 = vmatprep.subr.mxu0 0.0
      %3381 = vmatpush1.msra.mxu0 0.0
      %3382 = vmatprep.subr.mxu0 0.0
      %3383 = vmatpush1.msra.mxu0 0.0
      %3384 = vmatprep.subr.mxu0 0.0
      %3385 = vmatpush1.msra.mxu0 0.0
      %3386 = vmatprep.subr.mxu0 0.0
      %3387 = vmatpush1.msra.mxu0 0.0
      %3388 = vmatprep.subr.mxu0 0.0
      %3389 = vmatpush1.msra.mxu0 0.0
      %3390 = vmatprep.subr.mxu0 0.0
      %3391 = vmatpush1.msra.mxu0 %v2601
      %3392 = vmatprep.subr.mxu0 0.0
      %3393 = vmatpush1.msra.mxu0 %v2595
      %3394 = vmatprep.subr.mxu0 0.0
      %3395 = vmatpush1.msra.mxu0 %v2589
      %3396 = vmatprep.subr.mxu0 0.0
      %3397 = vmatpush1.msra.mxu0 %v2583
      %3398 = vmatprep.subr.mxu0 0.0
      %3399 = vmatpush1.msra.mxu0 %v2577
      %3400 = vmatprep.subr.mxu0 0.0
      %3401 = vmatpush1.msra.mxu0 %v2571
      %3402 = vmatprep.subr.mxu0 0.0
      %3403 = vmatpush1.msra.mxu0 %v2565
      %3404 = vmatprep.subr.mxu0 0.0
      %3405 = vmatpush1.msra.mxu0 %v2559
      %3406 = vmatprep.subr.mxu0 0.0
      %3407 = vmatpush2.msra.mxu0 0.0
      %3408 = vmatprep.subr.mxu0 0.0
      %3409 = vmatpush2.msra.mxu0 0.0
      %3410 = vmatprep.subr.mxu0 0.0
      %3411 = vmatpush2.msra.mxu0 0.0
      %3412 = vmatprep.subr.mxu0 0.0
      %3413 = vmatpush2.msra.mxu0 0.0
      %3414 = vmatprep.subr.mxu0 0.0
      %3415 = vmatpush2.msra.mxu0 0.0
      %3416 = vmatprep.subr.mxu0 0.0
      %3417 = vmatpush2.msra.mxu0 0.0
      %3418 = vmatprep.subr.mxu0 0.0
      %3419 = vmatpush2.msra.mxu0 0.0
      %3420 = vmatprep.subr.mxu0 0.0
      %3421 = vmatpush2.msra.mxu0 0.0
      %3422 = vmatprep.subr.mxu0 0.0
      %3423 = vmatpush2.msra.mxu0 0.0
      %3424 = vmatprep.subr.mxu0 0.0
      %3425 = vmatpush2.msra.mxu0 0.0
      %3426 = vmatprep.subr.mxu0 0.0
      %3427 = vmatpush2.msra.mxu0 0.0
      %3428 = vmatprep.subr.mxu0 0.0
      %3429 = vmatpush2.msra.mxu0 0.0
      %3430 = vmatprep.subr.mxu0 0.0
      %3431 = vmatpush2.msra.mxu0 0.0
      %3432 = vmatprep.subr.mxu0 0.0
      %3433 = vmatpush2.msra.mxu0 0.0
      %3434 = vmatprep.subr.mxu0 0.0
      %3435 = vmatpush2.msra.mxu0 0.0
      %3436 = vmatprep.subr.mxu0 0.0
      %3437 = vmatpush2.msra.mxu0 0.0
      %3438 = vmatprep.mubr.f32.mxu0 0.0
      %3439 = vmatmul.mubr.f32.gmra.mxu0 %v3351
      %v3440 = vpop.f32.mrf.mxu0
      %v3441 = vadd.f32 0.0, %v3440
      %v3442 = vpop.f32.mrf.mxu0
      %3443 = vmatprep.mubr.f32.mxu0 0.0
      %3444 = vmatmul.mubr.f32.gmra.mxu0 %v3354
      %v3445 = vpop.f32.mrf.mxu0
      %v3446 = vadd.f32 0.0, %v3445
      %v3447 = vpop.f32.mrf.mxu0
      %3448 = vmatprep.mubr.f32.mxu0 0.0
      %3449 = vmatmul.mubr.f32.gmra.mxu0 %v3357
      %v3450 = vpop.f32.mrf.mxu0
      %v3451 = vadd.f32 0.0, %v3450
      %v3452 = vpop.f32.mrf.mxu0
      %3453 = vmatprep.mubr.f32.mxu0 0.0
      %3454 = vmatmul.mubr.f32.gmra.mxu0 %v3360
      %v3455 = vpop.f32.mrf.mxu0
      %v3456 = vadd.f32 0.0, %v3455
      %v3457 = vpop.f32.mrf.mxu0
      %3458 = vmatprep.mubr.f32.mxu0 0.0
      %3459 = vmatmul.mubr.f32.gmra.mxu0 %v3363
      %v3460 = vpop.f32.mrf.mxu0
      %v3461 = vadd.f32 0.0, %v3460
      %v3462 = vpop.f32.mrf.mxu0
      %3463 = vmatprep.mubr.f32.mxu0 0.0
      %3464 = vmatmul.mubr.f32.gmra.mxu0 %v3366
      %v3465 = vpop.f32.mrf.mxu0
      %v3466 = vadd.f32 0.0, %v3465
      %v3467 = vpop.f32.mrf.mxu0
      %3468 = vmatprep.mubr.f32.mxu0 0.0
      %3469 = vmatmul.mubr.f32.gmra.mxu0 %v3369
      %v3470 = vpop.f32.mrf.mxu0
      %v3471 = vadd.f32 0.0, %v3470
      %v3472 = vpop.f32.mrf.mxu0
      %3473 = vmatprep.mubr.f32.mxu0 0.0
      %3474 = vmatmul.mubr.f32.gmra.mxu0 %v3372
      %v3475 = vpop.f32.mrf.mxu0
      %v3476 = vadd.f32 0.0, %v3475
      %v3477 = vpop.f32.mrf.mxu0
      %3478 = vdwg.mxu0
      %v3479 = vadd.f32 %v3333, %v3441
      %v3480 = vadd.f32 %v3334, %v3446
      %v3481 = vadd.f32 %v3335, %v3451
      %v3482 = vadd.f32 %v3336, %v3456
      %v3483 = vadd.f32 %v3337, %v3461
      %v3484 = vadd.f32 %v3338, %v3466
      %v3485 = vadd.f32 %v3339, %v3471
      %v3486 = vadd.f32 %v3340, %v3476
      %s3487 = scalar_lea.vmem %s6, 320
      %v3488 = vld [vmem:[%s3487] sm:$0xff]
      %v3489 = vld [vmem:[%s3487 + $0x8] sm:$0xff]
      %v3490 = vld [vmem:[%s3487 + $0x10] sm:$0xff]
      %v3491 = vld [vmem:[%s3487 + $0x18] sm:$0xff]
      %v3492 = vld [vmem:[%s3487 + $0x20] sm:$0xff]
      %v3493 = vld [vmem:[%s3487 + $0x28] sm:$0xff]
      %v3494 = vld [vmem:[%s3487 + $0x30] sm:$0xff]
      %v3495 = vld [vmem:[%s3487 + $0x38] sm:$0xff]
      %3504 = vrot.lane.b32.xlu0 %v2559, 64
      %v3505 = vpop.permute.xlu0 %3504
      %3506 = vrot.lane.b32.xlu0 %v2565, 64
      %v3507 = vpop.permute.xlu0 %3506
      %3508 = vrot.lane.b32.xlu0 %v2571, 64
      %v3509 = vpop.permute.xlu0 %3508
      %3510 = vrot.lane.b32.xlu0 %v2577, 64
      %v3511 = vpop.permute.xlu0 %3510
      %3512 = vrot.lane.b32.xlu0 %v2583, 64
      %v3513 = vpop.permute.xlu0 %3512
      %3514 = vrot.lane.b32.xlu0 %v2589, 64
      %v3515 = vpop.permute.xlu0 %3514
      %3516 = vrot.lane.b32.xlu0 %v2595, 64
      %v3517 = vpop.permute.xlu0 %3516
      %3518 = vrot.lane.b32.xlu0 %v2601, 64
      %v3519 = vpop.permute.xlu0 %3518
      %v3529 = vsel %vm980, %v3488, 0
      %v3532 = vsel %vm980, %v3489, 0
      %v3535 = vsel %vm980, %v3490, 0
      %v3538 = vsel %vm980, %v3491, 0
      %v3541 = vsel %vm980, %v3492, 0
      %v3544 = vsel %vm980, %v3493, 0
      %v3547 = vsel %vm980, %v3494, 0
      %v3550 = vsel %vm980, %v3495, 0
      %3552 = vmatprep.subr.mxu0 0.0
      %3553 = vmatpush1.msra.mxu0 0.0
      %3554 = vmatprep.subr.mxu0 0.0
      %3555 = vmatpush1.msra.mxu0 0.0
      %3556 = vmatprep.subr.mxu0 0.0
      %3557 = vmatpush1.msra.mxu0 0.0
      %3558 = vmatprep.subr.mxu0 0.0
      %3559 = vmatpush1.msra.mxu0 0.0
      %3560 = vmatprep.subr.mxu0 0.0
      %3561 = vmatpush1.msra.mxu0 0.0
      %3562 = vmatprep.subr.mxu0 0.0
      %3563 = vmatpush1.msra.mxu0 0.0
      %3564 = vmatprep.subr.mxu0 0.0
      %3565 = vmatpush1.msra.mxu0 0.0
      %3566 = vmatprep.subr.mxu0 0.0
      %3567 = vmatpush1.msra.mxu0 0.0
      %3568 = vmatprep.subr.mxu0 0.0
      %3569 = vmatpush1.msra.mxu0 %v3519
      %3570 = vmatprep.subr.mxu0 0.0
      %3571 = vmatpush1.msra.mxu0 %v3517
      %3572 = vmatprep.subr.mxu0 0.0
      %3573 = vmatpush1.msra.mxu0 %v3515
      %3574 = vmatprep.subr.mxu0 0.0
      %3575 = vmatpush1.msra.mxu0 %v3513
      %3576 = vmatprep.subr.mxu0 0.0
      %3577 = vmatpush1.msra.mxu0 %v3511
      %3578 = vmatprep.subr.mxu0 0.0
      %3579 = vmatpush1.msra.mxu0 %v3509
      %3580 = vmatprep.subr.mxu0 0.0
      %3581 = vmatpush1.msra.mxu0 %v3507
      %3582 = vmatprep.subr.mxu0 0.0
      %3583 = vmatpush1.msra.mxu0 %v3505
      %3584 = vmatprep.subr.mxu0 0.0
      %3585 = vmatpush2.msra.mxu0 0.0
      %3586 = vmatprep.subr.mxu0 0.0
      %3587 = vmatpush2.msra.mxu0 0.0
      %3588 = vmatprep.subr.mxu0 0.0
      %3589 = vmatpush2.msra.mxu0 0.0
      %3590 = vmatprep.subr.mxu0 0.0
      %3591 = vmatpush2.msra.mxu0 0.0
      %3592 = vmatprep.subr.mxu0 0.0
      %3593 = vmatpush2.msra.mxu0 0.0
      %3594 = vmatprep.subr.mxu0 0.0
      %3595 = vmatpush2.msra.mxu0 0.0
      %3596 = vmatprep.subr.mxu0 0.0
      %3597 = vmatpush2.msra.mxu0 0.0
      %3598 = vmatprep.subr.mxu0 0.0
      %3599 = vmatpush2.msra.mxu0 0.0
      %3600 = vmatprep.subr.mxu0 0.0
      %3601 = vmatpush2.msra.mxu0 0.0
      %3602 = vmatprep.subr.mxu0 0.0
      %3603 = vmatpush2.msra.mxu0 0.0
      %3604 = vmatprep.subr.mxu0 0.0
      %3605 = vmatpush2.msra.mxu0 0.0
      %3606 = vmatprep.subr.mxu0 0.0
      %3607 = vmatpush2.msra.mxu0 0.0
      %3608 = vmatprep.subr.mxu0 0.0
      %3609 = vmatpush2.msra.mxu0 0.0
      %3610 = vmatprep.subr.mxu0 0.0
      %3611 = vmatpush2.msra.mxu0 0.0
      %3612 = vmatprep.subr.mxu0 0.0
      %3613 = vmatpush2.msra.mxu0 0.0
      %3614 = vmatprep.subr.mxu0 0.0
      %3615 = vmatpush2.msra.mxu0 0.0
      %3616 = vmatprep.mubr.f32.mxu0 0.0
      %3617 = vmatmul.mubr.f32.gmra.mxu0 %v3529
      %v3618 = vpop.f32.mrf.mxu0
      %v3619 = vadd.f32 0.0, %v3618
      %v3620 = vpop.f32.mrf.mxu0
      %3621 = vmatprep.mubr.f32.mxu0 0.0
      %3622 = vmatmul.mubr.f32.gmra.mxu0 %v3532
      %v3623 = vpop.f32.mrf.mxu0
      %v3624 = vadd.f32 0.0, %v3623
      %v3625 = vpop.f32.mrf.mxu0
      %3626 = vmatprep.mubr.f32.mxu0 0.0
      %3627 = vmatmul.mubr.f32.gmra.mxu0 %v3535
      %v3628 = vpop.f32.mrf.mxu0
      %v3629 = vadd.f32 0.0, %v3628
      %v3630 = vpop.f32.mrf.mxu0
      %3631 = vmatprep.mubr.f32.mxu0 0.0
      %3632 = vmatmul.mubr.f32.gmra.mxu0 %v3538
      %v3633 = vpop.f32.mrf.mxu0
      %v3634 = vadd.f32 0.0, %v3633
      %v3635 = vpop.f32.mrf.mxu0
      %3636 = vmatprep.mubr.f32.mxu0 0.0
      %3637 = vmatmul.mubr.f32.gmra.mxu0 %v3541
      %v3638 = vpop.f32.mrf.mxu0
      %v3639 = vadd.f32 0.0, %v3638
      %v3640 = vpop.f32.mrf.mxu0
      %3641 = vmatprep.mubr.f32.mxu0 0.0
      %3642 = vmatmul.mubr.f32.gmra.mxu0 %v3544
      %v3643 = vpop.f32.mrf.mxu0
      %v3644 = vadd.f32 0.0, %v3643
      %v3645 = vpop.f32.mrf.mxu0
      %3646 = vmatprep.mubr.f32.mxu0 0.0
      %3647 = vmatmul.mubr.f32.gmra.mxu0 %v3547
      %v3648 = vpop.f32.mrf.mxu0
      %v3649 = vadd.f32 0.0, %v3648
      %v3650 = vpop.f32.mrf.mxu0
      %3651 = vmatprep.mubr.f32.mxu0 0.0
      %3652 = vmatmul.mubr.f32.gmra.mxu0 %v3550
      %v3653 = vpop.f32.mrf.mxu0
      %v3654 = vadd.f32 0.0, %v3653
      %v3655 = vpop.f32.mrf.mxu0
      %3656 = vdwg.mxu0
      %v3657 = vadd.f32 %v3479, %v3619
      %v3658 = vadd.f32 %v3480, %v3624
      %v3659 = vadd.f32 %v3481, %v3629
      %v3660 = vadd.f32 %v3482, %v3634
      %v3661 = vadd.f32 %v3483, %v3639
      %v3662 = vadd.f32 %v3484, %v3644
      %v3663 = vadd.f32 %v3485, %v3649
      %v3664 = vadd.f32 %v3486, %v3654
      %s3665 = scalar_lea.vmem %s6, 384
      %v3666 = vld [vmem:[%s3665] sm:$0xff]
      %v3667 = vld [vmem:[%s3665 + $0x8] sm:$0xff]
      %v3668 = vld [vmem:[%s3665 + $0x10] sm:$0xff]
      %v3669 = vld [vmem:[%s3665 + $0x18] sm:$0xff]
      %v3670 = vld [vmem:[%s3665 + $0x20] sm:$0xff]
      %v3671 = vld [vmem:[%s3665 + $0x28] sm:$0xff]
      %v3672 = vld [vmem:[%s3665 + $0x30] sm:$0xff]
      %v3673 = vld [vmem:[%s3665 + $0x38] sm:$0xff]
      %v3675 = vsel %vm980, %v3666, 0
      %v3678 = vsel %vm980, %v3667, 0
      %v3681 = vsel %vm980, %v3668, 0
      %v3684 = vsel %vm980, %v3669, 0
      %v3687 = vsel %vm980, %v3670, 0
      %v3690 = vsel %vm980, %v3671, 0
      %v3693 = vsel %vm980, %v3672, 0
      %v3696 = vsel %vm980, %v3673, 0
      %3698 = vmatprep.subr.mxu0 0.0
      %3699 = vmatpush1.msra.mxu0 0.0
      %3700 = vmatprep.subr.mxu0 0.0
      %3701 = vmatpush1.msra.mxu0 0.0
      %3702 = vmatprep.subr.mxu0 0.0
      %3703 = vmatpush1.msra.mxu0 0.0
      %3704 = vmatprep.subr.mxu0 0.0
      %3705 = vmatpush1.msra.mxu0 0.0
      %3706 = vmatprep.subr.mxu0 0.0
      %3707 = vmatpush1.msra.mxu0 0.0
      %3708 = vmatprep.subr.mxu0 0.0
      %3709 = vmatpush1.msra.mxu0 0.0
      %3710 = vmatprep.subr.mxu0 0.0
      %3711 = vmatpush1.msra.mxu0 0.0
      %3712 = vmatprep.subr.mxu0 0.0
      %3713 = vmatpush1.msra.mxu0 0.0
      %3714 = vmatprep.subr.mxu0 0.0
      %3715 = vmatpush1.msra.mxu0 %v2603
      %3716 = vmatprep.subr.mxu0 0.0
      %3717 = vmatpush1.msra.mxu0 %v2597
      %3718 = vmatprep.subr.mxu0 0.0
      %3719 = vmatpush1.msra.mxu0 %v2591
      %3720 = vmatprep.subr.mxu0 0.0
      %3721 = vmatpush1.msra.mxu0 %v2585
      %3722 = vmatprep.subr.mxu0 0.0
      %3723 = vmatpush1.msra.mxu0 %v2579
      %3724 = vmatprep.subr.mxu0 0.0
      %3725 = vmatpush1.msra.mxu0 %v2573
      %3726 = vmatprep.subr.mxu0 0.0
      %3727 = vmatpush1.msra.mxu0 %v2567
      %3728 = vmatprep.subr.mxu0 0.0
      %3729 = vmatpush1.msra.mxu0 %v2561
      %3730 = vmatprep.subr.mxu0 0.0
      %3731 = vmatpush2.msra.mxu0 0.0
      %3732 = vmatprep.subr.mxu0 0.0
      %3733 = vmatpush2.msra.mxu0 0.0
      %3734 = vmatprep.subr.mxu0 0.0
      %3735 = vmatpush2.msra.mxu0 0.0
      %3736 = vmatprep.subr.mxu0 0.0
      %3737 = vmatpush2.msra.mxu0 0.0
      %3738 = vmatprep.subr.mxu0 0.0
      %3739 = vmatpush2.msra.mxu0 0.0
      %3740 = vmatprep.subr.mxu0 0.0
      %3741 = vmatpush2.msra.mxu0 0.0
      %3742 = vmatprep.subr.mxu0 0.0
      %3743 = vmatpush2.msra.mxu0 0.0
      %3744 = vmatprep.subr.mxu0 0.0
      %3745 = vmatpush2.msra.mxu0 0.0
      %3746 = vmatprep.subr.mxu0 0.0
      %3747 = vmatpush2.msra.mxu0 0.0
      %3748 = vmatprep.subr.mxu0 0.0
      %3749 = vmatpush2.msra.mxu0 0.0
      %3750 = vmatprep.subr.mxu0 0.0
      %3751 = vmatpush2.msra.mxu0 0.0
      %3752 = vmatprep.subr.mxu0 0.0
      %3753 = vmatpush2.msra.mxu0 0.0
      %3754 = vmatprep.subr.mxu0 0.0
      %3755 = vmatpush2.msra.mxu0 0.0
      %3756 = vmatprep.subr.mxu0 0.0
      %3757 = vmatpush2.msra.mxu0 0.0
      %3758 = vmatprep.subr.mxu0 0.0
      %3759 = vmatpush2.msra.mxu0 0.0
      %3760 = vmatprep.subr.mxu0 0.0
      %3761 = vmatpush2.msra.mxu0 0.0
      %3762 = vmatprep.mubr.f32.mxu0 0.0
      %3763 = vmatmul.mubr.f32.gmra.mxu0 %v3675
      %v3764 = vpop.f32.mrf.mxu0
      %v3765 = vadd.f32 0.0, %v3764
      %v3766 = vpop.f32.mrf.mxu0
      %3767 = vmatprep.mubr.f32.mxu0 0.0
      %3768 = vmatmul.mubr.f32.gmra.mxu0 %v3678
      %v3769 = vpop.f32.mrf.mxu0
      %v3770 = vadd.f32 0.0, %v3769
      %v3771 = vpop.f32.mrf.mxu0
      %3772 = vmatprep.mubr.f32.mxu0 0.0
      %3773 = vmatmul.mubr.f32.gmra.mxu0 %v3681
      %v3774 = vpop.f32.mrf.mxu0
      %v3775 = vadd.f32 0.0, %v3774
      %v3776 = vpop.f32.mrf.mxu0
      %3777 = vmatprep.mubr.f32.mxu0 0.0
      %3778 = vmatmul.mubr.f32.gmra.mxu0 %v3684
      %v3779 = vpop.f32.mrf.mxu0
      %v3780 = vadd.f32 0.0, %v3779
      %v3781 = vpop.f32.mrf.mxu0
      %3782 = vmatprep.mubr.f32.mxu0 0.0
      %3783 = vmatmul.mubr.f32.gmra.mxu0 %v3687
      %v3784 = vpop.f32.mrf.mxu0
      %v3785 = vadd.f32 0.0, %v3784
      %v3786 = vpop.f32.mrf.mxu0
      %3787 = vmatprep.mubr.f32.mxu0 0.0
      %3788 = vmatmul.mubr.f32.gmra.mxu0 %v3690
      %v3789 = vpop.f32.mrf.mxu0
      %v3790 = vadd.f32 0.0, %v3789
      %v3791 = vpop.f32.mrf.mxu0
      %3792 = vmatprep.mubr.f32.mxu0 0.0
      %3793 = vmatmul.mubr.f32.gmra.mxu0 %v3693
      %v3794 = vpop.f32.mrf.mxu0
      %v3795 = vadd.f32 0.0, %v3794
      %v3796 = vpop.f32.mrf.mxu0
      %3797 = vmatprep.mubr.f32.mxu0 0.0
      %3798 = vmatmul.mubr.f32.gmra.mxu0 %v3696
      %v3799 = vpop.f32.mrf.mxu0
      %v3800 = vadd.f32 0.0, %v3799
      %v3801 = vpop.f32.mrf.mxu0
      %3802 = vdwg.mxu0
      %v3803 = vadd.f32 %v3657, %v3765
      %v3804 = vadd.f32 %v3658, %v3770
      %v3805 = vadd.f32 %v3659, %v3775
      %v3806 = vadd.f32 %v3660, %v3780
      %v3807 = vadd.f32 %v3661, %v3785
      %v3808 = vadd.f32 %v3662, %v3790
      %v3809 = vadd.f32 %v3663, %v3795
      %v3810 = vadd.f32 %v3664, %v3800
      %s3811 = scalar_lea.vmem %s6, 448
      %v3812 = vld [vmem:[%s3811] sm:$0xff]
      %v3813 = vld [vmem:[%s3811 + $0x8] sm:$0xff]
      %v3814 = vld [vmem:[%s3811 + $0x10] sm:$0xff]
      %v3815 = vld [vmem:[%s3811 + $0x18] sm:$0xff]
      %v3816 = vld [vmem:[%s3811 + $0x20] sm:$0xff]
      %v3817 = vld [vmem:[%s3811 + $0x28] sm:$0xff]
      %v3818 = vld [vmem:[%s3811 + $0x30] sm:$0xff]
      %v3819 = vld [vmem:[%s3811 + $0x38] sm:$0xff]
      %3828 = vrot.lane.b32.xlu0 %v2561, 64
      %v3829 = vpop.permute.xlu0 %3828
      %3830 = vrot.lane.b32.xlu0 %v2567, 64
      %v3831 = vpop.permute.xlu0 %3830
      %3832 = vrot.lane.b32.xlu0 %v2573, 64
      %v3833 = vpop.permute.xlu0 %3832
      %3834 = vrot.lane.b32.xlu0 %v2579, 64
      %v3835 = vpop.permute.xlu0 %3834
      %3836 = vrot.lane.b32.xlu0 %v2585, 64
      %v3837 = vpop.permute.xlu0 %3836
      %3838 = vrot.lane.b32.xlu0 %v2591, 64
      %v3839 = vpop.permute.xlu0 %3838
      %3840 = vrot.lane.b32.xlu0 %v2597, 64
      %v3841 = vpop.permute.xlu0 %3840
      %3842 = vrot.lane.b32.xlu0 %v2603, 64
      %v3843 = vpop.permute.xlu0 %3842
      %v3853 = vsel %vm980, %v3812, 0
      %v3856 = vsel %vm980, %v3813, 0
      %v3859 = vsel %vm980, %v3814, 0
      %v3862 = vsel %vm980, %v3815, 0
      %v3865 = vsel %vm980, %v3816, 0
      %v3868 = vsel %vm980, %v3817, 0
      %v3871 = vsel %vm980, %v3818, 0
      %v3874 = vsel %vm980, %v3819, 0
      %3876 = vmatprep.subr.mxu0 0.0
      %3877 = vmatpush1.msra.mxu0 0.0
      %3878 = vmatprep.subr.mxu0 0.0
      %3879 = vmatpush1.msra.mxu0 0.0
      %3880 = vmatprep.subr.mxu0 0.0
      %3881 = vmatpush1.msra.mxu0 0.0
      %3882 = vmatprep.subr.mxu0 0.0
      %3883 = vmatpush1.msra.mxu0 0.0
      %3884 = vmatprep.subr.mxu0 0.0
      %3885 = vmatpush1.msra.mxu0 0.0
      %3886 = vmatprep.subr.mxu0 0.0
      %3887 = vmatpush1.msra.mxu0 0.0
      %3888 = vmatprep.subr.mxu0 0.0
      %3889 = vmatpush1.msra.mxu0 0.0
      %3890 = vmatprep.subr.mxu0 0.0
      %3891 = vmatpush1.msra.mxu0 0.0
      %3892 = vmatprep.subr.mxu0 0.0
      %3893 = vmatpush1.msra.mxu0 %v3843
      %3894 = vmatprep.subr.mxu0 0.0
      %3895 = vmatpush1.msra.mxu0 %v3841
      %3896 = vmatprep.subr.mxu0 0.0
      %3897 = vmatpush1.msra.mxu0 %v3839
      %3898 = vmatprep.subr.mxu0 0.0
      %3899 = vmatpush1.msra.mxu0 %v3837
      %3900 = vmatprep.subr.mxu0 0.0
      %3901 = vmatpush1.msra.mxu0 %v3835
      %3902 = vmatprep.subr.mxu0 0.0
      %3903 = vmatpush1.msra.mxu0 %v3833
      %3904 = vmatprep.subr.mxu0 0.0
      %3905 = vmatpush1.msra.mxu0 %v3831
      %3906 = vmatprep.subr.mxu0 0.0
      %3907 = vmatpush1.msra.mxu0 %v3829
      %3908 = vmatprep.subr.mxu0 0.0
      %3909 = vmatpush2.msra.mxu0 0.0
      %3910 = vmatprep.subr.mxu0 0.0
      %3911 = vmatpush2.msra.mxu0 0.0
      %3912 = vmatprep.subr.mxu0 0.0
      %3913 = vmatpush2.msra.mxu0 0.0
      %3914 = vmatprep.subr.mxu0 0.0
      %3915 = vmatpush2.msra.mxu0 0.0
      %3916 = vmatprep.subr.mxu0 0.0
      %3917 = vmatpush2.msra.mxu0 0.0
      %3918 = vmatprep.subr.mxu0 0.0
      %3919 = vmatpush2.msra.mxu0 0.0
      %3920 = vmatprep.subr.mxu0 0.0
      %3921 = vmatpush2.msra.mxu0 0.0
      %3922 = vmatprep.subr.mxu0 0.0
      %3923 = vmatpush2.msra.mxu0 0.0
      %3924 = vmatprep.subr.mxu0 0.0
      %3925 = vmatpush2.msra.mxu0 0.0
      %3926 = vmatprep.subr.mxu0 0.0
      %3927 = vmatpush2.msra.mxu0 0.0
      %3928 = vmatprep.subr.mxu0 0.0
      %3929 = vmatpush2.msra.mxu0 0.0
      %3930 = vmatprep.subr.mxu0 0.0
      %3931 = vmatpush2.msra.mxu0 0.0
      %3932 = vmatprep.subr.mxu0 0.0
      %3933 = vmatpush2.msra.mxu0 0.0
      %3934 = vmatprep.subr.mxu0 0.0
      %3935 = vmatpush2.msra.mxu0 0.0
      %3936 = vmatprep.subr.mxu0 0.0
      %3937 = vmatpush2.msra.mxu0 0.0
      %3938 = vmatprep.subr.mxu0 0.0
      %3939 = vmatpush2.msra.mxu0 0.0
      %3940 = vmatprep.mubr.f32.mxu0 0.0
      %3941 = vmatmul.mubr.f32.gmra.mxu0 %v3853
      %v3942 = vpop.f32.mrf.mxu0
      %v3943 = vadd.f32 0.0, %v3942
      %v3944 = vpop.f32.mrf.mxu0
      %3945 = vmatprep.mubr.f32.mxu0 0.0
      %3946 = vmatmul.mubr.f32.gmra.mxu0 %v3856
      %v3947 = vpop.f32.mrf.mxu0
      %v3948 = vadd.f32 0.0, %v3947
      %v3949 = vpop.f32.mrf.mxu0
      %3950 = vmatprep.mubr.f32.mxu0 0.0
      %3951 = vmatmul.mubr.f32.gmra.mxu0 %v3859
      %v3952 = vpop.f32.mrf.mxu0
      %v3953 = vadd.f32 0.0, %v3952
      %v3954 = vpop.f32.mrf.mxu0
      %3955 = vmatprep.mubr.f32.mxu0 0.0
      %3956 = vmatmul.mubr.f32.gmra.mxu0 %v3862
      %v3957 = vpop.f32.mrf.mxu0
      %v3958 = vadd.f32 0.0, %v3957
      %v3959 = vpop.f32.mrf.mxu0
      %3960 = vmatprep.mubr.f32.mxu0 0.0
      %3961 = vmatmul.mubr.f32.gmra.mxu0 %v3865
      %v3962 = vpop.f32.mrf.mxu0
      %v3963 = vadd.f32 0.0, %v3962
      %v3964 = vpop.f32.mrf.mxu0
      %3965 = vmatprep.mubr.f32.mxu0 0.0
      %3966 = vmatmul.mubr.f32.gmra.mxu0 %v3868
      %v3967 = vpop.f32.mrf.mxu0
      %v3968 = vadd.f32 0.0, %v3967
      %v3969 = vpop.f32.mrf.mxu0
      %3970 = vmatprep.mubr.f32.mxu0 0.0
      %3971 = vmatmul.mubr.f32.gmra.mxu0 %v3871
      %v3972 = vpop.f32.mrf.mxu0
      %v3973 = vadd.f32 0.0, %v3972
      %v3974 = vpop.f32.mrf.mxu0
      %3975 = vmatprep.mubr.f32.mxu0 0.0
      %3976 = vmatmul.mubr.f32.gmra.mxu0 %v3874
      %v3977 = vpop.f32.mrf.mxu0
      %v3978 = vadd.f32 0.0, %v3977
      %v3979 = vpop.f32.mrf.mxu0
      %3980 = vdwg.mxu0
      %v3981 = vadd.f32 %v3803, %v3943
      %v3982 = vadd.f32 %v3804, %v3948
      %v3983 = vadd.f32 %v3805, %v3953
      %v3984 = vadd.f32 %v3806, %v3958
      %v3985 = vadd.f32 %v3807, %v3963
      %v3986 = vadd.f32 %v3808, %v3968
      %v3987 = vadd.f32 %v3809, %v3973
      %v3988 = vadd.f32 %v3810, %v3978
      %s3989 = scalar_lea.vmem %s6, 512
      %v3990 = vld [vmem:[%s3989] sm:$0xff]
      %v3991 = vld [vmem:[%s3989 + $0x8] sm:$0xff]
      %v3992 = vld [vmem:[%s3989 + $0x10] sm:$0xff]
      %v3993 = vld [vmem:[%s3989 + $0x18] sm:$0xff]
      %v3994 = vld [vmem:[%s3989 + $0x20] sm:$0xff]
      %v3995 = vld [vmem:[%s3989 + $0x28] sm:$0xff]
      %v3996 = vld [vmem:[%s3989 + $0x30] sm:$0xff]
      %v3997 = vld [vmem:[%s3989 + $0x38] sm:$0xff]
      %v3999 = vsel %vm980, %v3990, 0
      %v4002 = vsel %vm980, %v3991, 0
      %v4005 = vsel %vm980, %v3992, 0
      %v4008 = vsel %vm980, %v3993, 0
      %v4011 = vsel %vm980, %v3994, 0
      %v4014 = vsel %vm980, %v3995, 0
      %v4017 = vsel %vm980, %v3996, 0
      %v4020 = vsel %vm980, %v3997, 0
      %4022 = vmatprep.subr.mxu0 0.0
      %4023 = vmatpush1.msra.mxu0 0.0
      %4024 = vmatprep.subr.mxu0 0.0
      %4025 = vmatpush1.msra.mxu0 0.0
      %4026 = vmatprep.subr.mxu0 0.0
      %4027 = vmatpush1.msra.mxu0 0.0
      %4028 = vmatprep.subr.mxu0 0.0
      %4029 = vmatpush1.msra.mxu0 0.0
      %4030 = vmatprep.subr.mxu0 0.0
      %4031 = vmatpush1.msra.mxu0 0.0
      %4032 = vmatprep.subr.mxu0 0.0
      %4033 = vmatpush1.msra.mxu0 0.0
      %4034 = vmatprep.subr.mxu0 0.0
      %4035 = vmatpush1.msra.mxu0 0.0
      %4036 = vmatprep.subr.mxu0 0.0
      %4037 = vmatpush1.msra.mxu0 0.0
      %4038 = vmatprep.subr.mxu0 0.0
      %4039 = vmatpush1.msra.mxu0 %v2707
      %4040 = vmatprep.subr.mxu0 0.0
      %4041 = vmatpush1.msra.mxu0 %v2702
      %4042 = vmatprep.subr.mxu0 0.0
      %4043 = vmatpush1.msra.mxu0 %v2697
      %4044 = vmatprep.subr.mxu0 0.0
      %4045 = vmatpush1.msra.mxu0 %v2692
      %4046 = vmatprep.subr.mxu0 0.0
      %4047 = vmatpush1.msra.mxu0 %v2687
      %4048 = vmatprep.subr.mxu0 0.0
      %4049 = vmatpush1.msra.mxu0 %v2682
      %4050 = vmatprep.subr.mxu0 0.0
      %4051 = vmatpush1.msra.mxu0 %v2677
      %4052 = vmatprep.subr.mxu0 0.0
      %4053 = vmatpush1.msra.mxu0 %v2672
      %4054 = vmatprep.subr.mxu0 0.0
      %4055 = vmatpush2.msra.mxu0 0.0
      %4056 = vmatprep.subr.mxu0 0.0
      %4057 = vmatpush2.msra.mxu0 0.0
      %4058 = vmatprep.subr.mxu0 0.0
      %4059 = vmatpush2.msra.mxu0 0.0
      %4060 = vmatprep.subr.mxu0 0.0
      %4061 = vmatpush2.msra.mxu0 0.0
      %4062 = vmatprep.subr.mxu0 0.0
      %4063 = vmatpush2.msra.mxu0 0.0
      %4064 = vmatprep.subr.mxu0 0.0
      %4065 = vmatpush2.msra.mxu0 0.0
      %4066 = vmatprep.subr.mxu0 0.0
      %4067 = vmatpush2.msra.mxu0 0.0
      %4068 = vmatprep.subr.mxu0 0.0
      %4069 = vmatpush2.msra.mxu0 0.0
      %4070 = vmatprep.subr.mxu0 0.0
      %4071 = vmatpush2.msra.mxu0 0.0
      %4072 = vmatprep.subr.mxu0 0.0
      %4073 = vmatpush2.msra.mxu0 0.0
      %4074 = vmatprep.subr.mxu0 0.0
      %4075 = vmatpush2.msra.mxu0 0.0
      %4076 = vmatprep.subr.mxu0 0.0
      %4077 = vmatpush2.msra.mxu0 0.0
      %4078 = vmatprep.subr.mxu0 0.0
      %4079 = vmatpush2.msra.mxu0 0.0
      %4080 = vmatprep.subr.mxu0 0.0
      %4081 = vmatpush2.msra.mxu0 0.0
      %4082 = vmatprep.subr.mxu0 0.0
      %4083 = vmatpush2.msra.mxu0 0.0
      %4084 = vmatprep.subr.mxu0 0.0
      %4085 = vmatpush2.msra.mxu0 0.0
      %4086 = vmatprep.mubr.f32.mxu0 0.0
      %4087 = vmatmul.mubr.f32.gmra.mxu0 %v3999
      %v4088 = vpop.f32.mrf.mxu0
      %v4089 = vadd.f32 0.0, %v4088
      %v4090 = vpop.f32.mrf.mxu0
      %4091 = vmatprep.mubr.f32.mxu0 0.0
      %4092 = vmatmul.mubr.f32.gmra.mxu0 %v4002
      %v4093 = vpop.f32.mrf.mxu0
      %v4094 = vadd.f32 0.0, %v4093
      %v4095 = vpop.f32.mrf.mxu0
      %4096 = vmatprep.mubr.f32.mxu0 0.0
      %4097 = vmatmul.mubr.f32.gmra.mxu0 %v4005
      %v4098 = vpop.f32.mrf.mxu0
      %v4099 = vadd.f32 0.0, %v4098
      %v4100 = vpop.f32.mrf.mxu0
      %4101 = vmatprep.mubr.f32.mxu0 0.0
      %4102 = vmatmul.mubr.f32.gmra.mxu0 %v4008
      %v4103 = vpop.f32.mrf.mxu0
      %v4104 = vadd.f32 0.0, %v4103
      %v4105 = vpop.f32.mrf.mxu0
      %4106 = vmatprep.mubr.f32.mxu0 0.0
      %4107 = vmatmul.mubr.f32.gmra.mxu0 %v4011
      %v4108 = vpop.f32.mrf.mxu0
      %v4109 = vadd.f32 0.0, %v4108
      %v4110 = vpop.f32.mrf.mxu0
      %4111 = vmatprep.mubr.f32.mxu0 0.0
      %4112 = vmatmul.mubr.f32.gmra.mxu0 %v4014
      %v4113 = vpop.f32.mrf.mxu0
      %v4114 = vadd.f32 0.0, %v4113
      %v4115 = vpop.f32.mrf.mxu0
      %4116 = vmatprep.mubr.f32.mxu0 0.0
      %4117 = vmatmul.mubr.f32.gmra.mxu0 %v4017
      %v4118 = vpop.f32.mrf.mxu0
      %v4119 = vadd.f32 0.0, %v4118
      %v4120 = vpop.f32.mrf.mxu0
      %4121 = vmatprep.mubr.f32.mxu0 0.0
      %4122 = vmatmul.mubr.f32.gmra.mxu0 %v4020
      %v4123 = vpop.f32.mrf.mxu0
      %v4124 = vadd.f32 0.0, %v4123
      %v4125 = vpop.f32.mrf.mxu0
      %4126 = vdwg.mxu0
      %v4127 = vadd.f32 %v3981, %v4089
      %v4128 = vadd.f32 %v3982, %v4094
      %v4129 = vadd.f32 %v3983, %v4099
      %v4130 = vadd.f32 %v3984, %v4104
      %v4131 = vadd.f32 %v3985, %v4109
      %v4132 = vadd.f32 %v3986, %v4114
      %v4133 = vadd.f32 %v3987, %v4119
      %v4134 = vadd.f32 %v3988, %v4124
      %v4136 = vlaneseq
      %v4137 = vshrl.u32 %v4136, 7
      %v4138 = vsub.s32 0, %v4137
      %v4139 = vrot.slane %v2337, %v4138
      %v4141 = vadd.f32 %v4127, %v4139
      %v4142 = vadd.f32 %v4128, %v4139
      %v4143 = vadd.f32 %v4129, %v4139
      %v4144 = vadd.f32 %v4130, %v4139
      %v4145 = vadd.f32 %v4131, %v4139
      %v4146 = vadd.f32 %v4132, %v4139
      %v4147 = vadd.f32 %v4133, %v4139
      %v4148 = vadd.f32 %v4134, %v4139
      %v4149 = vlaneseq
      %v4150 = vshrl.u32 %v4149, 7
      %v4151 = vsub.s32 0, %v4150
      %v4152 = vrot.slane %v2331, %v4151
      %v4153 = vadd.f32 %v4141, %v4152
      %v4154 = vadd.f32 %v4142, %v4152
      %v4155 = vadd.f32 %v4143, %v4152
      %v4156 = vadd.f32 %v4144, %v4152
      %v4157 = vadd.f32 %v4145, %v4152
      %v4158 = vadd.f32 %v4146, %v4152
      %v4159 = vadd.f32 %v4147, %v4152
      %v4160 = vadd.f32 %v4148, %v4152
      %v4161 = vxor.u32 %v4153, 2147483648
      %v4162 = vxor.u32 %v4154, 2147483648
      %v4163 = vxor.u32 %v4155, 2147483648
      %v4164 = vxor.u32 %v4156, 2147483648
      %v4165 = vxor.u32 %v4157, 2147483648
      %v4166 = vxor.u32 %v4158, 2147483648
      %v4167 = vxor.u32 %v4159, 2147483648
      %v4168 = vxor.u32 %v4160, 2147483648
      %v4169 = vmul.f32 %v4161, 1.442695
      %v4170 = vpow.pop %v4169
      %v4171 = vmul.f32 %v4162, 1.442695
      %v4172 = vpow.pop %v4171
      %v4173 = vmul.f32 %v4163, 1.442695
      %v4174 = vpow.pop %v4173
      %v4175 = vmul.f32 %v4164, 1.442695
      %v4176 = vpow.pop %v4175
      %v4177 = vmul.f32 %v4165, 1.442695
      %v4178 = vpow.pop %v4177
      %v4179 = vmul.f32 %v4166, 1.442695
      %v4180 = vpow.pop %v4179
      %v4181 = vmul.f32 %v4167, 1.442695
      %v4182 = vpow.pop %v4181
      %v4183 = vmul.f32 %v4168, 1.442695
      %v4184 = vpow.pop %v4183
      %v4185 = vadd.f32 %v4170, 1.0
      %v4186 = vadd.f32 %v4172, 1.0
      %v4187 = vadd.f32 %v4174, 1.0
      %v4188 = vadd.f32 %v4176, 1.0
      %v4189 = vadd.f32 %v4178, 1.0
      %v4190 = vadd.f32 %v4180, 1.0
      %v4191 = vadd.f32 %v4182, 1.0
      %v4192 = vadd.f32 %v4184, 1.0
      %v4193 = vrcp.pop %v4185
      %v4194 = vmul.f32 1.0, %v4193
      %v4195 = vrcp.pop %v4186
      %v4196 = vmul.f32 1.0, %v4195
      %v4197 = vrcp.pop %v4187
      %v4198 = vmul.f32 1.0, %v4197
      %v4199 = vrcp.pop %v4188
      %v4200 = vmul.f32 1.0, %v4199
      %v4201 = vrcp.pop %v4189
      %v4202 = vmul.f32 1.0, %v4201
      %v4203 = vrcp.pop %v4190
      %v4204 = vmul.f32 1.0, %v4203
      %v4205 = vrcp.pop %v4191
      %v4206 = vmul.f32 1.0, %v4205
      %v4207 = vrcp.pop %v4192
      %v4208 = vmul.f32 1.0, %v4207
      %v4209 = vmul.f32 %v4153, %v4194
      %v4210 = vmul.f32 %v4154, %v4196
      %v4211 = vmul.f32 %v4155, %v4198
      %v4212 = vmul.f32 %v4156, %v4200
      %v4213 = vmul.f32 %v4157, %v4202
      %v4214 = vmul.f32 %v4158, %v4204
      %v4215 = vmul.f32 %v4159, %v4206
      %v4216 = vmul.f32 %v4160, %v4208
      %v4217 = vlaneseq
      %v4218 = vshrl.u32 %v4217, 7
      %v4219 = vsub.s32 0, %v4218
      %v4220 = vrot.slane %v2154, %v4219
      %v4221 = vadd.f32 %v4209, %v4220
      %v4222 = vadd.f32 %v4210, %v4220
      %v4223 = vadd.f32 %v4211, %v4220
      %v4224 = vadd.f32 %v4212, %v4220
      %v4225 = vadd.f32 %v4213, %v4220
      %v4226 = vadd.f32 %v4214, %v4220
      %v4227 = vadd.f32 %v4215, %v4220
      %v4228 = vadd.f32 %v4216, %v4220
      %v4229 = vld [vmem:[%s25] sm:$0xff]
      %v4230 = vld [vmem:[%s25 + $0x8] sm:$0xff]
      %v4231 = vld [vmem:[%s25 + $0x10] sm:$0xff]
      %v4232 = vld [vmem:[%s25 + $0x18] sm:$0xff]
      %v4233 = vld [vmem:[%s25 + $0x20] sm:$0xff]
      %v4234 = vld [vmem:[%s25 + $0x28] sm:$0xff]
      %v4235 = vld [vmem:[%s25 + $0x30] sm:$0xff]
      %v4236 = vld [vmem:[%s25 + $0x38] sm:$0xff]
      %v4237 = vld [vmem:[%s26] sm:$0x1]
      %v4239 = vsel %vm980, %v4221, 0
      %v4242 = vsel %vm980, %v4222, 0
      %v4245 = vsel %vm980, %v4223, 0
      %v4248 = vsel %vm980, %v4224, 0
      %v4251 = vsel %vm980, %v4225, 0
      %v4254 = vsel %vm980, %v4226, 0
      %v4257 = vsel %vm980, %v4227, 0
      %v4260 = vsel %vm980, %v4228, 0
      %4262 = vmatprep.subr.mxu0 0.0
      %4263 = vmatpush1.msra.mxu0 0.0
      %4264 = vmatprep.subr.mxu0 0.0
      %4265 = vmatpush1.msra.mxu0 0.0
      %4266 = vmatprep.subr.mxu0 0.0
      %4267 = vmatpush1.msra.mxu0 0.0
      %4268 = vmatprep.subr.mxu0 0.0
      %4269 = vmatpush1.msra.mxu0 0.0
      %4270 = vmatprep.subr.mxu0 0.0
      %4271 = vmatpush1.msra.mxu0 0.0
      %4272 = vmatprep.subr.mxu0 0.0
      %4273 = vmatpush1.msra.mxu0 0.0
      %4274 = vmatprep.subr.mxu0 0.0
      %4275 = vmatpush1.msra.mxu0 0.0
      %4276 = vmatprep.subr.mxu0 0.0
      %4277 = vmatpush1.msra.mxu0 0.0
      %4278 = vmatprep.subr.mxu0 0.0
      %4279 = vmatpush1.msra.mxu0 %v4236
      %4280 = vmatprep.subr.mxu0 0.0
      %4281 = vmatpush1.msra.mxu0 %v4235
      %4282 = vmatprep.subr.mxu0 0.0
      %4283 = vmatpush1.msra.mxu0 %v4234
      %4284 = vmatprep.subr.mxu0 0.0
      %4285 = vmatpush1.msra.mxu0 %v4233
      %4286 = vmatprep.subr.mxu0 0.0
      %4287 = vmatpush1.msra.mxu0 %v4232
      %4288 = vmatprep.subr.mxu0 0.0
      %4289 = vmatpush1.msra.mxu0 %v4231
      %4290 = vmatprep.subr.mxu0 0.0
      %4291 = vmatpush1.msra.mxu0 %v4230
      %4292 = vmatprep.subr.mxu0 0.0
      %4293 = vmatpush1.msra.mxu0 %v4229
      %4294 = vmatprep.subr.mxu0 0.0
      %4295 = vmatpush2.msra.mxu0 0.0
      %4296 = vmatprep.subr.mxu0 0.0
      %4297 = vmatpush2.msra.mxu0 0.0
      %4298 = vmatprep.subr.mxu0 0.0
      %4299 = vmatpush2.msra.mxu0 0.0
      %4300 = vmatprep.subr.mxu0 0.0
      %4301 = vmatpush2.msra.mxu0 0.0
      %4302 = vmatprep.subr.mxu0 0.0
      %4303 = vmatpush2.msra.mxu0 0.0
      %4304 = vmatprep.subr.mxu0 0.0
      %4305 = vmatpush2.msra.mxu0 0.0
      %4306 = vmatprep.subr.mxu0 0.0
      %4307 = vmatpush2.msra.mxu0 0.0
      %4308 = vmatprep.subr.mxu0 0.0
      %4309 = vmatpush2.msra.mxu0 0.0
      %4310 = vmatprep.subr.mxu0 0.0
      %4311 = vmatpush2.msra.mxu0 0.0
      %4312 = vmatprep.subr.mxu0 0.0
      %4313 = vmatpush2.msra.mxu0 0.0
      %4314 = vmatprep.subr.mxu0 0.0
      %4315 = vmatpush2.msra.mxu0 0.0
      %4316 = vmatprep.subr.mxu0 0.0
      %4317 = vmatpush2.msra.mxu0 0.0
      %4318 = vmatprep.subr.mxu0 0.0
      %4319 = vmatpush2.msra.mxu0 0.0
      %4320 = vmatprep.subr.mxu0 0.0
      %4321 = vmatpush2.msra.mxu0 0.0
      %4322 = vmatprep.subr.mxu0 0.0
      %4323 = vmatpush2.msra.mxu0 0.0
      %4324 = vmatprep.subr.mxu0 0.0
      %4325 = vmatpush2.msra.mxu0 0.0
      %4326 = vmatprep.mubr.f32.mxu0 0.0
      %4327 = vmatmul.mubr.f32.gmra.mxu0 %v4239
      %v4328 = vpop.f32.mrf.mxu0
      %v4329 = vadd.f32 0.0, %v4328
      %v4330 = vpop.f32.mrf.mxu0
      %4331 = vmatprep.mubr.f32.mxu0 0.0
      %4332 = vmatmul.mubr.f32.gmra.mxu0 %v4242
      %v4333 = vpop.f32.mrf.mxu0
      %v4334 = vadd.f32 0.0, %v4333
      %v4335 = vpop.f32.mrf.mxu0
      %4336 = vmatprep.mubr.f32.mxu0 0.0
      %4337 = vmatmul.mubr.f32.gmra.mxu0 %v4245
      %v4338 = vpop.f32.mrf.mxu0
      %v4339 = vadd.f32 0.0, %v4338
      %v4340 = vpop.f32.mrf.mxu0
      %4341 = vmatprep.mubr.f32.mxu0 0.0
      %4342 = vmatmul.mubr.f32.gmra.mxu0 %v4248
      %v4343 = vpop.f32.mrf.mxu0
      %v4344 = vadd.f32 0.0, %v4343
      %v4345 = vpop.f32.mrf.mxu0
      %4346 = vmatprep.mubr.f32.mxu0 0.0
      %4347 = vmatmul.mubr.f32.gmra.mxu0 %v4251
      %v4348 = vpop.f32.mrf.mxu0
      %v4349 = vadd.f32 0.0, %v4348
      %v4350 = vpop.f32.mrf.mxu0
      %4351 = vmatprep.mubr.f32.mxu0 0.0
      %4352 = vmatmul.mubr.f32.gmra.mxu0 %v4254
      %v4353 = vpop.f32.mrf.mxu0
      %v4354 = vadd.f32 0.0, %v4353
      %v4355 = vpop.f32.mrf.mxu0
      %4356 = vmatprep.mubr.f32.mxu0 0.0
      %4357 = vmatmul.mubr.f32.gmra.mxu0 %v4257
      %v4358 = vpop.f32.mrf.mxu0
      %v4359 = vadd.f32 0.0, %v4358
      %v4360 = vpop.f32.mrf.mxu0
      %4361 = vmatprep.mubr.f32.mxu0 0.0
      %4362 = vmatmul.mubr.f32.gmra.mxu0 %v4260
      %v4363 = vpop.f32.mrf.mxu0
      %v4364 = vadd.f32 0.0, %v4363
      %v4365 = vpop.f32.mrf.mxu0
      %4366 = vdwg.mxu0
      %4375 = vrot.lane.b32.xlu0 %v4329, 124
      %v4376 = vpop.permute.xlu0 %4375
      %4377 = vrot.lane.b32.xlu0 %v4334, 124
      %v4378 = vpop.permute.xlu0 %4377
      %4379 = vrot.lane.b32.xlu0 %v4339, 124
      %v4380 = vpop.permute.xlu0 %4379
      %4381 = vrot.lane.b32.xlu0 %v4344, 124
      %v4382 = vpop.permute.xlu0 %4381
      %4383 = vrot.lane.b32.xlu0 %v4349, 124
      %v4384 = vpop.permute.xlu0 %4383
      %4385 = vrot.lane.b32.xlu0 %v4354, 124
      %v4386 = vpop.permute.xlu0 %4385
      %4387 = vrot.lane.b32.xlu0 %v4359, 124
      %v4388 = vpop.permute.xlu0 %4387
      %4389 = vrot.lane.b32.xlu0 %v4364, 124
      %v4390 = vpop.permute.xlu0 %4389
      %4399 = vmatprep.subr.mxu0 0.0
      %4400 = vmatpush1.msra.mxu0 0.0
      %4401 = vmatprep.subr.mxu0 0.0
      %4402 = vmatpush1.msra.mxu0 0.0
      %4403 = vmatprep.subr.mxu0 0.0
      %4404 = vmatpush1.msra.mxu0 0.0
      %4405 = vmatprep.subr.mxu0 0.0
      %4406 = vmatpush1.msra.mxu0 0.0
      %4407 = vmatprep.subr.mxu0 0.0
      %4408 = vmatpush1.msra.mxu0 0.0
      %4409 = vmatprep.subr.mxu0 0.0
      %4410 = vmatpush1.msra.mxu0 0.0
      %4411 = vmatprep.subr.mxu0 0.0
      %4412 = vmatpush1.msra.mxu0 0.0
      %4413 = vmatprep.subr.mxu0 0.0
      %4414 = vmatpush1.msra.mxu0 0.0
      %4415 = vmatprep.subr.mxu0 0.0
      %4416 = vmatpush1.msra.mxu0 %v4390
      %4417 = vmatprep.subr.mxu0 0.0
      %4418 = vmatpush1.msra.mxu0 %v4388
      %4419 = vmatprep.subr.mxu0 0.0
      %4420 = vmatpush1.msra.mxu0 %v4386
      %4421 = vmatprep.subr.mxu0 0.0
      %4422 = vmatpush1.msra.mxu0 %v4384
      %4423 = vmatprep.subr.mxu0 0.0
      %4424 = vmatpush1.msra.mxu0 %v4382
      %4425 = vmatprep.subr.mxu0 0.0
      %4426 = vmatpush1.msra.mxu0 %v4380
      %4427 = vmatprep.subr.mxu0 0.0
      %4428 = vmatpush1.msra.mxu0 %v4378
      %4429 = vmatprep.subr.mxu0 0.0
      %4430 = vmatpush1.msra.mxu0 %v4376
      %4431 = vmatprep.subr.mxu0 0.0
      %4432 = vmatpush2.msra.mxu0 0.0
      %4433 = vmatprep.subr.mxu0 0.0
      %4434 = vmatpush2.msra.mxu0 0.0
      %4435 = vmatprep.subr.mxu0 0.0
      %4436 = vmatpush2.msra.mxu0 0.0
      %4437 = vmatprep.subr.mxu0 0.0
      %4438 = vmatpush2.msra.mxu0 0.0
      %4439 = vmatprep.subr.mxu0 0.0
      %4440 = vmatpush2.msra.mxu0 0.0
      %4441 = vmatprep.subr.mxu0 0.0
      %4442 = vmatpush2.msra.mxu0 0.0
      %4443 = vmatprep.subr.mxu0 0.0
      %4444 = vmatpush2.msra.mxu0 0.0
      %4445 = vmatprep.subr.mxu0 0.0
      %4446 = vmatpush2.msra.mxu0 0.0
      %4447 = vmatprep.subr.mxu0 0.0
      %4448 = vmatpush2.msra.mxu0 0.0
      %4449 = vmatprep.subr.mxu0 0.0
      %4450 = vmatpush2.msra.mxu0 0.0
      %4451 = vmatprep.subr.mxu0 0.0
      %4452 = vmatpush2.msra.mxu0 0.0
      %4453 = vmatprep.subr.mxu0 0.0
      %4454 = vmatpush2.msra.mxu0 0.0
      %4455 = vmatprep.subr.mxu0 0.0
      %4456 = vmatpush2.msra.mxu0 0.0
      %4457 = vmatprep.subr.mxu0 0.0
      %4458 = vmatpush2.msra.mxu0 0.0
      %4459 = vmatprep.subr.mxu0 0.0
      %4460 = vmatpush2.msra.mxu0 0.0
      %4461 = vmatprep.subr.mxu0 0.0
      %4462 = vmatpush2.msra.mxu0 0.0
      %4463 = vmatprep.mubr.f32.mxu0 0.0
      %4464 = vmatmul.mubr.f32.gmra.mxu0 %v2760
      %v4465 = vpop.f32.mrf.mxu0
      %v4466 = vadd.f32 0.0, %v4465
      %v4467 = vpop.f32.mrf.mxu0
      %4468 = vmatprep.mubr.f32.mxu0 0.0
      %4469 = vmatmul.mubr.f32.gmra.mxu0 %v2763
      %v4470 = vpop.f32.mrf.mxu0
      %v4471 = vadd.f32 0.0, %v4470
      %v4472 = vpop.f32.mrf.mxu0
      %4473 = vmatprep.mubr.f32.mxu0 0.0
      %4474 = vmatmul.mubr.f32.gmra.mxu0 %v2766
      %v4475 = vpop.f32.mrf.mxu0
      %v4476 = vadd.f32 0.0, %v4475
      %v4477 = vpop.f32.mrf.mxu0
      %4478 = vmatprep.mubr.f32.mxu0 0.0
      %4479 = vmatmul.mubr.f32.gmra.mxu0 %v2769
      %v4480 = vpop.f32.mrf.mxu0
      %v4481 = vadd.f32 0.0, %v4480
      %v4482 = vpop.f32.mrf.mxu0
      %4483 = vmatprep.mubr.f32.mxu0 0.0
      %4484 = vmatmul.mubr.f32.gmra.mxu0 %v2772
      %v4485 = vpop.f32.mrf.mxu0
      %v4486 = vadd.f32 0.0, %v4485
      %v4487 = vpop.f32.mrf.mxu0
      %4488 = vmatprep.mubr.f32.mxu0 0.0
      %4489 = vmatmul.mubr.f32.gmra.mxu0 %v2775
      %v4490 = vpop.f32.mrf.mxu0
      %v4491 = vadd.f32 0.0, %v4490
      %v4492 = vpop.f32.mrf.mxu0
      %4493 = vmatprep.mubr.f32.mxu0 0.0
      %4494 = vmatmul.mubr.f32.gmra.mxu0 %v2778
      %v4495 = vpop.f32.mrf.mxu0
      %v4496 = vadd.f32 0.0, %v4495
      %v4497 = vpop.f32.mrf.mxu0
      %4498 = vmatprep.mubr.f32.mxu0 0.0
      %4499 = vmatmul.mubr.f32.gmra.mxu0 %v2781
      %v4500 = vpop.f32.mrf.mxu0
      %v4501 = vadd.f32 0.0, %v4500
      %v4502 = vpop.f32.mrf.mxu0
      %4503 = vdwg.mxu0
      %4504 = vmatprep.subr.mxu0 0.0
      %4505 = vmatpush1.msra.mxu0 0.0
      %4506 = vmatprep.subr.mxu0 0.0
      %4507 = vmatpush1.msra.mxu0 0.0
      %4508 = vmatprep.subr.mxu0 0.0
      %4509 = vmatpush1.msra.mxu0 0.0
      %4510 = vmatprep.subr.mxu0 0.0
      %4511 = vmatpush1.msra.mxu0 0.0
      %4512 = vmatprep.subr.mxu0 0.0
      %4513 = vmatpush1.msra.mxu0 0.0
      %4514 = vmatprep.subr.mxu0 0.0
      %4515 = vmatpush1.msra.mxu0 0.0
      %4516 = vmatprep.subr.mxu0 0.0
      %4517 = vmatpush1.msra.mxu0 0.0
      %4518 = vmatprep.subr.mxu0 0.0
      %4519 = vmatpush1.msra.mxu0 0.0
      %4520 = vmatprep.subr.mxu0 0.0
      %4521 = vmatpush1.msra.mxu0 %v4364
      %4522 = vmatprep.subr.mxu0 0.0
      %4523 = vmatpush1.msra.mxu0 %v4359
      %4524 = vmatprep.subr.mxu0 0.0
      %4525 = vmatpush1.msra.mxu0 %v4354
      %4526 = vmatprep.subr.mxu0 0.0
      %4527 = vmatpush1.msra.mxu0 %v4349
      %4528 = vmatprep.subr.mxu0 0.0
      %4529 = vmatpush1.msra.mxu0 %v4344
      %4530 = vmatprep.subr.mxu0 0.0
      %4531 = vmatpush1.msra.mxu0 %v4339
      %4532 = vmatprep.subr.mxu0 0.0
      %4533 = vmatpush1.msra.mxu0 %v4334
      %4534 = vmatprep.subr.mxu0 0.0
      %4535 = vmatpush1.msra.mxu0 %v4329
      %4536 = vmatprep.subr.mxu0 0.0
      %4537 = vmatpush2.msra.mxu0 0.0
      %4538 = vmatprep.subr.mxu0 0.0
      %4539 = vmatpush2.msra.mxu0 0.0
      %4540 = vmatprep.subr.mxu0 0.0
      %4541 = vmatpush2.msra.mxu0 0.0
      %4542 = vmatprep.subr.mxu0 0.0
      %4543 = vmatpush2.msra.mxu0 0.0
      %4544 = vmatprep.subr.mxu0 0.0
      %4545 = vmatpush2.msra.mxu0 0.0
      %4546 = vmatprep.subr.mxu0 0.0
      %4547 = vmatpush2.msra.mxu0 0.0
      %4548 = vmatprep.subr.mxu0 0.0
      %4549 = vmatpush2.msra.mxu0 0.0
      %4550 = vmatprep.subr.mxu0 0.0
      %4551 = vmatpush2.msra.mxu0 0.0
      %4552 = vmatprep.subr.mxu0 0.0
      %4553 = vmatpush2.msra.mxu0 0.0
      %4554 = vmatprep.subr.mxu0 0.0
      %4555 = vmatpush2.msra.mxu0 0.0
      %4556 = vmatprep.subr.mxu0 0.0
      %4557 = vmatpush2.msra.mxu0 0.0
      %4558 = vmatprep.subr.mxu0 0.0
      %4559 = vmatpush2.msra.mxu0 0.0
      %4560 = vmatprep.subr.mxu0 0.0
      %4561 = vmatpush2.msra.mxu0 0.0
      %4562 = vmatprep.subr.mxu0 0.0
      %4563 = vmatpush2.msra.mxu0 0.0
      %4564 = vmatprep.subr.mxu0 0.0
      %4565 = vmatpush2.msra.mxu0 0.0
      %4566 = vmatprep.subr.mxu0 0.0
      %4567 = vmatpush2.msra.mxu0 0.0
      %4568 = vmatprep.mubr.f32.mxu0 0.0
      %4569 = vmatmul.mubr.f32.gmra.mxu0 %v2889
      %v4570 = vpop.f32.mrf.mxu0
      %v4571 = vadd.f32 %v4466, %v4570
      %v4572 = vpop.f32.mrf.mxu0
      %4573 = vmatprep.mubr.f32.mxu0 0.0
      %4574 = vmatmul.mubr.f32.gmra.mxu0 %v2892
      %v4575 = vpop.f32.mrf.mxu0
      %v4576 = vadd.f32 %v4471, %v4575
      %v4577 = vpop.f32.mrf.mxu0
      %4578 = vmatprep.mubr.f32.mxu0 0.0
      %4579 = vmatmul.mubr.f32.gmra.mxu0 %v2895
      %v4580 = vpop.f32.mrf.mxu0
      %v4581 = vadd.f32 %v4476, %v4580
      %v4582 = vpop.f32.mrf.mxu0
      %4583 = vmatprep.mubr.f32.mxu0 0.0
      %4584 = vmatmul.mubr.f32.gmra.mxu0 %v2898
      %v4585 = vpop.f32.mrf.mxu0
      %v4586 = vadd.f32 %v4481, %v4585
      %v4587 = vpop.f32.mrf.mxu0
      %4588 = vmatprep.mubr.f32.mxu0 0.0
      %4589 = vmatmul.mubr.f32.gmra.mxu0 %v2901
      %v4590 = vpop.f32.mrf.mxu0
      %v4591 = vadd.f32 %v4486, %v4590
      %v4592 = vpop.f32.mrf.mxu0
      %4593 = vmatprep.mubr.f32.mxu0 0.0
      %4594 = vmatmul.mubr.f32.gmra.mxu0 %v2904
      %v4595 = vpop.f32.mrf.mxu0
      %v4596 = vadd.f32 %v4491, %v4595
      %v4597 = vpop.f32.mrf.mxu0
      %4598 = vmatprep.mubr.f32.mxu0 0.0
      %4599 = vmatmul.mubr.f32.gmra.mxu0 %v2907
      %v4600 = vpop.f32.mrf.mxu0
      %v4601 = vadd.f32 %v4496, %v4600
      %v4602 = vpop.f32.mrf.mxu0
      %4603 = vmatprep.mubr.f32.mxu0 0.0
      %4604 = vmatmul.mubr.f32.gmra.mxu0 %v2910
      %v4605 = vpop.f32.mrf.mxu0
      %v4606 = vadd.f32 %v4501, %v4605
      %v4607 = vpop.f32.mrf.mxu0
      %4608 = vdwg.mxu0
      %4609 = vrot.lane.b32.xlu0 %v4329, 120
      %v4610 = vpop.permute.xlu0 %4609
      %4611 = vrot.lane.b32.xlu0 %v4334, 120
      %v4612 = vpop.permute.xlu0 %4611
      %4613 = vrot.lane.b32.xlu0 %v4339, 120
      %v4614 = vpop.permute.xlu0 %4613
      %4615 = vrot.lane.b32.xlu0 %v4344, 120
      %v4616 = vpop.permute.xlu0 %4615
      %4617 = vrot.lane.b32.xlu0 %v4349, 120
      %v4618 = vpop.permute.xlu0 %4617
      %4619 = vrot.lane.b32.xlu0 %v4354, 120
      %v4620 = vpop.permute.xlu0 %4619
      %4621 = vrot.lane.b32.xlu0 %v4359, 120
      %v4622 = vpop.permute.xlu0 %4621
      %4623 = vrot.lane.b32.xlu0 %v4364, 120
      %v4624 = vpop.permute.xlu0 %4623
      %4633 = vmatprep.subr.mxu0 0.0
      %4634 = vmatpush1.msra.mxu0 0.0
      %4635 = vmatprep.subr.mxu0 0.0
      %4636 = vmatpush1.msra.mxu0 0.0
      %4637 = vmatprep.subr.mxu0 0.0
      %4638 = vmatpush1.msra.mxu0 0.0
      %4639 = vmatprep.subr.mxu0 0.0
      %4640 = vmatpush1.msra.mxu0 0.0
      %4641 = vmatprep.subr.mxu0 0.0
      %4642 = vmatpush1.msra.mxu0 0.0
      %4643 = vmatprep.subr.mxu0 0.0
      %4644 = vmatpush1.msra.mxu0 0.0
      %4645 = vmatprep.subr.mxu0 0.0
      %4646 = vmatpush1.msra.mxu0 0.0
      %4647 = vmatprep.subr.mxu0 0.0
      %4648 = vmatpush1.msra.mxu0 0.0
      %4649 = vmatprep.subr.mxu0 0.0
      %4650 = vmatpush1.msra.mxu0 %v4624
      %4651 = vmatprep.subr.mxu0 0.0
      %4652 = vmatpush1.msra.mxu0 %v4622
      %4653 = vmatprep.subr.mxu0 0.0
      %4654 = vmatpush1.msra.mxu0 %v4620
      %4655 = vmatprep.subr.mxu0 0.0
      %4656 = vmatpush1.msra.mxu0 %v4618
      %4657 = vmatprep.subr.mxu0 0.0
      %4658 = vmatpush1.msra.mxu0 %v4616
      %4659 = vmatprep.subr.mxu0 0.0
      %4660 = vmatpush1.msra.mxu0 %v4614
      %4661 = vmatprep.subr.mxu0 0.0
      %4662 = vmatpush1.msra.mxu0 %v4612
      %4663 = vmatprep.subr.mxu0 0.0
      %4664 = vmatpush1.msra.mxu0 %v4610
      %4665 = vmatprep.subr.mxu0 0.0
      %4666 = vmatpush2.msra.mxu0 0.0
      %4667 = vmatprep.subr.mxu0 0.0
      %4668 = vmatpush2.msra.mxu0 0.0
      %4669 = vmatprep.subr.mxu0 0.0
      %4670 = vmatpush2.msra.mxu0 0.0
      %4671 = vmatprep.subr.mxu0 0.0
      %4672 = vmatpush2.msra.mxu0 0.0
      %4673 = vmatprep.subr.mxu0 0.0
      %4674 = vmatpush2.msra.mxu0 0.0
      %4675 = vmatprep.subr.mxu0 0.0
      %4676 = vmatpush2.msra.mxu0 0.0
      %4677 = vmatprep.subr.mxu0 0.0
      %4678 = vmatpush2.msra.mxu0 0.0
      %4679 = vmatprep.subr.mxu0 0.0
      %4680 = vmatpush2.msra.mxu0 0.0
      %4681 = vmatprep.subr.mxu0 0.0
      %4682 = vmatpush2.msra.mxu0 0.0
      %4683 = vmatprep.subr.mxu0 0.0
      %4684 = vmatpush2.msra.mxu0 0.0
      %4685 = vmatprep.subr.mxu0 0.0
      %4686 = vmatpush2.msra.mxu0 0.0
      %4687 = vmatprep.subr.mxu0 0.0
      %4688 = vmatpush2.msra.mxu0 0.0
      %4689 = vmatprep.subr.mxu0 0.0
      %4690 = vmatpush2.msra.mxu0 0.0
      %4691 = vmatprep.subr.mxu0 0.0
      %4692 = vmatpush2.msra.mxu0 0.0
      %4693 = vmatprep.subr.mxu0 0.0
      %4694 = vmatpush2.msra.mxu0 0.0
      %4695 = vmatprep.subr.mxu0 0.0
      %4696 = vmatpush2.msra.mxu0 0.0
      %4697 = vmatprep.mubr.f32.mxu0 0.0
      %4698 = vmatmul.mubr.f32.gmra.mxu0 %v3027
      %v4699 = vpop.f32.mrf.mxu0
      %v4700 = vadd.f32 0.0, %v4699
      %v4701 = vpop.f32.mrf.mxu0
      %4702 = vmatprep.mubr.f32.mxu0 0.0
      %4703 = vmatmul.mubr.f32.gmra.mxu0 %v3030
      %v4704 = vpop.f32.mrf.mxu0
      %v4705 = vadd.f32 0.0, %v4704
      %v4706 = vpop.f32.mrf.mxu0
      %4707 = vmatprep.mubr.f32.mxu0 0.0
      %4708 = vmatmul.mubr.f32.gmra.mxu0 %v3033
      %v4709 = vpop.f32.mrf.mxu0
      %v4710 = vadd.f32 0.0, %v4709
      %v4711 = vpop.f32.mrf.mxu0
      %4712 = vmatprep.mubr.f32.mxu0 0.0
      %4713 = vmatmul.mubr.f32.gmra.mxu0 %v3036
      %v4714 = vpop.f32.mrf.mxu0
      %v4715 = vadd.f32 0.0, %v4714
      %v4716 = vpop.f32.mrf.mxu0
      %4717 = vmatprep.mubr.f32.mxu0 0.0
      %4718 = vmatmul.mubr.f32.gmra.mxu0 %v3039
      %v4719 = vpop.f32.mrf.mxu0
      %v4720 = vadd.f32 0.0, %v4719
      %v4721 = vpop.f32.mrf.mxu0
      %4722 = vmatprep.mubr.f32.mxu0 0.0
      %4723 = vmatmul.mubr.f32.gmra.mxu0 %v3042
      %v4724 = vpop.f32.mrf.mxu0
      %v4725 = vadd.f32 0.0, %v4724
      %v4726 = vpop.f32.mrf.mxu0
      %4727 = vmatprep.mubr.f32.mxu0 0.0
      %4728 = vmatmul.mubr.f32.gmra.mxu0 %v3045
      %v4729 = vpop.f32.mrf.mxu0
      %v4730 = vadd.f32 0.0, %v4729
      %v4731 = vpop.f32.mrf.mxu0
      %4732 = vmatprep.mubr.f32.mxu0 0.0
      %4733 = vmatmul.mubr.f32.gmra.mxu0 %v3048
      %v4734 = vpop.f32.mrf.mxu0
      %v4735 = vadd.f32 0.0, %v4734
      %v4736 = vpop.f32.mrf.mxu0
      %4737 = vdwg.mxu0
      %v4738 = vadd.f32 %v4571, %v4700
      %v4739 = vadd.f32 %v4576, %v4705
      %v4740 = vadd.f32 %v4581, %v4710
      %v4741 = vadd.f32 %v4586, %v4715
      %v4742 = vadd.f32 %v4591, %v4720
      %v4743 = vadd.f32 %v4596, %v4725
      %v4744 = vadd.f32 %v4601, %v4730
      %v4745 = vadd.f32 %v4606, %v4735
      %4746 = vrot.lane.b32.xlu0 %v4329, 116
      %v4747 = vpop.permute.xlu0 %4746
      %4748 = vrot.lane.b32.xlu0 %v4334, 116
      %v4749 = vpop.permute.xlu0 %4748
      %4750 = vrot.lane.b32.xlu0 %v4339, 116
      %v4751 = vpop.permute.xlu0 %4750
      %4752 = vrot.lane.b32.xlu0 %v4344, 116
      %v4753 = vpop.permute.xlu0 %4752
      %4754 = vrot.lane.b32.xlu0 %v4349, 116
      %v4755 = vpop.permute.xlu0 %4754
      %4756 = vrot.lane.b32.xlu0 %v4354, 116
      %v4757 = vpop.permute.xlu0 %4756
      %4758 = vrot.lane.b32.xlu0 %v4359, 116
      %v4759 = vpop.permute.xlu0 %4758
      %4760 = vrot.lane.b32.xlu0 %v4364, 116
      %v4761 = vpop.permute.xlu0 %4760
      %4770 = vmatprep.subr.mxu0 0.0
      %4771 = vmatpush1.msra.mxu0 0.0
      %4772 = vmatprep.subr.mxu0 0.0
      %4773 = vmatpush1.msra.mxu0 0.0
      %4774 = vmatprep.subr.mxu0 0.0
      %4775 = vmatpush1.msra.mxu0 0.0
      %4776 = vmatprep.subr.mxu0 0.0
      %4777 = vmatpush1.msra.mxu0 0.0
      %4778 = vmatprep.subr.mxu0 0.0
      %4779 = vmatpush1.msra.mxu0 0.0
      %4780 = vmatprep.subr.mxu0 0.0
      %4781 = vmatpush1.msra.mxu0 0.0
      %4782 = vmatprep.subr.mxu0 0.0
      %4783 = vmatpush1.msra.mxu0 0.0
      %4784 = vmatprep.subr.mxu0 0.0
      %4785 = vmatpush1.msra.mxu0 0.0
      %4786 = vmatprep.subr.mxu0 0.0
      %4787 = vmatpush1.msra.mxu0 %v4761
      %4788 = vmatprep.subr.mxu0 0.0
      %4789 = vmatpush1.msra.mxu0 %v4759
      %4790 = vmatprep.subr.mxu0 0.0
      %4791 = vmatpush1.msra.mxu0 %v4757
      %4792 = vmatprep.subr.mxu0 0.0
      %4793 = vmatpush1.msra.mxu0 %v4755
      %4794 = vmatprep.subr.mxu0 0.0
      %4795 = vmatpush1.msra.mxu0 %v4753
      %4796 = vmatprep.subr.mxu0 0.0
      %4797 = vmatpush1.msra.mxu0 %v4751
      %4798 = vmatprep.subr.mxu0 0.0
      %4799 = vmatpush1.msra.mxu0 %v4749
      %4800 = vmatprep.subr.mxu0 0.0
      %4801 = vmatpush1.msra.mxu0 %v4747
      %4802 = vmatprep.subr.mxu0 0.0
      %4803 = vmatpush2.msra.mxu0 0.0
      %4804 = vmatprep.subr.mxu0 0.0
      %4805 = vmatpush2.msra.mxu0 0.0
      %4806 = vmatprep.subr.mxu0 0.0
      %4807 = vmatpush2.msra.mxu0 0.0
      %4808 = vmatprep.subr.mxu0 0.0
      %4809 = vmatpush2.msra.mxu0 0.0
      %4810 = vmatprep.subr.mxu0 0.0
      %4811 = vmatpush2.msra.mxu0 0.0
      %4812 = vmatprep.subr.mxu0 0.0
      %4813 = vmatpush2.msra.mxu0 0.0
      %4814 = vmatprep.subr.mxu0 0.0
      %4815 = vmatpush2.msra.mxu0 0.0
      %4816 = vmatprep.subr.mxu0 0.0
      %4817 = vmatpush2.msra.mxu0 0.0
      %4818 = vmatprep.subr.mxu0 0.0
      %4819 = vmatpush2.msra.mxu0 0.0
      %4820 = vmatprep.subr.mxu0 0.0
      %4821 = vmatpush2.msra.mxu0 0.0
      %4822 = vmatprep.subr.mxu0 0.0
      %4823 = vmatpush2.msra.mxu0 0.0
      %4824 = vmatprep.subr.mxu0 0.0
      %4825 = vmatpush2.msra.mxu0 0.0
      %4826 = vmatprep.subr.mxu0 0.0
      %4827 = vmatpush2.msra.mxu0 0.0
      %4828 = vmatprep.subr.mxu0 0.0
      %4829 = vmatpush2.msra.mxu0 0.0
      %4830 = vmatprep.subr.mxu0 0.0
      %4831 = vmatpush2.msra.mxu0 0.0
      %4832 = vmatprep.subr.mxu0 0.0
      %4833 = vmatpush2.msra.mxu0 0.0
      %4834 = vmatprep.mubr.f32.mxu0 0.0
      %4835 = vmatmul.mubr.f32.gmra.mxu0 %v3205
      %v4836 = vpop.f32.mrf.mxu0
      %v4837 = vadd.f32 0.0, %v4836
      %v4838 = vpop.f32.mrf.mxu0
      %4839 = vmatprep.mubr.f32.mxu0 0.0
      %4840 = vmatmul.mubr.f32.gmra.mxu0 %v3208
      %v4841 = vpop.f32.mrf.mxu0
      %v4842 = vadd.f32 0.0, %v4841
      %v4843 = vpop.f32.mrf.mxu0
      %4844 = vmatprep.mubr.f32.mxu0 0.0
      %4845 = vmatmul.mubr.f32.gmra.mxu0 %v3211
      %v4846 = vpop.f32.mrf.mxu0
      %v4847 = vadd.f32 0.0, %v4846
      %v4848 = vpop.f32.mrf.mxu0
      %4849 = vmatprep.mubr.f32.mxu0 0.0
      %4850 = vmatmul.mubr.f32.gmra.mxu0 %v3214
      %v4851 = vpop.f32.mrf.mxu0
      %v4852 = vadd.f32 0.0, %v4851
      %v4853 = vpop.f32.mrf.mxu0
      %4854 = vmatprep.mubr.f32.mxu0 0.0
      %4855 = vmatmul.mubr.f32.gmra.mxu0 %v3217
      %v4856 = vpop.f32.mrf.mxu0
      %v4857 = vadd.f32 0.0, %v4856
      %v4858 = vpop.f32.mrf.mxu0
      %4859 = vmatprep.mubr.f32.mxu0 0.0
      %4860 = vmatmul.mubr.f32.gmra.mxu0 %v3220
      %v4861 = vpop.f32.mrf.mxu0
      %v4862 = vadd.f32 0.0, %v4861
      %v4863 = vpop.f32.mrf.mxu0
      %4864 = vmatprep.mubr.f32.mxu0 0.0
      %4865 = vmatmul.mubr.f32.gmra.mxu0 %v3223
      %v4866 = vpop.f32.mrf.mxu0
      %v4867 = vadd.f32 0.0, %v4866
      %v4868 = vpop.f32.mrf.mxu0
      %4869 = vmatprep.mubr.f32.mxu0 0.0
      %4870 = vmatmul.mubr.f32.gmra.mxu0 %v3226
      %v4871 = vpop.f32.mrf.mxu0
      %v4872 = vadd.f32 0.0, %v4871
      %v4873 = vpop.f32.mrf.mxu0
      %4874 = vdwg.mxu0
      %v4875 = vadd.f32 %v4738, %v4837
      %v4876 = vadd.f32 %v4739, %v4842
      %v4877 = vadd.f32 %v4740, %v4847
      %v4878 = vadd.f32 %v4741, %v4852
      %v4879 = vadd.f32 %v4742, %v4857
      %v4880 = vadd.f32 %v4743, %v4862
      %v4881 = vadd.f32 %v4744, %v4867
      %v4882 = vadd.f32 %v4745, %v4872
      %4883 = vrot.lane.b32.xlu0 %v4329, 112
      %v4884 = vpop.permute.xlu0 %4883
      %4885 = vrot.lane.b32.xlu0 %v4334, 112
      %v4886 = vpop.permute.xlu0 %4885
      %4887 = vrot.lane.b32.xlu0 %v4339, 112
      %v4888 = vpop.permute.xlu0 %4887
      %4889 = vrot.lane.b32.xlu0 %v4344, 112
      %v4890 = vpop.permute.xlu0 %4889
      %4891 = vrot.lane.b32.xlu0 %v4349, 112
      %v4892 = vpop.permute.xlu0 %4891
      %4893 = vrot.lane.b32.xlu0 %v4354, 112
      %v4894 = vpop.permute.xlu0 %4893
      %4895 = vrot.lane.b32.xlu0 %v4359, 112
      %v4896 = vpop.permute.xlu0 %4895
      %4897 = vrot.lane.b32.xlu0 %v4364, 112
      %v4898 = vpop.permute.xlu0 %4897
      %4907 = vmatprep.subr.mxu0 0.0
      %4908 = vmatpush1.msra.mxu0 0.0
      %4909 = vmatprep.subr.mxu0 0.0
      %4910 = vmatpush1.msra.mxu0 0.0
      %4911 = vmatprep.subr.mxu0 0.0
      %4912 = vmatpush1.msra.mxu0 0.0
      %4913 = vmatprep.subr.mxu0 0.0
      %4914 = vmatpush1.msra.mxu0 0.0
      %4915 = vmatprep.subr.mxu0 0.0
      %4916 = vmatpush1.msra.mxu0 0.0
      %4917 = vmatprep.subr.mxu0 0.0
      %4918 = vmatpush1.msra.mxu0 0.0
      %4919 = vmatprep.subr.mxu0 0.0
      %4920 = vmatpush1.msra.mxu0 0.0
      %4921 = vmatprep.subr.mxu0 0.0
      %4922 = vmatpush1.msra.mxu0 0.0
      %4923 = vmatprep.subr.mxu0 0.0
      %4924 = vmatpush1.msra.mxu0 %v4898
      %4925 = vmatprep.subr.mxu0 0.0
      %4926 = vmatpush1.msra.mxu0 %v4896
      %4927 = vmatprep.subr.mxu0 0.0
      %4928 = vmatpush1.msra.mxu0 %v4894
      %4929 = vmatprep.subr.mxu0 0.0
      %4930 = vmatpush1.msra.mxu0 %v4892
      %4931 = vmatprep.subr.mxu0 0.0
      %4932 = vmatpush1.msra.mxu0 %v4890
      %4933 = vmatprep.subr.mxu0 0.0
      %4934 = vmatpush1.msra.mxu0 %v4888
      %4935 = vmatprep.subr.mxu0 0.0
      %4936 = vmatpush1.msra.mxu0 %v4886
      %4937 = vmatprep.subr.mxu0 0.0
      %4938 = vmatpush1.msra.mxu0 %v4884
      %4939 = vmatprep.subr.mxu0 0.0
      %4940 = vmatpush2.msra.mxu0 0.0
      %4941 = vmatprep.subr.mxu0 0.0
      %4942 = vmatpush2.msra.mxu0 0.0
      %4943 = vmatprep.subr.mxu0 0.0
      %4944 = vmatpush2.msra.mxu0 0.0
      %4945 = vmatprep.subr.mxu0 0.0
      %4946 = vmatpush2.msra.mxu0 0.0
      %4947 = vmatprep.subr.mxu0 0.0
      %4948 = vmatpush2.msra.mxu0 0.0
      %4949 = vmatprep.subr.mxu0 0.0
      %4950 = vmatpush2.msra.mxu0 0.0
      %4951 = vmatprep.subr.mxu0 0.0
      %4952 = vmatpush2.msra.mxu0 0.0
      %4953 = vmatprep.subr.mxu0 0.0
      %4954 = vmatpush2.msra.mxu0 0.0
      %4955 = vmatprep.subr.mxu0 0.0
      %4956 = vmatpush2.msra.mxu0 0.0
      %4957 = vmatprep.subr.mxu0 0.0
      %4958 = vmatpush2.msra.mxu0 0.0
      %4959 = vmatprep.subr.mxu0 0.0
      %4960 = vmatpush2.msra.mxu0 0.0
      %4961 = vmatprep.subr.mxu0 0.0
      %4962 = vmatpush2.msra.mxu0 0.0
      %4963 = vmatprep.subr.mxu0 0.0
      %4964 = vmatpush2.msra.mxu0 0.0
      %4965 = vmatprep.subr.mxu0 0.0
      %4966 = vmatpush2.msra.mxu0 0.0
      %4967 = vmatprep.subr.mxu0 0.0
      %4968 = vmatpush2.msra.mxu0 0.0
      %4969 = vmatprep.subr.mxu0 0.0
      %4970 = vmatpush2.msra.mxu0 0.0
      %4971 = vmatprep.mubr.f32.mxu0 0.0
      %4972 = vmatmul.mubr.f32.gmra.mxu0 %v3351
      %v4973 = vpop.f32.mrf.mxu0
      %v4974 = vadd.f32 0.0, %v4973
      %v4975 = vpop.f32.mrf.mxu0
      %4976 = vmatprep.mubr.f32.mxu0 0.0
      %4977 = vmatmul.mubr.f32.gmra.mxu0 %v3354
      %v4978 = vpop.f32.mrf.mxu0
      %v4979 = vadd.f32 0.0, %v4978
      %v4980 = vpop.f32.mrf.mxu0
      %4981 = vmatprep.mubr.f32.mxu0 0.0
      %4982 = vmatmul.mubr.f32.gmra.mxu0 %v3357
      %v4983 = vpop.f32.mrf.mxu0
      %v4984 = vadd.f32 0.0, %v4983
      %v4985 = vpop.f32.mrf.mxu0
      %4986 = vmatprep.mubr.f32.mxu0 0.0
      %4987 = vmatmul.mubr.f32.gmra.mxu0 %v3360
      %v4988 = vpop.f32.mrf.mxu0
      %v4989 = vadd.f32 0.0, %v4988
      %v4990 = vpop.f32.mrf.mxu0
      %4991 = vmatprep.mubr.f32.mxu0 0.0
      %4992 = vmatmul.mubr.f32.gmra.mxu0 %v3363
      %v4993 = vpop.f32.mrf.mxu0
      %v4994 = vadd.f32 0.0, %v4993
      %v4995 = vpop.f32.mrf.mxu0
      %4996 = vmatprep.mubr.f32.mxu0 0.0
      %4997 = vmatmul.mubr.f32.gmra.mxu0 %v3366
      %v4998 = vpop.f32.mrf.mxu0
      %v4999 = vadd.f32 0.0, %v4998
      %v5000 = vpop.f32.mrf.mxu0
      %5001 = vmatprep.mubr.f32.mxu0 0.0
      %5002 = vmatmul.mubr.f32.gmra.mxu0 %v3369
      %v5003 = vpop.f32.mrf.mxu0
      %v5004 = vadd.f32 0.0, %v5003
      %v5005 = vpop.f32.mrf.mxu0
      %5006 = vmatprep.mubr.f32.mxu0 0.0
      %5007 = vmatmul.mubr.f32.gmra.mxu0 %v3372
      %v5008 = vpop.f32.mrf.mxu0
      %v5009 = vadd.f32 0.0, %v5008
      %v5010 = vpop.f32.mrf.mxu0
      %5011 = vdwg.mxu0
      %v5012 = vadd.f32 %v4875, %v4974
      %v5013 = vadd.f32 %v4876, %v4979
      %v5014 = vadd.f32 %v4877, %v4984
      %v5015 = vadd.f32 %v4878, %v4989
      %v5016 = vadd.f32 %v4879, %v4994
      %v5017 = vadd.f32 %v4880, %v4999
      %v5018 = vadd.f32 %v4881, %v5004
      %v5019 = vadd.f32 %v4882, %v5009
      %5020 = vrot.lane.b32.xlu0 %v4329, 108
      %v5021 = vpop.permute.xlu0 %5020
      %5022 = vrot.lane.b32.xlu0 %v4334, 108
      %v5023 = vpop.permute.xlu0 %5022
      %5024 = vrot.lane.b32.xlu0 %v4339, 108
      %v5025 = vpop.permute.xlu0 %5024
      %5026 = vrot.lane.b32.xlu0 %v4344, 108
      %v5027 = vpop.permute.xlu0 %5026
      %5028 = vrot.lane.b32.xlu0 %v4349, 108
      %v5029 = vpop.permute.xlu0 %5028
      %5030 = vrot.lane.b32.xlu0 %v4354, 108
      %v5031 = vpop.permute.xlu0 %5030
      %5032 = vrot.lane.b32.xlu0 %v4359, 108
      %v5033 = vpop.permute.xlu0 %5032
      %5034 = vrot.lane.b32.xlu0 %v4364, 108
      %v5035 = vpop.permute.xlu0 %5034
      %5044 = vmatprep.subr.mxu0 0.0
      %5045 = vmatpush1.msra.mxu0 0.0
      %5046 = vmatprep.subr.mxu0 0.0
      %5047 = vmatpush1.msra.mxu0 0.0
      %5048 = vmatprep.subr.mxu0 0.0
      %5049 = vmatpush1.msra.mxu0 0.0
      %5050 = vmatprep.subr.mxu0 0.0
      %5051 = vmatpush1.msra.mxu0 0.0
      %5052 = vmatprep.subr.mxu0 0.0
      %5053 = vmatpush1.msra.mxu0 0.0
      %5054 = vmatprep.subr.mxu0 0.0
      %5055 = vmatpush1.msra.mxu0 0.0
      %5056 = vmatprep.subr.mxu0 0.0
      %5057 = vmatpush1.msra.mxu0 0.0
      %5058 = vmatprep.subr.mxu0 0.0
      %5059 = vmatpush1.msra.mxu0 0.0
      %5060 = vmatprep.subr.mxu0 0.0
      %5061 = vmatpush1.msra.mxu0 %v5035
      %5062 = vmatprep.subr.mxu0 0.0
      %5063 = vmatpush1.msra.mxu0 %v5033
      %5064 = vmatprep.subr.mxu0 0.0
      %5065 = vmatpush1.msra.mxu0 %v5031
      %5066 = vmatprep.subr.mxu0 0.0
      %5067 = vmatpush1.msra.mxu0 %v5029
      %5068 = vmatprep.subr.mxu0 0.0
      %5069 = vmatpush1.msra.mxu0 %v5027
      %5070 = vmatprep.subr.mxu0 0.0
      %5071 = vmatpush1.msra.mxu0 %v5025
      %5072 = vmatprep.subr.mxu0 0.0
      %5073 = vmatpush1.msra.mxu0 %v5023
      %5074 = vmatprep.subr.mxu0 0.0
      %5075 = vmatpush1.msra.mxu0 %v5021
      %5076 = vmatprep.subr.mxu0 0.0
      %5077 = vmatpush2.msra.mxu0 0.0
      %5078 = vmatprep.subr.mxu0 0.0
      %5079 = vmatpush2.msra.mxu0 0.0
      %5080 = vmatprep.subr.mxu0 0.0
      %5081 = vmatpush2.msra.mxu0 0.0
      %5082 = vmatprep.subr.mxu0 0.0
      %5083 = vmatpush2.msra.mxu0 0.0
      %5084 = vmatprep.subr.mxu0 0.0
      %5085 = vmatpush2.msra.mxu0 0.0
      %5086 = vmatprep.subr.mxu0 0.0
      %5087 = vmatpush2.msra.mxu0 0.0
      %5088 = vmatprep.subr.mxu0 0.0
      %5089 = vmatpush2.msra.mxu0 0.0
      %5090 = vmatprep.subr.mxu0 0.0
      %5091 = vmatpush2.msra.mxu0 0.0
      %5092 = vmatprep.subr.mxu0 0.0
      %5093 = vmatpush2.msra.mxu0 0.0
      %5094 = vmatprep.subr.mxu0 0.0
      %5095 = vmatpush2.msra.mxu0 0.0
      %5096 = vmatprep.subr.mxu0 0.0
      %5097 = vmatpush2.msra.mxu0 0.0
      %5098 = vmatprep.subr.mxu0 0.0
      %5099 = vmatpush2.msra.mxu0 0.0
      %5100 = vmatprep.subr.mxu0 0.0
      %5101 = vmatpush2.msra.mxu0 0.0
      %5102 = vmatprep.subr.mxu0 0.0
      %5103 = vmatpush2.msra.mxu0 0.0
      %5104 = vmatprep.subr.mxu0 0.0
      %5105 = vmatpush2.msra.mxu0 0.0
      %5106 = vmatprep.subr.mxu0 0.0
      %5107 = vmatpush2.msra.mxu0 0.0
      %5108 = vmatprep.mubr.f32.mxu0 0.0
      %5109 = vmatmul.mubr.f32.gmra.mxu0 %v3529
      %v5110 = vpop.f32.mrf.mxu0
      %v5111 = vadd.f32 0.0, %v5110
      %v5112 = vpop.f32.mrf.mxu0
      %5113 = vmatprep.mubr.f32.mxu0 0.0
      %5114 = vmatmul.mubr.f32.gmra.mxu0 %v3532
      %v5115 = vpop.f32.mrf.mxu0
      %v5116 = vadd.f32 0.0, %v5115
      %v5117 = vpop.f32.mrf.mxu0
      %5118 = vmatprep.mubr.f32.mxu0 0.0
      %5119 = vmatmul.mubr.f32.gmra.mxu0 %v3535
      %v5120 = vpop.f32.mrf.mxu0
      %v5121 = vadd.f32 0.0, %v5120
      %v5122 = vpop.f32.mrf.mxu0
      %5123 = vmatprep.mubr.f32.mxu0 0.0
      %5124 = vmatmul.mubr.f32.gmra.mxu0 %v3538
      %v5125 = vpop.f32.mrf.mxu0
      %v5126 = vadd.f32 0.0, %v5125
      %v5127 = vpop.f32.mrf.mxu0
      %5128 = vmatprep.mubr.f32.mxu0 0.0
      %5129 = vmatmul.mubr.f32.gmra.mxu0 %v3541
      %v5130 = vpop.f32.mrf.mxu0
      %v5131 = vadd.f32 0.0, %v5130
      %v5132 = vpop.f32.mrf.mxu0
      %5133 = vmatprep.mubr.f32.mxu0 0.0
      %5134 = vmatmul.mubr.f32.gmra.mxu0 %v3544
      %v5135 = vpop.f32.mrf.mxu0
      %v5136 = vadd.f32 0.0, %v5135
      %v5137 = vpop.f32.mrf.mxu0
      %5138 = vmatprep.mubr.f32.mxu0 0.0
      %5139 = vmatmul.mubr.f32.gmra.mxu0 %v3547
      %v5140 = vpop.f32.mrf.mxu0
      %v5141 = vadd.f32 0.0, %v5140
      %v5142 = vpop.f32.mrf.mxu0
      %5143 = vmatprep.mubr.f32.mxu0 0.0
      %5144 = vmatmul.mubr.f32.gmra.mxu0 %v3550
      %v5145 = vpop.f32.mrf.mxu0
      %v5146 = vadd.f32 0.0, %v5145
      %v5147 = vpop.f32.mrf.mxu0
      %5148 = vdwg.mxu0
      %v5149 = vadd.f32 %v5012, %v5111
      %v5150 = vadd.f32 %v5013, %v5116
      %v5151 = vadd.f32 %v5014, %v5121
      %v5152 = vadd.f32 %v5015, %v5126
      %v5153 = vadd.f32 %v5016, %v5131
      %v5154 = vadd.f32 %v5017, %v5136
      %v5155 = vadd.f32 %v5018, %v5141
      %v5156 = vadd.f32 %v5019, %v5146
      %5157 = vrot.lane.b32.xlu0 %v4329, 104
      %v5158 = vpop.permute.xlu0 %5157
      %5159 = vrot.lane.b32.xlu0 %v4334, 104
      %v5160 = vpop.permute.xlu0 %5159
      %5161 = vrot.lane.b32.xlu0 %v4339, 104
      %v5162 = vpop.permute.xlu0 %5161
      %5163 = vrot.lane.b32.xlu0 %v4344, 104
      %v5164 = vpop.permute.xlu0 %5163
      %5165 = vrot.lane.b32.xlu0 %v4349, 104
      %v5166 = vpop.permute.xlu0 %5165
      %5167 = vrot.lane.b32.xlu0 %v4354, 104
      %v5168 = vpop.permute.xlu0 %5167
      %5169 = vrot.lane.b32.xlu0 %v4359, 104
      %v5170 = vpop.permute.xlu0 %5169
      %5171 = vrot.lane.b32.xlu0 %v4364, 104
      %v5172 = vpop.permute.xlu0 %5171
      %5181 = vmatprep.subr.mxu0 0.0
      %5182 = vmatpush1.msra.mxu0 0.0
      %5183 = vmatprep.subr.mxu0 0.0
      %5184 = vmatpush1.msra.mxu0 0.0
      %5185 = vmatprep.subr.mxu0 0.0
      %5186 = vmatpush1.msra.mxu0 0.0
      %5187 = vmatprep.subr.mxu0 0.0
      %5188 = vmatpush1.msra.mxu0 0.0
      %5189 = vmatprep.subr.mxu0 0.0
      %5190 = vmatpush1.msra.mxu0 0.0
      %5191 = vmatprep.subr.mxu0 0.0
      %5192 = vmatpush1.msra.mxu0 0.0
      %5193 = vmatprep.subr.mxu0 0.0
      %5194 = vmatpush1.msra.mxu0 0.0
      %5195 = vmatprep.subr.mxu0 0.0
      %5196 = vmatpush1.msra.mxu0 0.0
      %5197 = vmatprep.subr.mxu0 0.0
      %5198 = vmatpush1.msra.mxu0 %v5172
      %5199 = vmatprep.subr.mxu0 0.0
      %5200 = vmatpush1.msra.mxu0 %v5170
      %5201 = vmatprep.subr.mxu0 0.0
      %5202 = vmatpush1.msra.mxu0 %v5168
      %5203 = vmatprep.subr.mxu0 0.0
      %5204 = vmatpush1.msra.mxu0 %v5166
      %5205 = vmatprep.subr.mxu0 0.0
      %5206 = vmatpush1.msra.mxu0 %v5164
      %5207 = vmatprep.subr.mxu0 0.0
      %5208 = vmatpush1.msra.mxu0 %v5162
      %5209 = vmatprep.subr.mxu0 0.0
      %5210 = vmatpush1.msra.mxu0 %v5160
      %5211 = vmatprep.subr.mxu0 0.0
      %5212 = vmatpush1.msra.mxu0 %v5158
      %5213 = vmatprep.subr.mxu0 0.0
      %5214 = vmatpush2.msra.mxu0 0.0
      %5215 = vmatprep.subr.mxu0 0.0
      %5216 = vmatpush2.msra.mxu0 0.0
      %5217 = vmatprep.subr.mxu0 0.0
      %5218 = vmatpush2.msra.mxu0 0.0
      %5219 = vmatprep.subr.mxu0 0.0
      %5220 = vmatpush2.msra.mxu0 0.0
      %5221 = vmatprep.subr.mxu0 0.0
      %5222 = vmatpush2.msra.mxu0 0.0
      %5223 = vmatprep.subr.mxu0 0.0
      %5224 = vmatpush2.msra.mxu0 0.0
      %5225 = vmatprep.subr.mxu0 0.0
      %5226 = vmatpush2.msra.mxu0 0.0
      %5227 = vmatprep.subr.mxu0 0.0
      %5228 = vmatpush2.msra.mxu0 0.0
      %5229 = vmatprep.subr.mxu0 0.0
      %5230 = vmatpush2.msra.mxu0 0.0
      %5231 = vmatprep.subr.mxu0 0.0
      %5232 = vmatpush2.msra.mxu0 0.0
      %5233 = vmatprep.subr.mxu0 0.0
      %5234 = vmatpush2.msra.mxu0 0.0
      %5235 = vmatprep.subr.mxu0 0.0
      %5236 = vmatpush2.msra.mxu0 0.0
      %5237 = vmatprep.subr.mxu0 0.0
      %5238 = vmatpush2.msra.mxu0 0.0
      %5239 = vmatprep.subr.mxu0 0.0
      %5240 = vmatpush2.msra.mxu0 0.0
      %5241 = vmatprep.subr.mxu0 0.0
      %5242 = vmatpush2.msra.mxu0 0.0
      %5243 = vmatprep.subr.mxu0 0.0
      %5244 = vmatpush2.msra.mxu0 0.0
      %5245 = vmatprep.mubr.f32.mxu0 0.0
      %5246 = vmatmul.mubr.f32.gmra.mxu0 %v3675
      %v5247 = vpop.f32.mrf.mxu0
      %v5248 = vadd.f32 0.0, %v5247
      %v5249 = vpop.f32.mrf.mxu0
      %5250 = vmatprep.mubr.f32.mxu0 0.0
      %5251 = vmatmul.mubr.f32.gmra.mxu0 %v3678
      %v5252 = vpop.f32.mrf.mxu0
      %v5253 = vadd.f32 0.0, %v5252
      %v5254 = vpop.f32.mrf.mxu0
      %5255 = vmatprep.mubr.f32.mxu0 0.0
      %5256 = vmatmul.mubr.f32.gmra.mxu0 %v3681
      %v5257 = vpop.f32.mrf.mxu0
      %v5258 = vadd.f32 0.0, %v5257
      %v5259 = vpop.f32.mrf.mxu0
      %5260 = vmatprep.mubr.f32.mxu0 0.0
      %5261 = vmatmul.mubr.f32.gmra.mxu0 %v3684
      %v5262 = vpop.f32.mrf.mxu0
      %v5263 = vadd.f32 0.0, %v5262
      %v5264 = vpop.f32.mrf.mxu0
      %5265 = vmatprep.mubr.f32.mxu0 0.0
      %5266 = vmatmul.mubr.f32.gmra.mxu0 %v3687
      %v5267 = vpop.f32.mrf.mxu0
      %v5268 = vadd.f32 0.0, %v5267
      %v5269 = vpop.f32.mrf.mxu0
      %5270 = vmatprep.mubr.f32.mxu0 0.0
      %5271 = vmatmul.mubr.f32.gmra.mxu0 %v3690
      %v5272 = vpop.f32.mrf.mxu0
      %v5273 = vadd.f32 0.0, %v5272
      %v5274 = vpop.f32.mrf.mxu0
      %5275 = vmatprep.mubr.f32.mxu0 0.0
      %5276 = vmatmul.mubr.f32.gmra.mxu0 %v3693
      %v5277 = vpop.f32.mrf.mxu0
      %v5278 = vadd.f32 0.0, %v5277
      %v5279 = vpop.f32.mrf.mxu0
      %5280 = vmatprep.mubr.f32.mxu0 0.0
      %5281 = vmatmul.mubr.f32.gmra.mxu0 %v3696
      %v5282 = vpop.f32.mrf.mxu0
      %v5283 = vadd.f32 0.0, %v5282
      %v5284 = vpop.f32.mrf.mxu0
      %5285 = vdwg.mxu0
      %v5286 = vadd.f32 %v5149, %v5248
      %v5287 = vadd.f32 %v5150, %v5253
      %v5288 = vadd.f32 %v5151, %v5258
      %v5289 = vadd.f32 %v5152, %v5263
      %v5290 = vadd.f32 %v5153, %v5268
      %v5291 = vadd.f32 %v5154, %v5273
      %v5292 = vadd.f32 %v5155, %v5278
      %v5293 = vadd.f32 %v5156, %v5283
      %5294 = vrot.lane.b32.xlu0 %v4329, 100
      %v5295 = vpop.permute.xlu0 %5294
      %5296 = vrot.lane.b32.xlu0 %v4334, 100
      %v5297 = vpop.permute.xlu0 %5296
      %5298 = vrot.lane.b32.xlu0 %v4339, 100
      %v5299 = vpop.permute.xlu0 %5298
      %5300 = vrot.lane.b32.xlu0 %v4344, 100
      %v5301 = vpop.permute.xlu0 %5300
      %5302 = vrot.lane.b32.xlu0 %v4349, 100
      %v5303 = vpop.permute.xlu0 %5302
      %5304 = vrot.lane.b32.xlu0 %v4354, 100
      %v5305 = vpop.permute.xlu0 %5304
      %5306 = vrot.lane.b32.xlu0 %v4359, 100
      %v5307 = vpop.permute.xlu0 %5306
      %5308 = vrot.lane.b32.xlu0 %v4364, 100
      %v5309 = vpop.permute.xlu0 %5308
      %5318 = vmatprep.subr.mxu0 0.0
      %5319 = vmatpush1.msra.mxu0 0.0
      %5320 = vmatprep.subr.mxu0 0.0
      %5321 = vmatpush1.msra.mxu0 0.0
      %5322 = vmatprep.subr.mxu0 0.0
      %5323 = vmatpush1.msra.mxu0 0.0
      %5324 = vmatprep.subr.mxu0 0.0
      %5325 = vmatpush1.msra.mxu0 0.0
      %5326 = vmatprep.subr.mxu0 0.0
      %5327 = vmatpush1.msra.mxu0 0.0
      %5328 = vmatprep.subr.mxu0 0.0
      %5329 = vmatpush1.msra.mxu0 0.0
      %5330 = vmatprep.subr.mxu0 0.0
      %5331 = vmatpush1.msra.mxu0 0.0
      %5332 = vmatprep.subr.mxu0 0.0
      %5333 = vmatpush1.msra.mxu0 0.0
      %5334 = vmatprep.subr.mxu0 0.0
      %5335 = vmatpush1.msra.mxu0 %v5309
      %5336 = vmatprep.subr.mxu0 0.0
      %5337 = vmatpush1.msra.mxu0 %v5307
      %5338 = vmatprep.subr.mxu0 0.0
      %5339 = vmatpush1.msra.mxu0 %v5305
      %5340 = vmatprep.subr.mxu0 0.0
      %5341 = vmatpush1.msra.mxu0 %v5303
      %5342 = vmatprep.subr.mxu0 0.0
      %5343 = vmatpush1.msra.mxu0 %v5301
      %5344 = vmatprep.subr.mxu0 0.0
      %5345 = vmatpush1.msra.mxu0 %v5299
      %5346 = vmatprep.subr.mxu0 0.0
      %5347 = vmatpush1.msra.mxu0 %v5297
      %5348 = vmatprep.subr.mxu0 0.0
      %5349 = vmatpush1.msra.mxu0 %v5295
      %5350 = vmatprep.subr.mxu0 0.0
      %5351 = vmatpush2.msra.mxu0 0.0
      %5352 = vmatprep.subr.mxu0 0.0
      %5353 = vmatpush2.msra.mxu0 0.0
      %5354 = vmatprep.subr.mxu0 0.0
      %5355 = vmatpush2.msra.mxu0 0.0
      %5356 = vmatprep.subr.mxu0 0.0
      %5357 = vmatpush2.msra.mxu0 0.0
      %5358 = vmatprep.subr.mxu0 0.0
      %5359 = vmatpush2.msra.mxu0 0.0
      %5360 = vmatprep.subr.mxu0 0.0
      %5361 = vmatpush2.msra.mxu0 0.0
      %5362 = vmatprep.subr.mxu0 0.0
      %5363 = vmatpush2.msra.mxu0 0.0
      %5364 = vmatprep.subr.mxu0 0.0
      %5365 = vmatpush2.msra.mxu0 0.0
      %5366 = vmatprep.subr.mxu0 0.0
      %5367 = vmatpush2.msra.mxu0 0.0
      %5368 = vmatprep.subr.mxu0 0.0
      %5369 = vmatpush2.msra.mxu0 0.0
      %5370 = vmatprep.subr.mxu0 0.0
      %5371 = vmatpush2.msra.mxu0 0.0
      %5372 = vmatprep.subr.mxu0 0.0
      %5373 = vmatpush2.msra.mxu0 0.0
      %5374 = vmatprep.subr.mxu0 0.0
      %5375 = vmatpush2.msra.mxu0 0.0
      %5376 = vmatprep.subr.mxu0 0.0
      %5377 = vmatpush2.msra.mxu0 0.0
      %5378 = vmatprep.subr.mxu0 0.0
      %5379 = vmatpush2.msra.mxu0 0.0
      %5380 = vmatprep.subr.mxu0 0.0
      %5381 = vmatpush2.msra.mxu0 0.0
      %5382 = vmatprep.mubr.f32.mxu0 0.0
      %5383 = vmatmul.mubr.f32.gmra.mxu0 %v3853
      %v5384 = vpop.f32.mrf.mxu0
      %v5385 = vadd.f32 0.0, %v5384
      %v5386 = vpop.f32.mrf.mxu0
      %5387 = vmatprep.mubr.f32.mxu0 0.0
      %5388 = vmatmul.mubr.f32.gmra.mxu0 %v3856
      %v5389 = vpop.f32.mrf.mxu0
      %v5390 = vadd.f32 0.0, %v5389
      %v5391 = vpop.f32.mrf.mxu0
      %5392 = vmatprep.mubr.f32.mxu0 0.0
      %5393 = vmatmul.mubr.f32.gmra.mxu0 %v3859
      %v5394 = vpop.f32.mrf.mxu0
      %v5395 = vadd.f32 0.0, %v5394
      %v5396 = vpop.f32.mrf.mxu0
      %5397 = vmatprep.mubr.f32.mxu0 0.0
      %5398 = vmatmul.mubr.f32.gmra.mxu0 %v3862
      %v5399 = vpop.f32.mrf.mxu0
      %v5400 = vadd.f32 0.0, %v5399
      %v5401 = vpop.f32.mrf.mxu0
      %5402 = vmatprep.mubr.f32.mxu0 0.0
      %5403 = vmatmul.mubr.f32.gmra.mxu0 %v3865
      %v5404 = vpop.f32.mrf.mxu0
      %v5405 = vadd.f32 0.0, %v5404
      %v5406 = vpop.f32.mrf.mxu0
      %5407 = vmatprep.mubr.f32.mxu0 0.0
      %5408 = vmatmul.mubr.f32.gmra.mxu0 %v3868
      %v5409 = vpop.f32.mrf.mxu0
      %v5410 = vadd.f32 0.0, %v5409
      %v5411 = vpop.f32.mrf.mxu0
      %5412 = vmatprep.mubr.f32.mxu0 0.0
      %5413 = vmatmul.mubr.f32.gmra.mxu0 %v3871
      %v5414 = vpop.f32.mrf.mxu0
      %v5415 = vadd.f32 0.0, %v5414
      %v5416 = vpop.f32.mrf.mxu0
      %5417 = vmatprep.mubr.f32.mxu0 0.0
      %5418 = vmatmul.mubr.f32.gmra.mxu0 %v3874
      %v5419 = vpop.f32.mrf.mxu0
      %v5420 = vadd.f32 0.0, %v5419
      %v5421 = vpop.f32.mrf.mxu0
      %5422 = vdwg.mxu0
      %v5423 = vadd.f32 %v5286, %v5385
      %v5424 = vadd.f32 %v5287, %v5390
      %v5425 = vadd.f32 %v5288, %v5395
      %v5426 = vadd.f32 %v5289, %v5400
      %v5427 = vadd.f32 %v5290, %v5405
      %v5428 = vadd.f32 %v5291, %v5410
      %v5429 = vadd.f32 %v5292, %v5415
      %v5430 = vadd.f32 %v5293, %v5420
      %5431 = vrot.lane.b32.xlu0 %v4329, 96
      %v5432 = vpop.permute.xlu0 %5431
      %5433 = vrot.lane.b32.xlu0 %v4334, 96
      %v5434 = vpop.permute.xlu0 %5433
      %5435 = vrot.lane.b32.xlu0 %v4339, 96
      %v5436 = vpop.permute.xlu0 %5435
      %5437 = vrot.lane.b32.xlu0 %v4344, 96
      %v5438 = vpop.permute.xlu0 %5437
      %5439 = vrot.lane.b32.xlu0 %v4349, 96
      %v5440 = vpop.permute.xlu0 %5439
      %5441 = vrot.lane.b32.xlu0 %v4354, 96
      %v5442 = vpop.permute.xlu0 %5441
      %5443 = vrot.lane.b32.xlu0 %v4359, 96
      %v5444 = vpop.permute.xlu0 %5443
      %5445 = vrot.lane.b32.xlu0 %v4364, 96
      %v5446 = vpop.permute.xlu0 %5445
      %5455 = vmatprep.subr.mxu0 0.0
      %5456 = vmatpush1.msra.mxu0 0.0
      %5457 = vmatprep.subr.mxu0 0.0
      %5458 = vmatpush1.msra.mxu0 0.0
      %5459 = vmatprep.subr.mxu0 0.0
      %5460 = vmatpush1.msra.mxu0 0.0
      %5461 = vmatprep.subr.mxu0 0.0
      %5462 = vmatpush1.msra.mxu0 0.0
      %5463 = vmatprep.subr.mxu0 0.0
      %5464 = vmatpush1.msra.mxu0 0.0
      %5465 = vmatprep.subr.mxu0 0.0
      %5466 = vmatpush1.msra.mxu0 0.0
      %5467 = vmatprep.subr.mxu0 0.0
      %5468 = vmatpush1.msra.mxu0 0.0
      %5469 = vmatprep.subr.mxu0 0.0
      %5470 = vmatpush1.msra.mxu0 0.0
      %5471 = vmatprep.subr.mxu0 0.0
      %5472 = vmatpush1.msra.mxu0 %v5446
      %5473 = vmatprep.subr.mxu0 0.0
      %5474 = vmatpush1.msra.mxu0 %v5444
      %5475 = vmatprep.subr.mxu0 0.0
      %5476 = vmatpush1.msra.mxu0 %v5442
      %5477 = vmatprep.subr.mxu0 0.0
      %5478 = vmatpush1.msra.mxu0 %v5440
      %5479 = vmatprep.subr.mxu0 0.0
      %5480 = vmatpush1.msra.mxu0 %v5438
      %5481 = vmatprep.subr.mxu0 0.0
      %5482 = vmatpush1.msra.mxu0 %v5436
      %5483 = vmatprep.subr.mxu0 0.0
      %5484 = vmatpush1.msra.mxu0 %v5434
      %5485 = vmatprep.subr.mxu0 0.0
      %5486 = vmatpush1.msra.mxu0 %v5432
      %5487 = vmatprep.subr.mxu0 0.0
      %5488 = vmatpush2.msra.mxu0 0.0
      %5489 = vmatprep.subr.mxu0 0.0
      %5490 = vmatpush2.msra.mxu0 0.0
      %5491 = vmatprep.subr.mxu0 0.0
      %5492 = vmatpush2.msra.mxu0 0.0
      %5493 = vmatprep.subr.mxu0 0.0
      %5494 = vmatpush2.msra.mxu0 0.0
      %5495 = vmatprep.subr.mxu0 0.0
      %5496 = vmatpush2.msra.mxu0 0.0
      %5497 = vmatprep.subr.mxu0 0.0
      %5498 = vmatpush2.msra.mxu0 0.0
      %5499 = vmatprep.subr.mxu0 0.0
      %5500 = vmatpush2.msra.mxu0 0.0
      %5501 = vmatprep.subr.mxu0 0.0
      %5502 = vmatpush2.msra.mxu0 0.0
      %5503 = vmatprep.subr.mxu0 0.0
      %5504 = vmatpush2.msra.mxu0 0.0
      %5505 = vmatprep.subr.mxu0 0.0
      %5506 = vmatpush2.msra.mxu0 0.0
      %5507 = vmatprep.subr.mxu0 0.0
      %5508 = vmatpush2.msra.mxu0 0.0
      %5509 = vmatprep.subr.mxu0 0.0
      %5510 = vmatpush2.msra.mxu0 0.0
      %5511 = vmatprep.subr.mxu0 0.0
      %5512 = vmatpush2.msra.mxu0 0.0
      %5513 = vmatprep.subr.mxu0 0.0
      %5514 = vmatpush2.msra.mxu0 0.0
      %5515 = vmatprep.subr.mxu0 0.0
      %5516 = vmatpush2.msra.mxu0 0.0
      %5517 = vmatprep.subr.mxu0 0.0
      %5518 = vmatpush2.msra.mxu0 0.0
      %5519 = vmatprep.mubr.f32.mxu0 0.0
      %5520 = vmatmul.mubr.f32.gmra.mxu0 %v3999
      %v5521 = vpop.f32.mrf.mxu0
      %v5522 = vadd.f32 0.0, %v5521
      %v5523 = vpop.f32.mrf.mxu0
      %5524 = vmatprep.mubr.f32.mxu0 0.0
      %5525 = vmatmul.mubr.f32.gmra.mxu0 %v4002
      %v5526 = vpop.f32.mrf.mxu0
      %v5527 = vadd.f32 0.0, %v5526
      %v5528 = vpop.f32.mrf.mxu0
      %5529 = vmatprep.mubr.f32.mxu0 0.0
      %5530 = vmatmul.mubr.f32.gmra.mxu0 %v4005
      %v5531 = vpop.f32.mrf.mxu0
      %v5532 = vadd.f32 0.0, %v5531
      %v5533 = vpop.f32.mrf.mxu0
      %5534 = vmatprep.mubr.f32.mxu0 0.0
      %5535 = vmatmul.mubr.f32.gmra.mxu0 %v4008
      %v5536 = vpop.f32.mrf.mxu0
      %v5537 = vadd.f32 0.0, %v5536
      %v5538 = vpop.f32.mrf.mxu0
      %5539 = vmatprep.mubr.f32.mxu0 0.0
      %5540 = vmatmul.mubr.f32.gmra.mxu0 %v4011
      %v5541 = vpop.f32.mrf.mxu0
      %v5542 = vadd.f32 0.0, %v5541
      %v5543 = vpop.f32.mrf.mxu0
      %5544 = vmatprep.mubr.f32.mxu0 0.0
      %5545 = vmatmul.mubr.f32.gmra.mxu0 %v4014
      %v5546 = vpop.f32.mrf.mxu0
      %v5547 = vadd.f32 0.0, %v5546
      %v5548 = vpop.f32.mrf.mxu0
      %5549 = vmatprep.mubr.f32.mxu0 0.0
      %5550 = vmatmul.mubr.f32.gmra.mxu0 %v4017
      %v5551 = vpop.f32.mrf.mxu0
      %v5552 = vadd.f32 0.0, %v5551
      %v5553 = vpop.f32.mrf.mxu0
      %5554 = vmatprep.mubr.f32.mxu0 0.0
      %5555 = vmatmul.mubr.f32.gmra.mxu0 %v4020
      %v5556 = vpop.f32.mrf.mxu0
      %v5557 = vadd.f32 0.0, %v5556
      %v5558 = vpop.f32.mrf.mxu0
      %5559 = vdwg.mxu0
      %v5560 = vadd.f32 %v5423, %v5522
      %v5561 = vadd.f32 %v5424, %v5527
      %v5562 = vadd.f32 %v5425, %v5532
      %v5563 = vadd.f32 %v5426, %v5537
      %v5564 = vadd.f32 %v5427, %v5542
      %v5565 = vadd.f32 %v5428, %v5547
      %v5566 = vadd.f32 %v5429, %v5552
      %v5567 = vadd.f32 %v5430, %v5557
      %v5569 = vlaneseq
      %v5570 = vshrl.u32 %v5569, 7
      %v5571 = vsub.s32 0, %v5570
      %v5572 = vrot.slane %v4237, %v5571
      %v5574 = vadd.f32 %v5560, %v5572
      %v5575 = vadd.f32 %v5561, %v5572
      %v5576 = vadd.f32 %v5562, %v5572
      %v5577 = vadd.f32 %v5563, %v5572
      %v5578 = vadd.f32 %v5564, %v5572
      %v5579 = vadd.f32 %v5565, %v5572
      %v5580 = vadd.f32 %v5566, %v5572
      %v5581 = vadd.f32 %v5567, %v5572
      %v5582 = vsub.f32 %v5574, %v1247
      %v5583 = vsub.f32 %v5575, %v1248
      %v5584 = vsub.f32 %v5576, %v1249
      %v5585 = vsub.f32 %v5577, %v1250
      %v5586 = vsub.f32 %v5578, %v1251
      %v5587 = vsub.f32 %v5579, %v1252
      %v5588 = vsub.f32 %v5580, %v1253
      %v5589 = vsub.f32 %v5581, %v1254
      %v5590 = vmul.f32 %v5582, %v5582
      %v5591 = vmul.f32 %v5583, %v5583
      %v5592 = vmul.f32 %v5584, %v5584
      %v5593 = vmul.f32 %v5585, %v5585
      %v5594 = vmul.f32 %v5586, %v5586
      %v5595 = vmul.f32 %v5587, %v5587
      %v5596 = vmul.f32 %v5588, %v5588
      %v5597 = vmul.f32 %v5589, %v5589
      %v5598 = vsel %vm2343, %v5590, 0.0
      %v5599 = vsel %vm2343, %v5591, 0.0
      %v5600 = vadd.f32 %v5598, %v5599
      %v5601 = vsel %vm2343, %v5592, 0.0
      %v5602 = vadd.f32 %v5600, %v5601
      %v5603 = vsel %vm2343, %v5593, 0.0
      %v5604 = vadd.f32 %v5602, %v5603
      %v5605 = vsel %vm2343, %v5594, 0.0
      %v5606 = vadd.f32 %v5604, %v5605
      %v5607 = vsel %vm2343, %v5595, 0.0
      %v5608 = vadd.f32 %v5606, %v5607
      %v5609 = vsel %vm2343, %v5596, 0.0
      %v5610 = vadd.f32 %v5608, %v5609
      %v5611 = vsel %vm2343, %v5597, 0.0
      %v5612 = vadd.f32 %v5610, %v5611
      %5613 = vadd.xlane.f32.xlu0 %v5612
      %v5614 = vpop.xlane.xlu0 %5613
      %v5615 = vrot.slane %v5614, 4
      %v5616 = vadd.f32 %v5614, %v5615
      %v5617 = vrot.slane %v5616, 2
      %v5618 = vadd.f32 %v5616, %v5617
      %v5619 = vrot.slane %v5618, 1
      %v5620 = vadd.f32 %v5618, %v5619
      %s5621 = vtos %v5620
      %v5622 = vstv %s5621
      %vm5623 = vcmask 0
      %5624 = vst.msk [vmem:[%s929] sm:$0x1] %vm5623, %v5622
      %v5625 = vmul.f32 %v1238, %v1238
      %v5626 = vmul.f32 %v1239, %v1239
      %v5627 = vmul.f32 %v1240, %v1240
      %v5628 = vmul.f32 %v1241, %v1241
      %v5629 = vmul.f32 %v1242, %v1242
      %v5630 = vmul.f32 %v1243, %v1243
      %v5631 = vmul.f32 %v1244, %v1244
      %v5632 = vmul.f32 %v1245, %v1245
      %v5633 = vsel %vm2343, %v5625, 0.0
      %v5634 = vsel %vm2343, %v5626, 0.0
      %v5635 = vadd.f32 %v5633, %v5634
      %v5636 = vsel %vm2343, %v5627, 0.0
      %v5637 = vadd.f32 %v5635, %v5636
      %v5638 = vsel %vm2343, %v5628, 0.0
      %v5639 = vadd.f32 %v5637, %v5638
      %v5640 = vsel %vm2343, %v5629, 0.0
      %v5641 = vadd.f32 %v5639, %v5640
      %v5642 = vsel %vm2343, %v5630, 0.0
      %v5643 = vadd.f32 %v5641, %v5642
      %v5644 = vsel %vm2343, %v5631, 0.0
      %v5645 = vadd.f32 %v5643, %v5644
      %v5646 = vsel %vm2343, %v5632, 0.0
      %v5647 = vadd.f32 %v5645, %v5646
      %5648 = vadd.xlane.f32.xlu0 %v5647
      %v5649 = vpop.xlane.xlu0 %5648
      %v5650 = vrot.slane %v5649, 4
      %v5651 = vadd.f32 %v5649, %v5650
      %v5652 = vrot.slane %v5651, 2
      %v5653 = vadd.f32 %v5651, %v5652
      %v5654 = vrot.slane %v5653, 1
      %v5655 = vadd.f32 %v5653, %v5654
      %s5656 = vtos %v5655
      %v5657 = vstv %s5656
      %5658 = vst.msk [vmem:[%s932] sm:$0x1] %vm5623, %v5657
      %p5659 = scmp.lt.s32.totalorder %s40, 1
      %s5660 = scalar_select %p5659, %s40, 1
      %s5661 = scalar_lea.vmem %s27, %s5660
      %p5662 = scmp.lt.s32.totalorder %s40, 1
      %s5663 = scalar_select %p5662, %s40, 1
      %s5664 = scalar_lea.vmem %s28, %s5663
      // Predicated region
      $region129: #{conditional_ldm_forward.3} parent=127 // pred_check
        %p5665 = pneg %p655
      $region130: #{conditional_ldm_forward.3} parent=127 // pred_check_branch
        %5667 = sbr.rel (%p5665) target = $region132
      $region131: #{conditional_ldm_forward.3} parent=127 // pred_region
        _
      $region132: #{conditional_ldm_forward.3} parent=127 // pred_fallthru
        _
      // Predicated region
      $region133: #{conditional_ldm_forward.3} parent=127 // pred_check
        %p5668 = pneg %p681
      $region134: #{conditional_ldm_forward.3} parent=127 // pred_check_branch
        %5670 = sbr.rel (%p5668) target = $region136
      $region135: #{conditional_ldm_forward.3} parent=127 // pred_region
        _
      $region136: #{conditional_ldm_forward.3} parent=127 // pred_fallthru
        _
    $region128: #{conditional_ldm_forward.3} parent=5 // pred_fallthru
      _
    %p5671 = scmp.le.s32.totalorder 2, %s35
    // Predicated region
    $region137: #{conditional_ldm_forward.3} parent=5 // pred_check
      %p5672 = pneg %p5671
    $region138: #{conditional_ldm_forward.3} parent=5 // pred_check_branch
      %5674 = sbr.rel (%p5672) target = $region140
    $region139: #{conditional_ldm_forward.3} parent=5 // pred_region
      %s5675 = ssub.s32 %s35, 2
      // Predicated region
      $region141: #{conditional_ldm_forward.3} parent=139 // pred_check
        %p5676 = pneg %p661
      $region142: #{conditional_ldm_forward.3} parent=139 // pred_check_branch
        %5678 = sbr.rel (%p5676) target = $region144
      $region143: #{conditional_ldm_forward.3} parent=139 // pred_region
        %p5679 = scmp.lt.s32.totalorder %s41, 1
        %s5680 = scalar_select %p5679, %s41, 1
        %s5681 = scalar_lea.vmem %s27, %s5680
      $region144: #{conditional_ldm_forward.3} parent=139 // pred_fallthru
        _
      // Predicated region
      $region145: #{conditional_ldm_forward.3} parent=139 // pred_check
        %p5682 = pneg %p687
      $region146: #{conditional_ldm_forward.3} parent=139 // pred_check_branch
        %5684 = sbr.rel (%p5682) target = $region148
      $region147: #{conditional_ldm_forward.3} parent=139 // pred_region
        %p5685 = scmp.lt.s32.totalorder %s41, 1
        %s5686 = scalar_select %p5685, %s41, 1
        %s5687 = scalar_lea.vmem %s28, %s5686
      $region148: #{conditional_ldm_forward.3} parent=139 // pred_fallthru
        _
    $region140: #{conditional_ldm_forward.3} parent=5 // pred_fallthru
      _
  $region6: #{conditional_ldm_forward.3} parent=0 // loop_footer
    %s39 = sadd.s32 1, %s35
  $region7: #{conditional_ldm_forward.3} parent=0 // loop_footer_branch
    %34 = sbr.rel target = $region3
  $region8: #{conditional_ldm_forward.3} parent=0 // loop_exit
    _

</llo_original>
